<compile_context>
chip_gen: v6e
topology: v6e:2x2x1
jax: 0.10.0
libtpu: 0.0.40
codegen_flags: <defaults>
</compile_context>

<pallas_src>
import functools
import math

import jax
import jax.numpy as jnp
from jax.experimental import pallas as pl
from jax.experimental.pallas import tpu as pltpu


_LAYER_PARAM_ORDER = (
    "w_qk", "b_qk", "w_v", "b_v", "w_o", "b_o",
    "norm1_w", "norm1_b", "w1", "b1", "w2", "b2",
    "norm2_w", "norm2_b",
)
_MATMUL_WEIGHTS = ("w_qk", "w_v", "w_o", "w1", "w2")   # stored bf16


# --------------------------- fused stack kernel ------------------------------

def _encoder_stack_kernel(*refs, nhead, eps, tb, seq, has_pos, has_final_norm):
    """One grid step = one encoder layer applied to one batch tile.

    Grid is (batch_tiles, num_layers); the residual stream is carried across
    the (inner, "arbitrary") layer axis in the VMEM scratch `x_scr`.
    """
    it = iter(refs)
    x_ref = next(it)
    pos_ref = next(it) if has_pos else None
    (wqk_ref, bqk_ref, wv_ref, bv_ref, wo_ref, bo_ref,
     n1w_ref, n1b_ref, w1_ref, b1_ref, w2_ref, b2_ref,
     n2w_ref, n2b_ref) = [next(it) for _ in range(14)]
    if has_final_norm:
        fnw_ref = next(it)
        fnb_ref = next(it)
    o_ref = next(it)
    x_scr = next(it)

    l = pl.program_id(1)
    D = x_ref.shape[-1]
    H = nhead
    hd = D // H
    T = tb * seq
    scale = 1.0 / math.sqrt(hd)
    bf16 = jnp.bfloat16

    def layer_norm(t, w, b):
        mu = jnp.mean(t, axis=-1, keepdims=True)
        var = jnp.mean(jnp.square(t - mu), axis=-1, keepdims=True)
        return (t - mu) * jax.lax.rsqrt(var + eps) * w + b

    # Initialize the resident residual stream for this batch tile.
    @pl.when(l == 0)
    def _():
        x_scr[...] = x_ref[...]

    x = x_scr[...]                                        # (T, D) f32 residual
    if has_pos:
        xp = x + pos_ref[...]                             # q/k input (pos-embedded)
    else:
        xp = x

    # ---- fused Q|K projection (one MXU pass) + V projection ----------------
    qk = jnp.dot(xp.astype(bf16), wqk_ref[...],
                 preferred_element_type=jnp.float32) + bqk_ref[...]   # (T, 2D)
    v = jnp.dot(x.astype(bf16), wv_ref[...],
                preferred_element_type=jnp.float32) + bv_ref[...]     # (T, D)

    # per-batch views for attention (only the SxS score matmul needs them)
    q3 = qk[:, :D].reshape(tb, seq, D).astype(bf16)
    k3 = qk[:, D:].reshape(tb, seq, D).astype(bf16)
    v3 = v.reshape(tb, seq, D).astype(bf16)

    # ---- multi-head self-attention ------------------------------------------
    # The batch dim is handled by a single 3-D einsum per head; the output
    # projection is fused into the head loop, so there is no concat and no
    # masked lane-offset writes.
    # TODO(synk): KV-tiled online-softmax loop for large S (O(S^2) scores here).
    attn = jnp.zeros((T, D), jnp.float32)
    for h in range(H):
        lo, hi = h * hd, (h + 1) * hd
        qh = q3[:, :, lo:hi]                              # (tb, S, hd)
        kh = k3[:, :, lo:hi]
        vh = v3[:, :, lo:hi]
        s = jnp.einsum("bqd,bkd->bqk", qh, kh,
                       preferred_element_type=jnp.float32) * scale    # (tb,S,S)
        m = jnp.max(s, axis=-1, keepdims=True)
        p = jnp.exp(s - m)
        denom = jnp.sum(p, axis=-1, keepdims=True)
        oh = jnp.einsum("bqk,bkd->bqd", p.astype(bf16), vh,
                        preferred_element_type=jnp.float32)           # (tb,S,hd)
        oh = (oh / denom).reshape(T, hd)                  # exact softmax normalize
        # concat_h(o_h) @ Wo^T == sum_h o_h @ Wo^T[h]  (wo_ref is (H, hd, D))
        attn = attn + jnp.dot(oh.astype(bf16), wo_ref[h],
                              preferred_element_type=jnp.float32)
    attn = attn + bo_ref[...]

    # ---- residual + LayerNorm1 (dropout = identity) --------------------------
    y = layer_norm(x + attn, n1w_ref[...], n1b_ref[...])

    # ---- FFN + residual + LayerNorm2 -----------------------------------------
    h1 = jnp.dot(y.astype(bf16), w1_ref[...],
                 preferred_element_type=jnp.float32) + b1_ref[...]
    h1 = jnp.maximum(h1, 0.0)                             # ReLU
    ff = jnp.dot(h1.astype(bf16), w2_ref[...],
                 preferred_element_type=jnp.float32) + b2_ref[...]
    z = layer_norm(y + ff, n2w_ref[...], n2b_ref[...])

    x_scr[...] = z                                        # carry to next layer

    # ---- last layer: fold in the final LayerNorm and store one dense slab ----
    @pl.when(l == pl.num_programs(1) - 1)
    def _():
        out = layer_norm(z, fnw_ref[...], fnb_ref[...]) if has_final_norm else z
        o_ref[...] = out.astype(o_ref.dtype)


# --------------------------- TransformerEncoder ------------------------------

def transformer_encoder_forward(src, params, *, nhead, eps=1e-5, batch_tiles=1,
                                vmem_limit_bytes=None,
                                mask=None, src_key_padding_mask=None, pos=None):
    """Equivalent of TransformerEncoder.forward (eval mode). src/pos: (S, B, D)."""
    if mask is not None or src_key_padding_mask is not None:
        # TODO(synk): attn_mask / key_padding_mask support (None in this example).
        raise NotImplementedError("masks are not supported")

    S, B, D = src.shape
    L = params["w_qk"].shape[0]
    assert B % batch_tiles == 0, "batch_tiles must divide the batch"
    tb = B // batch_tiles
    T = tb * S

    # Batch-first, token-flattened layout: every projection / FFN matmul runs
    # on a (B*S, D) slab; only the attention score matmul uses per-batch views.
    x = jnp.transpose(src, (1, 0, 2)).reshape(B * S, D)
    has_pos = pos is not None
    has_final_norm = ("norm_w" in params) and (params["norm_w"] is not None)

    tok_spec = pl.BlockSpec((T, D), lambda bt, l: (bt, 0))

    inputs, in_specs = [x], [tok_spec]
    if has_pos:
        inputs.append(jnp.transpose(pos, (1, 0, 2)).reshape(B * S, D))
        in_specs.append(tok_spec)     # constant across the layer axis (no re-DMA)
    for name in _LAYER_PARAM_ORDER:
        arr = params[name]
        inputs.append(arr)
        nd = arr.ndim
        in_specs.append(
            pl.BlockSpec((None,) + arr.shape[1:],
                         lambda bt, l, _nd=nd: (l,) + (0,) * (_nd - 1)))
    if has_final_norm:
        fspec = pl.BlockSpec((1, D), lambda bt, l: (0, 0))
        inputs += [params["norm_w"], params["norm_b"]]
        in_specs += [fspec, fspec]

    kernel = functools.partial(
        _encoder_stack_kernel, nhead=nhead, eps=eps, tb=tb, seq=S,
        has_pos=has_pos, has_final_norm=has_final_norm)

    out = pl.pallas_call(
        kernel,
        out_shape=jax.ShapeDtypeStruct((B * S, D), jnp.float32),
        grid=(batch_tiles, L),
        in_specs=in_specs,
        out_specs=tok_spec,
        scratch_shapes=[pltpu.VMEM((T, D), jnp.float32)],   # resident residual
        compiler_params=pltpu.CompilerParams(
            dimension_semantics=("parallel", "arbitrary"),
            vmem_limit_bytes=vmem_limit_bytes),
    )(*inputs)

    return jnp.transpose(out.reshape(B, S, D), (1, 0, 2))   # back to (S, B, D)


# ------------------------------ parameter init -------------------------------

def _init_layer(key, d_model, nhead, dim_feedforward):
    """Kernel-layout weights (pre-transposed / pre-concatenated / pre-split):
         w_qk = [Wq^T | Wk^T] : (D, 2D)     w_v = Wv^T : (D, D)
         w_o  = Wo^T reshaped : (H, hd, D)  (per-head out-projection slices)
         w1   = W1^T : (D, dff)             w2  = W2^T : (dff, D)
    """
    D, F, H = d_model, dim_feedforward, nhead
    hd = D // H
    ks = jax.random.split(key, 7)
    xa = math.sqrt(6.0 / (2 * D))        # xavier_uniform_ (PyTorch MHA in_proj)
    ld = 1.0 / math.sqrt(D)
    lf = 1.0 / math.sqrt(F)
    u = jax.random.uniform
    return {
        "w_qk": u(ks[0], (D, 2 * D), jnp.float32, -xa, xa),
        "b_qk": jnp.zeros((1, 2 * D), jnp.float32),
        "w_v": u(ks[1], (D, D), jnp.float32, -xa, xa),
        "b_v": jnp.zeros((1, D), jnp.float32),
        "w_o": u(ks[2], (D, D), jnp.float32, -ld, ld).reshape(H, hd, D),
        "b_o": jnp.zeros((1, D), jnp.float32),
        "norm1_w": jnp.ones((1, D), jnp.float32),
        "norm1_b": jnp.zeros((1, D), jnp.float32),
        "w1": u(ks[3], (D, F), jnp.float32, -ld, ld),
        "b1": u(ks[4], (1, F), jnp.float32, -ld, ld),
        "w2": u(ks[5], (F, D), jnp.float32, -lf, lf),
        "b2": u(ks[6], (1, D), jnp.float32, -lf, lf),
        "norm2_w": jnp.ones((1, D), jnp.float32),
        "norm2_b": jnp.zeros((1, D), jnp.float32),
    }


def init_encoder_params(key, num_layers, d_model, nhead, dim_feedforward,
                        final_norm=True):
    keys = jax.random.split(key, num_layers)
    layers = [_init_layer(k, d_model, nhead, dim_feedforward) for k in keys]
    # Stack per-layer weights along a leading L axis (streamed per grid step).
    params = {name: jnp.stack([lp[name] for lp in layers]) for name in layers[0]}
    # Matmul weights in bf16 (half the streamed bytes); f32 accumulate in-kernel.
    for name in _MATMUL_WEIGHTS:
        params[name] = params[name].astype(jnp.bfloat16)
    if final_norm:
        params["norm_w"] = jnp.ones((1, d_model), jnp.float32)
        params["norm_b"] = jnp.zeros((1, d_model), jnp.float32)
    return params


# ----------------------------------- main ------------------------------------

if __name__ == "__main__":
    S, B = 16, 2                 # src sequence length, batch
    d_model, nhead, dff = 32, 4, 64
    num_layers = 2

    root = jax.random.PRNGKey(0)
    k_src, k_pos, k_par = jax.random.split(root, 3)

    src = jax.random.normal(k_src, (S, B, d_model), jnp.float32)
    pos = jax.random.normal(k_pos, (S, B, d_model), jnp.float32)
    params = init_encoder_params(k_par, num_layers, d_model, nhead, dff)

    fwd = jax.jit(functools.partial(transformer_encoder_forward, nhead=nhead))
    out = jax.block_until_ready(fwd(src, params, pos=pos))

    assert out.shape == (S, B, d_model), out.shape
    assert jnp.all(jnp.isfinite(out))
    print("KERNEL_OK")
</pallas_src>

<mosaic_0001>
module attributes {stable_mosaic.version = 11 : i64} {
  func.func @_encoder_stack_kernel(%arg0: i32, %arg1: i32, %arg2: memref<32x32xf32, #tpu.memory_space<vmem>>, %arg3: memref<32x32xf32, #tpu.memory_space<vmem>>, %arg4: memref<1x32x64xbf16, #tpu.memory_space<vmem>>, %arg5: memref<1x1x64xf32, #tpu.memory_space<vmem>>, %arg6: memref<1x32x32xbf16, #tpu.memory_space<vmem>>, %arg7: memref<1x1x32xf32, #tpu.memory_space<vmem>>, %arg8: memref<1x4x8x32xbf16, #tpu.memory_space<vmem>>, %arg9: memref<1x1x32xf32, #tpu.memory_space<vmem>>, %arg10: memref<1x1x32xf32, #tpu.memory_space<vmem>>, %arg11: memref<1x1x32xf32, #tpu.memory_space<vmem>>, %arg12: memref<1x32x64xbf16, #tpu.memory_space<vmem>>, %arg13: memref<1x1x64xf32, #tpu.memory_space<vmem>>, %arg14: memref<1x64x32xbf16, #tpu.memory_space<vmem>>, %arg15: memref<1x1x32xf32, #tpu.memory_space<vmem>>, %arg16: memref<1x1x32xf32, #tpu.memory_space<vmem>>, %arg17: memref<1x1x32xf32, #tpu.memory_space<vmem>>, %arg18: memref<1x32xf32, #tpu.memory_space<vmem>>, %arg19: memref<1x32xf32, #tpu.memory_space<vmem>>, %arg20: memref<32x32xf32, #tpu.memory_space<vmem>>, %arg21: memref<32x32xf32, #tpu.memory_space<vmem>>) attributes {dimension_semantics = [#tpu.dimension_semantics<parallel>, #tpu.dimension_semantics<arbitrary>], iteration_bounds = array<i64: 1, 2>, scalar_prefetch = 0 : i64, scratch_operands = 1 : i64, tpu.core_type = #tpu.core_type<tc>, window_params = [{transform_indices = @transform_0, window_bounds = array<i64: 32, 32>}, {transform_indices = @transform_1, window_bounds = array<i64: 32, 32>}, {transform_indices = @transform_2, window_bounds = array<i64: 1, 32, 64>}, {transform_indices = @transform_3, window_bounds = array<i64: 1, 1, 64>}, {transform_indices = @transform_4, window_bounds = array<i64: 1, 32, 32>}, {transform_indices = @transform_5, window_bounds = array<i64: 1, 1, 32>}, {transform_indices = @transform_6, window_bounds = array<i64: 1, 4, 8, 32>}, {transform_indices = @transform_7, window_bounds = array<i64: 1, 1, 32>}, {transform_indices = @transform_8, window_bounds = array<i64: 1, 1, 32>}, {transform_indices = @transform_9, window_bounds = array<i64: 1, 1, 32>}, {transform_indices = @transform_10, window_bounds = array<i64: 1, 32, 64>}, {transform_indices = @transform_11, window_bounds = array<i64: 1, 1, 64>}, {transform_indices = @transform_12, window_bounds = array<i64: 1, 64, 32>}, {transform_indices = @transform_13, window_bounds = array<i64: 1, 1, 32>}, {transform_indices = @transform_14, window_bounds = array<i64: 1, 1, 32>}, {transform_indices = @transform_15, window_bounds = array<i64: 1, 1, 32>}, {pipeline_mode = #tpu.pipeline_mode<synchronous>, transform_indices = @transform_16, window_bounds = array<i64: 1, 32>}, {pipeline_mode = #tpu.pipeline_mode<synchronous>, transform_indices = @transform_17, window_bounds = array<i64: 1, 32>}, {transform_indices = @transform_18, window_bounds = array<i64: 32, 32>}]} {
    %c0_i32 = arith.constant 0 : i32
    %0 = arith.cmpi eq, %arg1, %c0_i32 : i32
    %1 = arith.extui %0 : i1 to i32
    %c0_i32_0 = arith.constant 0 : i32
    %2 = arith.cmpi ne, %1, %c0_i32_0 : i32
    scf.if %2 {
      %c0_98 = arith.constant 0 : index
      %c0_99 = arith.constant 0 : index
      %203 = vector.load %arg2[%c0_98, %c0_99] : memref<32x32xf32, #tpu.memory_space<vmem>>, vector<32x32xf32>
      %c0_100 = arith.constant 0 : index
      %c0_101 = arith.constant 0 : index
      %204 = vector.load %arg21[%c0_100, %c0_101] : memref<32x32xf32, #tpu.memory_space<vmem>>, vector<32x32xf32>
      tpu.vector_store %arg21[%c0_100, %c0_101], %203 {strides = array<i32>} : memref<32x32xf32, #tpu.memory_space<vmem>>, vector<32x32xf32>,
    } else {
    }
    %c0 = arith.constant 0 : index
    %c0_1 = arith.constant 0 : index
    %3 = vector.load %arg21[%c0, %c0_1] : memref<32x32xf32, #tpu.memory_space<vmem>>, vector<32x32xf32>
    %c0_2 = arith.constant 0 : index
    %c0_3 = arith.constant 0 : index
    %4 = vector.load %arg3[%c0_2, %c0_3] : memref<32x32xf32, #tpu.memory_space<vmem>>, vector<32x32xf32>
    %5 = arith.addf %3, %4 : vector<32x32xf32>
    %6 = arith.truncf %5 : vector<32x32xf32> to vector<32x32xbf16>
    %c0_4 = arith.constant 0 : index
    %c0_5 = arith.constant 0 : index
    %c0_6 = arith.constant 0 : index
    %7 = vector.load %arg4[%c0_4, %c0_5, %c0_6] : memref<1x32x64xbf16, #tpu.memory_space<vmem>>, vector<1x32x64xbf16>
    %8 = vector.shape_cast %7 : vector<1x32x64xbf16> to vector<32x64xbf16>
    %cst = arith.constant dense<0.000000e+00> : vector<32x64xf32>
    %9 = tpu.matmul %6, %8, %cst {dimension_numbers = #tpu.dot_dimension_numbers<[1], [0], [0], [1], [0, 0, 1, 1], [], []>} : vector<32x32xbf16>, vector<32x64xbf16>, vector<32x64xf32> -> vector<32x64xf32>
    %c0_7 = arith.constant 0 : index
    %c0_8 = arith.constant 0 : index
    %c0_9 = arith.constant 0 : index
    %10 = vector.load %arg5[%c0_7, %c0_8, %c0_9] : memref<1x1x64xf32, #tpu.memory_space<vmem>>, vector<1x1x64xf32>
    %11 = vector.shape_cast %10 : vector<1x1x64xf32> to vector<1x64xf32>
    %12 = vector.broadcast %11 : vector<1x64xf32> to vector<32x64xf32>
    %13 = arith.addf %9, %12 : vector<32x64xf32>
    %14 = arith.truncf %3 : vector<32x32xf32> to vector<32x32xbf16>
    %c0_10 = arith.constant 0 : index
    %c0_11 = arith.constant 0 : index
    %c0_12 = arith.constant 0 : index
    %15 = vector.load %arg6[%c0_10, %c0_11, %c0_12] : memref<1x32x32xbf16, #tpu.memory_space<vmem>>, vector<1x32x32xbf16>
    %16 = vector.shape_cast %15 : vector<1x32x32xbf16> to vector<32x32xbf16>
    %cst_13 = arith.constant dense<0.000000e+00> : vector<32x32xf32>
    %17 = tpu.matmul %14, %16, %cst_13 {dimension_numbers = #tpu.dot_dimension_numbers<[1], [0], [0], [1], [0, 0, 1, 1], [], []>} : vector<32x32xbf16>, vector<32x32xbf16>, vector<32x32xf32> -> vector<32x32xf32>
    %c0_14 = arith.constant 0 : index
    %c0_15 = arith.constant 0 : index
    %c0_16 = arith.constant 0 : index
    %18 = vector.load %arg7[%c0_14, %c0_15, %c0_16] : memref<1x1x32xf32, #tpu.memory_space<vmem>>, vector<1x1x32xf32>
    %19 = vector.shape_cast %18 : vector<1x1x32xf32> to vector<1x32xf32>
    %20 = vector.broadcast %19 : vector<1x32xf32> to vector<32x32xf32>
    %21 = arith.addf %17, %20 : vector<32x32xf32>
    %22 = vector.extract_strided_slice %13 {offsets = [0, 0], sizes = [32, 32], strides = [1, 1]} : vector<32x64xf32> to vector<32x32xf32>
    %23 = vector.shape_cast %22 : vector<32x32xf32> to vector<2x16x32xf32>
    %24 = arith.truncf %23 : vector<2x16x32xf32> to vector<2x16x32xbf16>
    %25 = vector.extract_strided_slice %13 {offsets = [0, 32], sizes = [32, 32], strides = [1, 1]} : vector<32x64xf32> to vector<32x32xf32>
    %26 = vector.shape_cast %25 : vector<32x32xf32> to vector<2x16x32xf32>
    %27 = arith.truncf %26 : vector<2x16x32xf32> to vector<2x16x32xbf16>
    %28 = vector.shape_cast %21 : vector<32x32xf32> to vector<2x16x32xf32>
    %29 = arith.truncf %28 : vector<2x16x32xf32> to vector<2x16x32xbf16>
    %cst_17 = arith.constant 0.000000e+00 : f32
    %30 = vector.broadcast %cst_17 : f32 to vector<32x32xf32>
    %31 = vector.extract_strided_slice %24 {offsets = [0, 0, 0], sizes = [2, 16, 8], strides = [1, 1, 1]} : vector<2x16x32xbf16> to vector<2x16x8xbf16>
    %32 = vector.extract_strided_slice %27 {offsets = [0, 0, 0], sizes = [2, 16, 8], strides = [1, 1, 1]} : vector<2x16x32xbf16> to vector<2x16x8xbf16>
    %33 = vector.extract_strided_slice %29 {offsets = [0, 0, 0], sizes = [2, 16, 8], strides = [1, 1, 1]} : vector<2x16x32xbf16> to vector<2x16x8xbf16>
    "tpu.trace_start"() <{level = 10 : i32, message = "bqd,bkd->bqk"}> : () -> ()
    %cst_18 = arith.constant dense<0.000000e+00> : vector<2x16x16xf32>
    %34 = tpu.matmul %31, %32, %cst_18 {dimension_numbers = #tpu.dot_dimension_numbers<[2], [2], [1], [1], [0, 0, 0, 1, 1, 1], [0], [0]>} : vector<2x16x8xbf16>, vector<2x16x8xbf16>, vector<2x16x16xf32> -> vector<2x16x16xf32>
    "tpu.trace_stop"() : () -> ()
    %cst_19 = arith.constant 0.353553385 : f32
    %35 = vector.broadcast %cst_19 : f32 to vector<2x16x16xf32>
    %36 = arith.mulf %34, %35 : vector<2x16x16xf32>
    %cst_20 = arith.constant dense<0xFF800000> : vector<2x16xf32>
    %37 = vector.multi_reduction <maximumf>, %36, %cst_20 [2] : vector<2x16x16xf32> to vector<2x16xf32>
    %38 = vector.shape_cast %37 : vector<2x16xf32> to vector<2x16x1xf32>
    %39 = vector.broadcast %38 : vector<2x16x1xf32> to vector<2x16x16xf32>
    %40 = arith.subf %36, %39 : vector<2x16x16xf32>
    %41 = math.exp %40 : vector<2x16x16xf32>
    %cst_21 = arith.constant dense<0.000000e+00> : vector<2x16xf32>
    %42 = vector.multi_reduction <add>, %41, %cst_21 [2] : vector<2x16x16xf32> to vector<2x16xf32>
    %43 = vector.shape_cast %42 : vector<2x16xf32> to vector<2x16x1xf32>
    %44 = arith.truncf %41 : vector<2x16x16xf32> to vector<2x16x16xbf16>
    "tpu.trace_start"() <{level = 10 : i32, message = "bqk,bkd->bqd"}> : () -> ()
    %cst_22 = arith.constant dense<0.000000e+00> : vector<2x16x8xf32>
    %45 = tpu.matmul %44, %33, %cst_22 {dimension_numbers = #tpu.dot_dimension_numbers<[2], [1], [1], [2], [0, 0, 0, 1, 1, 2], [0], [0]>} : vector<2x16x16xbf16>, vector<2x16x8xbf16>, vector<2x16x8xf32> -> vector<2x16x8xf32>
    "tpu.trace_stop"() : () -> ()
    %46 = vector.broadcast %43 : vector<2x16x1xf32> to vector<2x16x8xf32>
    %47 = arith.divf %45, %46 : vector<2x16x8xf32>
    %48 = vector.shape_cast %47 : vector<2x16x8xf32> to vector<32x8xf32>
    %49 = arith.truncf %48 : vector<32x8xf32> to vector<32x8xbf16>
    %c0_23 = arith.constant 0 : index
    %c0_24 = arith.constant 0 : index
    %c0_25 = arith.constant 0 : index
    %c0_26 = arith.constant 0 : index
    %50 = vector.load %arg8[%c0_23, %c0_24, %c0_25, %c0_26] : memref<1x4x8x32xbf16, #tpu.memory_space<vmem>>, vector<1x1x8x32xbf16>
    %51 = vector.shape_cast %50 : vector<1x1x8x32xbf16> to vector<8x32xbf16>
    %cst_27 = arith.constant dense<0.000000e+00> : vector<32x32xf32>
    %52 = tpu.matmul %49, %51, %cst_27 {dimension_numbers = #tpu.dot_dimension_numbers<[1], [0], [0], [1], [0, 0, 1, 1], [], []>} : vector<32x8xbf16>, vector<8x32xbf16>, vector<32x32xf32> -> vector<32x32xf32>
    %53 = arith.addf %30, %52 : vector<32x32xf32>
    %54 = vector.extract_strided_slice %24 {offsets = [0, 0, 8], sizes = [2, 16, 8], strides = [1, 1, 1]} : vector<2x16x32xbf16> to vector<2x16x8xbf16>
    %55 = vector.extract_strided_slice %27 {offsets = [0, 0, 8], sizes = [2, 16, 8], strides = [1, 1, 1]} : vector<2x16x32xbf16> to vector<2x16x8xbf16>
    %56 = vector.extract_strided_slice %29 {offsets = [0, 0, 8], sizes = [2, 16, 8], strides = [1, 1, 1]} : vector<2x16x32xbf16> to vector<2x16x8xbf16>
    "tpu.trace_start"() <{level = 10 : i32, message = "bqd,bkd->bqk"}> : () -> ()
    %cst_28 = arith.constant dense<0.000000e+00> : vector<2x16x16xf32>
    %57 = tpu.matmul %54, %55, %cst_28 {dimension_numbers = #tpu.dot_dimension_numbers<[2], [2], [1], [1], [0, 0, 0, 1, 1, 1], [0], [0]>} : vector<2x16x8xbf16>, vector<2x16x8xbf16>, vector<2x16x16xf32> -> vector<2x16x16xf32>
    "tpu.trace_stop"() : () -> ()
    %cst_29 = arith.constant 0.353553385 : f32
    %58 = vector.broadcast %cst_29 : f32 to vector<2x16x16xf32>
    %59 = arith.mulf %57, %58 : vector<2x16x16xf32>
    %cst_30 = arith.constant dense<0xFF800000> : vector<2x16xf32>
    %60 = vector.multi_reduction <maximumf>, %59, %cst_30 [2] : vector<2x16x16xf32> to vector<2x16xf32>
    %61 = vector.shape_cast %60 : vector<2x16xf32> to vector<2x16x1xf32>
    %62 = vector.broadcast %61 : vector<2x16x1xf32> to vector<2x16x16xf32>
    %63 = arith.subf %59, %62 : vector<2x16x16xf32>
    %64 = math.exp %63 : vector<2x16x16xf32>
    %cst_31 = arith.constant dense<0.000000e+00> : vector<2x16xf32>
    %65 = vector.multi_reduction <add>, %64, %cst_31 [2] : vector<2x16x16xf32> to vector<2x16xf32>
    %66 = vector.shape_cast %65 : vector<2x16xf32> to vector<2x16x1xf32>
    %67 = arith.truncf %64 : vector<2x16x16xf32> to vector<2x16x16xbf16>
    "tpu.trace_start"() <{level = 10 : i32, message = "bqk,bkd->bqd"}> : () -> ()
    %cst_32 = arith.constant dense<0.000000e+00> : vector<2x16x8xf32>
    %68 = tpu.matmul %67, %56, %cst_32 {dimension_numbers = #tpu.dot_dimension_numbers<[2], [1], [1], [2], [0, 0, 0, 1, 1, 2], [0], [0]>} : vector<2x16x16xbf16>, vector<2x16x8xbf16>, vector<2x16x8xf32> -> vector<2x16x8xf32>
    "tpu.trace_stop"() : () -> ()
    %69 = vector.broadcast %66 : vector<2x16x1xf32> to vector<2x16x8xf32>
    %70 = arith.divf %68, %69 : vector<2x16x8xf32>
    %71 = vector.shape_cast %70 : vector<2x16x8xf32> to vector<32x8xf32>
    %72 = arith.truncf %71 : vector<32x8xf32> to vector<32x8xbf16>
    %c0_33 = arith.constant 0 : index
    %c1 = arith.constant 1 : index
    %c0_34 = arith.constant 0 : index
    %c0_35 = arith.constant 0 : index
    %73 = vector.load %arg8[%c0_33, %c1, %c0_34, %c0_35] : memref<1x4x8x32xbf16, #tpu.memory_space<vmem>>, vector<1x1x8x32xbf16>
    %74 = vector.shape_cast %73 : vector<1x1x8x32xbf16> to vector<8x32xbf16>
    %cst_36 = arith.constant dense<0.000000e+00> : vector<32x32xf32>
    %75 = tpu.matmul %72, %74, %cst_36 {dimension_numbers = #tpu.dot_dimension_numbers<[1], [0], [0], [1], [0, 0, 1, 1], [], []>} : vector<32x8xbf16>, vector<8x32xbf16>, vector<32x32xf32> -> vector<32x32xf32>
    %76 = arith.addf %53, %75 : vector<32x32xf32>
    %77 = vector.extract_strided_slice %24 {offsets = [0, 0, 16], sizes = [2, 16, 8], strides = [1, 1, 1]} : vector<2x16x32xbf16> to vector<2x16x8xbf16>
    %78 = vector.extract_strided_slice %27 {offsets = [0, 0, 16], sizes = [2, 16, 8], strides = [1, 1, 1]} : vector<2x16x32xbf16> to vector<2x16x8xbf16>
    %79 = vector.extract_strided_slice %29 {offsets = [0, 0, 16], sizes = [2, 16, 8], strides = [1, 1, 1]} : vector<2x16x32xbf16> to vector<2x16x8xbf16>
    "tpu.trace_start"() <{level = 10 : i32, message = "bqd,bkd->bqk"}> : () -> ()
    %cst_37 = arith.constant dense<0.000000e+00> : vector<2x16x16xf32>
    %80 = tpu.matmul %77, %78, %cst_37 {dimension_numbers = #tpu.dot_dimension_numbers<[2], [2], [1], [1], [0, 0, 0, 1, 1, 1], [0], [0]>} : vector<2x16x8xbf16>, vector<2x16x8xbf16>, vector<2x16x16xf32> -> vector<2x16x16xf32>
    "tpu.trace_stop"() : () -> ()
    %cst_38 = arith.constant 0.353553385 : f32
    %81 = vector.broadcast %cst_38 : f32 to vector<2x16x16xf32>
    %82 = arith.mulf %80, %81 : vector<2x16x16xf32>
    %cst_39 = arith.constant dense<0xFF800000> : vector<2x16xf32>
    %83 = vector.multi_reduction <maximumf>, %82, %cst_39 [2] : vector<2x16x16xf32> to vector<2x16xf32>
    %84 = vector.shape_cast %83 : vector<2x16xf32> to vector<2x16x1xf32>
    %85 = vector.broadcast %84 : vector<2x16x1xf32> to vector<2x16x16xf32>
    %86 = arith.subf %82, %85 : vector<2x16x16xf32>
    %87 = math.exp %86 : vector<2x16x16xf32>
    %cst_40 = arith.constant dense<0.000000e+00> : vector<2x16xf32>
    %88 = vector.multi_reduction <add>, %87, %cst_40 [2] : vector<2x16x16xf32> to vector<2x16xf32>
    %89 = vector.shape_cast %88 : vector<2x16xf32> to vector<2x16x1xf32>
    %90 = arith.truncf %87 : vector<2x16x16xf32> to vector<2x16x16xbf16>
    "tpu.trace_start"() <{level = 10 : i32, message = "bqk,bkd->bqd"}> : () -> ()
    %cst_41 = arith.constant dense<0.000000e+00> : vector<2x16x8xf32>
    %91 = tpu.matmul %90, %79, %cst_41 {dimension_numbers = #tpu.dot_dimension_numbers<[2], [1], [1], [2], [0, 0, 0, 1, 1, 2], [0], [0]>} : vector<2x16x16xbf16>, vector<2x16x8xbf16>, vector<2x16x8xf32> -> vector<2x16x8xf32>
    "tpu.trace_stop"() : () -> ()
    %92 = vector.broadcast %89 : vector<2x16x1xf32> to vector<2x16x8xf32>
    %93 = arith.divf %91, %92 : vector<2x16x8xf32>
    %94 = vector.shape_cast %93 : vector<2x16x8xf32> to vector<32x8xf32>
    %95 = arith.truncf %94 : vector<32x8xf32> to vector<32x8xbf16>
    %c0_42 = arith.constant 0 : index
    %c2 = arith.constant 2 : index
    %c0_43 = arith.constant 0 : index
    %c0_44 = arith.constant 0 : index
    %96 = vector.load %arg8[%c0_42, %c2, %c0_43, %c0_44] : memref<1x4x8x32xbf16, #tpu.memory_space<vmem>>, vector<1x1x8x32xbf16>
    %97 = vector.shape_cast %96 : vector<1x1x8x32xbf16> to vector<8x32xbf16>
    %cst_45 = arith.constant dense<0.000000e+00> : vector<32x32xf32>
    %98 = tpu.matmul %95, %97, %cst_45 {dimension_numbers = #tpu.dot_dimension_numbers<[1], [0], [0], [1], [0, 0, 1, 1], [], []>} : vector<32x8xbf16>, vector<8x32xbf16>, vector<32x32xf32> -> vector<32x32xf32>
    %99 = arith.addf %76, %98 : vector<32x32xf32>
    %100 = vector.extract_strided_slice %24 {offsets = [0, 0, 24], sizes = [2, 16, 8], strides = [1, 1, 1]} : vector<2x16x32xbf16> to vector<2x16x8xbf16>
    %101 = vector.extract_strided_slice %27 {offsets = [0, 0, 24], sizes = [2, 16, 8], strides = [1, 1, 1]} : vector<2x16x32xbf16> to vector<2x16x8xbf16>
    %102 = vector.extract_strided_slice %29 {offsets = [0, 0, 24], sizes = [2, 16, 8], strides = [1, 1, 1]} : vector<2x16x32xbf16> to vector<2x16x8xbf16>
    "tpu.trace_start"() <{level = 10 : i32, message = "bqd,bkd->bqk"}> : () -> ()
    %cst_46 = arith.constant dense<0.000000e+00> : vector<2x16x16xf32>
    %103 = tpu.matmul %100, %101, %cst_46 {dimension_numbers = #tpu.dot_dimension_numbers<[2], [2], [1], [1], [0, 0, 0, 1, 1, 1], [0], [0]>} : vector<2x16x8xbf16>, vector<2x16x8xbf16>, vector<2x16x16xf32> -> vector<2x16x16xf32>
    "tpu.trace_stop"() : () -> ()
    %cst_47 = arith.constant 0.353553385 : f32
    %104 = vector.broadcast %cst_47 : f32 to vector<2x16x16xf32>
    %105 = arith.mulf %103, %104 : vector<2x16x16xf32>
    %cst_48 = arith.constant dense<0xFF800000> : vector<2x16xf32>
    %106 = vector.multi_reduction <maximumf>, %105, %cst_48 [2] : vector<2x16x16xf32> to vector<2x16xf32>
    %107 = vector.shape_cast %106 : vector<2x16xf32> to vector<2x16x1xf32>
    %108 = vector.broadcast %107 : vector<2x16x1xf32> to vector<2x16x16xf32>
    %109 = arith.subf %105, %108 : vector<2x16x16xf32>
    %110 = math.exp %109 : vector<2x16x16xf32>
    %cst_49 = arith.constant dense<0.000000e+00> : vector<2x16xf32>
    %111 = vector.multi_reduction <add>, %110, %cst_49 [2] : vector<2x16x16xf32> to vector<2x16xf32>
    %112 = vector.shape_cast %111 : vector<2x16xf32> to vector<2x16x1xf32>
    %113 = arith.truncf %110 : vector<2x16x16xf32> to vector<2x16x16xbf16>
    "tpu.trace_start"() <{level = 10 : i32, message = "bqk,bkd->bqd"}> : () -> ()
    %cst_50 = arith.constant dense<0.000000e+00> : vector<2x16x8xf32>
    %114 = tpu.matmul %113, %102, %cst_50 {dimension_numbers = #tpu.dot_dimension_numbers<[2], [1], [1], [2], [0, 0, 0, 1, 1, 2], [0], [0]>} : vector<2x16x16xbf16>, vector<2x16x8xbf16>, vector<2x16x8xf32> -> vector<2x16x8xf32>
    "tpu.trace_stop"() : () -> ()
    %115 = vector.broadcast %112 : vector<2x16x1xf32> to vector<2x16x8xf32>
    %116 = arith.divf %114, %115 : vector<2x16x8xf32>
    %117 = vector.shape_cast %116 : vector<2x16x8xf32> to vector<32x8xf32>
    %118 = arith.truncf %117 : vector<32x8xf32> to vector<32x8xbf16>
    %c0_51 = arith.constant 0 : index
    %c3 = arith.constant 3 : index
    %c0_52 = arith.constant 0 : index
    %c0_53 = arith.constant 0 : index
    %119 = vector.load %arg8[%c0_51, %c3, %c0_52, %c0_53] : memref<1x4x8x32xbf16, #tpu.memory_space<vmem>>, vector<1x1x8x32xbf16>
    %120 = vector.shape_cast %119 : vector<1x1x8x32xbf16> to vector<8x32xbf16>
    %cst_54 = arith.constant dense<0.000000e+00> : vector<32x32xf32>
    %121 = tpu.matmul %118, %120, %cst_54 {dimension_numbers = #tpu.dot_dimension_numbers<[1], [0], [0], [1], [0, 0, 1, 1], [], []>} : vector<32x8xbf16>, vector<8x32xbf16>, vector<32x32xf32> -> vector<32x32xf32>
    %122 = arith.addf %99, %121 : vector<32x32xf32>
    %c0_55 = arith.constant 0 : index
    %c0_56 = arith.constant 0 : index
    %c0_57 = arith.constant 0 : index
    %123 = vector.load %arg9[%c0_55, %c0_56, %c0_57] : memref<1x1x32xf32, #tpu.memory_space<vmem>>, vector<1x1x32xf32>
    %124 = vector.shape_cast %123 : vector<1x1x32xf32> to vector<1x32xf32>
    %125 = vector.broadcast %124 : vector<1x32xf32> to vector<32x32xf32>
    %126 = arith.addf %122, %125 : vector<32x32xf32>
    %127 = arith.addf %3, %126 : vector<32x32xf32>
    %c0_58 = arith.constant 0 : index
    %c0_59 = arith.constant 0 : index
    %c0_60 = arith.constant 0 : index
    %128 = vector.load %arg10[%c0_58, %c0_59, %c0_60] : memref<1x1x32xf32, #tpu.memory_space<vmem>>, vector<1x1x32xf32>
    %129 = vector.shape_cast %128 : vector<1x1x32xf32> to vector<1x32xf32>
    %c0_61 = arith.constant 0 : index
    %c0_62 = arith.constant 0 : index
    %c0_63 = arith.constant 0 : index
    %130 = vector.load %arg11[%c0_61, %c0_62, %c0_63] : memref<1x1x32xf32, #tpu.memory_space<vmem>>, vector<1x1x32xf32>
    %131 = vector.shape_cast %130 : vector<1x1x32xf32> to vector<1x32xf32>
    %cst_64 = arith.constant dense<0.000000e+00> : vector<32xf32>
    %132 = vector.multi_reduction <add>, %127, %cst_64 [1] : vector<32x32xf32> to vector<32xf32>
    %133 = vector.shape_cast %132 : vector<32xf32> to vector<32x1xf32>
    %cst_65 = arith.constant 3.200000e+01 : f32
    %134 = vector.broadcast %cst_65 : f32 to vector<32x1xf32>
    %135 = arith.divf %133, %134 : vector<32x1xf32>
    %136 = vector.broadcast %135 : vector<32x1xf32> to vector<32x32xf32>
    %137 = arith.subf %127, %136 : vector<32x32xf32>
    %138 = arith.mulf %137, %137 : vector<32x32xf32>
    %cst_66 = arith.constant dense<0.000000e+00> : vector<32xf32>
    %139 = vector.multi_reduction <add>, %138, %cst_66 [1] : vector<32x32xf32> to vector<32xf32>
    %140 = vector.shape_cast %139 : vector<32xf32> to vector<32x1xf32>
    %cst_67 = arith.constant 3.200000e+01 : f32
    %141 = vector.broadcast %cst_67 : f32 to vector<32x1xf32>
    %142 = arith.divf %140, %141 : vector<32x1xf32>
    %143 = vector.broadcast %135 : vector<32x1xf32> to vector<32x32xf32>
    %144 = arith.subf %127, %143 : vector<32x32xf32>
    %cst_68 = arith.constant 9.99999974E-6 : f32
    %145 = vector.broadcast %cst_68 : f32 to vector<32x1xf32>
    %146 = arith.addf %142, %145 : vector<32x1xf32>
    %147 = math.rsqrt %146 : vector<32x1xf32>
    %148 = vector.broadcast %147 : vector<32x1xf32> to vector<32x32xf32>
    %149 = arith.mulf %144, %148 : vector<32x32xf32>
    %150 = vector.broadcast %129 : vector<1x32xf32> to vector<32x32xf32>
    %151 = arith.mulf %149, %150 : vector<32x32xf32>
    %152 = vector.broadcast %131 : vector<1x32xf32> to vector<32x32xf32>
    %153 = arith.addf %151, %152 : vector<32x32xf32>
    %154 = arith.truncf %153 : vector<32x32xf32> to vector<32x32xbf16>
    %c0_69 = arith.constant 0 : index
    %c0_70 = arith.constant 0 : index
    %c0_71 = arith.constant 0 : index
    %155 = vector.load %arg12[%c0_69, %c0_70, %c0_71] : memref<1x32x64xbf16, #tpu.memory_space<vmem>>, vector<1x32x64xbf16>
    %156 = vector.shape_cast %155 : vector<1x32x64xbf16> to vector<32x64xbf16>
    %cst_72 = arith.constant dense<0.000000e+00> : vector<32x64xf32>
    %157 = tpu.matmul %154, %156, %cst_72 {dimension_numbers = #tpu.dot_dimension_numbers<[1], [0], [0], [1], [0, 0, 1, 1], [], []>} : vector<32x32xbf16>, vector<32x64xbf16>, vector<32x64xf32> -> vector<32x64xf32>
    %c0_73 = arith.constant 0 : index
    %c0_74 = arith.constant 0 : index
    %c0_75 = arith.constant 0 : index
    %158 = vector.load %arg13[%c0_73, %c0_74, %c0_75] : memref<1x1x64xf32, #tpu.memory_space<vmem>>, vector<1x1x64xf32>
    %159 = vector.shape_cast %158 : vector<1x1x64xf32> to vector<1x64xf32>
    %160 = vector.broadcast %159 : vector<1x64xf32> to vector<32x64xf32>
    %161 = arith.addf %157, %160 : vector<32x64xf32>
    %cst_76 = arith.constant 0.000000e+00 : f32
    %162 = vector.broadcast %cst_76 : f32 to vector<32x64xf32>
    %163 = arith.maximumf %161, %162 : vector<32x64xf32>
    %164 = arith.truncf %163 : vector<32x64xf32> to vector<32x64xbf16>
    %c0_77 = arith.constant 0 : index
    %c0_78 = arith.constant 0 : index
    %c0_79 = arith.constant 0 : index
    %165 = vector.load %arg14[%c0_77, %c0_78, %c0_79] : memref<1x64x32xbf16, #tpu.memory_space<vmem>>, vector<1x64x32xbf16>
    %166 = vector.shape_cast %165 : vector<1x64x32xbf16> to vector<64x32xbf16>
    %cst_80 = arith.constant dense<0.000000e+00> : vector<32x32xf32>
    %167 = tpu.matmul %164, %166, %cst_80 {dimension_numbers = #tpu.dot_dimension_numbers<[1], [0], [0], [1], [0, 0, 1, 1], [], []>} : vector<32x64xbf16>, vector<64x32xbf16>, vector<32x32xf32> -> vector<32x32xf32>
    %c0_81 = arith.constant 0 : index
    %c0_82 = arith.constant 0 : index
    %c0_83 = arith.constant 0 : index
    %168 = vector.load %arg15[%c0_81, %c0_82, %c0_83] : memref<1x1x32xf32, #tpu.memory_space<vmem>>, vector<1x1x32xf32>
    %169 = vector.shape_cast %168 : vector<1x1x32xf32> to vector<1x32xf32>
    %170 = vector.broadcast %169 : vector<1x32xf32> to vector<32x32xf32>
    %171 = arith.addf %167, %170 : vector<32x32xf32>
    %172 = arith.addf %153, %171 : vector<32x32xf32>
    %c0_84 = arith.constant 0 : index
    %c0_85 = arith.constant 0 : index
    %c0_86 = arith.constant 0 : index
    %173 = vector.load %arg16[%c0_84, %c0_85, %c0_86] : memref<1x1x32xf32, #tpu.memory_space<vmem>>, vector<1x1x32xf32>
    %174 = vector.shape_cast %173 : vector<1x1x32xf32> to vector<1x32xf32>
    %c0_87 = arith.constant 0 : index
    %c0_88 = arith.constant 0 : index
    %c0_89 = arith.constant 0 : index
    %175 = vector.load %arg17[%c0_87, %c0_88, %c0_89] : memref<1x1x32xf32, #tpu.memory_space<vmem>>, vector<1x1x32xf32>
    %176 = vector.shape_cast %175 : vector<1x1x32xf32> to vector<1x32xf32>
    %cst_90 = arith.constant dense<0.000000e+00> : vector<32xf32>
    %177 = vector.multi_reduction <add>, %172, %cst_90 [1] : vector<32x32xf32> to vector<32xf32>
    %178 = vector.shape_cast %177 : vector<32xf32> to vector<32x1xf32>
    %cst_91 = arith.constant 3.200000e+01 : f32
    %179 = vector.broadcast %cst_91 : f32 to vector<32x1xf32>
    %180 = arith.divf %178, %179 : vector<32x1xf32>
    %181 = vector.broadcast %180 : vector<32x1xf32> to vector<32x32xf32>
    %182 = arith.subf %172, %181 : vector<32x32xf32>
    %183 = arith.mulf %182, %182 : vector<32x32xf32>
    %cst_92 = arith.constant dense<0.000000e+00> : vector<32xf32>
    %184 = vector.multi_reduction <add>, %183, %cst_92 [1] : vector<32x32xf32> to vector<32xf32>
    %185 = vector.shape_cast %184 : vector<32xf32> to vector<32x1xf32>
    %cst_93 = arith.constant 3.200000e+01 : f32
    %186 = vector.broadcast %cst_93 : f32 to vector<32x1xf32>
    %187 = arith.divf %185, %186 : vector<32x1xf32>
    %188 = vector.broadcast %180 : vector<32x1xf32> to vector<32x32xf32>
    %189 = arith.subf %172, %188 : vector<32x32xf32>
    %cst_94 = arith.constant 9.99999974E-6 : f32
    %190 = vector.broadcast %cst_94 : f32 to vector<32x1xf32>
    %191 = arith.addf %187, %190 : vector<32x1xf32>
    %192 = math.rsqrt %191 : vector<32x1xf32>
    %193 = vector.broadcast %192 : vector<32x1xf32> to vector<32x32xf32>
    %194 = arith.mulf %189, %193 : vector<32x32xf32>
    %195 = vector.broadcast %174 : vector<1x32xf32> to vector<32x32xf32>
    %196 = arith.mulf %194, %195 : vector<32x32xf32>
    %197 = vector.broadcast %176 : vector<1x32xf32> to vector<32x32xf32>
    %198 = arith.addf %196, %197 : vector<32x32xf32>
    %c0_95 = arith.constant 0 : index
    %c0_96 = arith.constant 0 : index
    %199 = vector.load %arg21[%c0_95, %c0_96] : memref<32x32xf32, #tpu.memory_space<vmem>>, vector<32x32xf32>
    tpu.vector_store %arg21[%c0_95, %c0_96], %198 {strides = array<i32>} : memref<32x32xf32, #tpu.memory_space<vmem>>, vector<32x32xf32>,
    %c1_i32 = arith.constant 1 : i32
    %200 = arith.cmpi eq, %arg1, %c1_i32 : i32
    %201 = arith.extui %200 : i1 to i32
    %c0_i32_97 = arith.constant 0 : i32
    %202 = arith.cmpi ne, %201, %c0_i32_97 : i32
    scf.if %202 {
      %c0_98 = arith.constant 0 : index
      %c0_99 = arith.constant 0 : index
      %203 = vector.load %arg18[%c0_98, %c0_99] : memref<1x32xf32, #tpu.memory_space<vmem>>, vector<1x32xf32>
      %c0_100 = arith.constant 0 : index
      %c0_101 = arith.constant 0 : index
      %204 = vector.load %arg19[%c0_100, %c0_101] : memref<1x32xf32, #tpu.memory_space<vmem>>, vector<1x32xf32>
      %cst_102 = arith.constant dense<0.000000e+00> : vector<32xf32>
      %205 = vector.multi_reduction <add>, %198, %cst_102 [1] : vector<32x32xf32> to vector<32xf32>
      %206 = vector.shape_cast %205 : vector<32xf32> to vector<32x1xf32>
      %cst_103 = arith.constant 3.200000e+01 : f32
      %207 = vector.broadcast %cst_103 : f32 to vector<32x1xf32>
      %208 = arith.divf %206, %207 : vector<32x1xf32>
      %209 = vector.broadcast %208 : vector<32x1xf32> to vector<32x32xf32>
      %210 = arith.subf %198, %209 : vector<32x32xf32>
      %211 = arith.mulf %210, %210 : vector<32x32xf32>
      %cst_104 = arith.constant dense<0.000000e+00> : vector<32xf32>
      %212 = vector.multi_reduction <add>, %211, %cst_104 [1] : vector<32x32xf32> to vector<32xf32>
      %213 = vector.shape_cast %212 : vector<32xf32> to vector<32x1xf32>
      %cst_105 = arith.constant 3.200000e+01 : f32
      %214 = vector.broadcast %cst_105 : f32 to vector<32x1xf32>
      %215 = arith.divf %213, %214 : vector<32x1xf32>
      %216 = vector.broadcast %208 : vector<32x1xf32> to vector<32x32xf32>
      %217 = arith.subf %198, %216 : vector<32x32xf32>
      %cst_106 = arith.constant 9.99999974E-6 : f32
      %218 = vector.broadcast %cst_106 : f32 to vector<32x1xf32>
      %219 = arith.addf %215, %218 : vector<32x1xf32>
      %220 = math.rsqrt %219 : vector<32x1xf32>
      %221 = vector.broadcast %220 : vector<32x1xf32> to vector<32x32xf32>
      %222 = arith.mulf %217, %221 : vector<32x32xf32>
      %223 = vector.broadcast %203 : vector<1x32xf32> to vector<32x32xf32>
      %224 = arith.mulf %222, %223 : vector<32x32xf32>
      %225 = vector.broadcast %204 : vector<1x32xf32> to vector<32x32xf32>
      %226 = arith.addf %224, %225 : vector<32x32xf32>
      %c0_107 = arith.constant 0 : index
      %c0_108 = arith.constant 0 : index
      %227 = vector.load %arg20[%c0_107, %c0_108] : memref<32x32xf32, #tpu.memory_space<vmem>>, vector<32x32xf32>
      tpu.vector_store %arg20[%c0_107, %c0_108], %226 {strides = array<i32>} : memref<32x32xf32, #tpu.memory_space<vmem>>, vector<32x32xf32>,
    } else {
    }
    return
  }
  func.func @transform_0(%arg0: i32, %arg1: i32) -> (i32, i32) {
    %c0_i32 = arith.constant 0 : i32
    %c0_i32_0 = arith.constant 0 : i32
    return %arg0, %c0_i32 : i32, i32
  }
  func.func @transform_1(%arg0: i32, %arg1: i32) -> (i32, i32) {
    %c0_i32 = arith.constant 0 : i32
    %c0_i32_0 = arith.constant 0 : i32
    return %arg0, %c0_i32 : i32, i32
  }
  func.func @transform_2(%arg0: i32, %arg1: i32) -> (i32, i32, i32) {
    %c0_i32 = arith.constant 0 : i32
    %c0_i32_0 = arith.constant 0 : i32
    %c0_i32_1 = arith.constant 0 : i32
    return %arg1, %c0_i32, %c0_i32_0 : i32, i32, i32
  }
  func.func @transform_3(%arg0: i32, %arg1: i32) -> (i32, i32, i32) {
    %c0_i32 = arith.constant 0 : i32
    %c0_i32_0 = arith.constant 0 : i32
    %c0_i32_1 = arith.constant 0 : i32
    return %arg1, %c0_i32, %c0_i32_0 : i32, i32, i32
  }
  func.func @transform_4(%arg0: i32, %arg1: i32) -> (i32, i32, i32) {
    %c0_i32 = arith.constant 0 : i32
    %c0_i32_0 = arith.constant 0 : i32
    %c0_i32_1 = arith.constant 0 : i32
    return %arg1, %c0_i32, %c0_i32_0 : i32, i32, i32
  }
  func.func @transform_5(%arg0: i32, %arg1: i32) -> (i32, i32, i32) {
    %c0_i32 = arith.constant 0 : i32
    %c0_i32_0 = arith.constant 0 : i32
    %c0_i32_1 = arith.constant 0 : i32
    return %arg1, %c0_i32, %c0_i32_0 : i32, i32, i32
  }
  func.func @transform_6(%arg0: i32, %arg1: i32) -> (i32, i32, i32, i32) {
    %c0_i32 = arith.constant 0 : i32
    %c0_i32_0 = arith.constant 0 : i32
    %c0_i32_1 = arith.constant 0 : i32
    %c0_i32_2 = arith.constant 0 : i32
    return %arg1, %c0_i32, %c0_i32_0, %c0_i32_1 : i32, i32, i32, i32
  }
  func.func @transform_7(%arg0: i32, %arg1: i32) -> (i32, i32, i32) {
    %c0_i32 = arith.constant 0 : i32
    %c0_i32_0 = arith.constant 0 : i32
    %c0_i32_1 = arith.constant 0 : i32
    return %arg1, %c0_i32, %c0_i32_0 : i32, i32, i32
  }
  func.func @transform_8(%arg0: i32, %arg1: i32) -> (i32, i32, i32) {
    %c0_i32 = arith.constant 0 : i32
    %c0_i32_0 = arith.constant 0 : i32
    %c0_i32_1 = arith.constant 0 : i32
    return %arg1, %c0_i32, %c0_i32_0 : i32, i32, i32
  }
  func.func @transform_9(%arg0: i32, %arg1: i32) -> (i32, i32, i32) {
    %c0_i32 = arith.constant 0 : i32
    %c0_i32_0 = arith.constant 0 : i32
    %c0_i32_1 = arith.constant 0 : i32
    return %arg1, %c0_i32, %c0_i32_0 : i32, i32, i32
  }
  func.func @transform_10(%arg0: i32, %arg1: i32) -> (i32, i32, i32) {
    %c0_i32 = arith.constant 0 : i32
    %c0_i32_0 = arith.constant 0 : i32
    %c0_i32_1 = arith.constant 0 : i32
    return %arg1, %c0_i32, %c0_i32_0 : i32, i32, i32
  }
  func.func @transform_11(%arg0: i32, %arg1: i32) -> (i32, i32, i32) {
    %c0_i32 = arith.constant 0 : i32
    %c0_i32_0 = arith.constant 0 : i32
    %c0_i32_1 = arith.constant 0 : i32
    return %arg1, %c0_i32, %c0_i32_0 : i32, i32, i32
  }
  func.func @transform_12(%arg0: i32, %arg1: i32) -> (i32, i32, i32) {
    %c0_i32 = arith.constant 0 : i32
    %c0_i32_0 = arith.constant 0 : i32
    %c0_i32_1 = arith.constant 0 : i32
    return %arg1, %c0_i32, %c0_i32_0 : i32, i32, i32
  }
  func.func @transform_13(%arg0: i32, %arg1: i32) -> (i32, i32, i32) {
    %c0_i32 = arith.constant 0 : i32
    %c0_i32_0 = arith.constant 0 : i32
    %c0_i32_1 = arith.constant 0 : i32
    return %arg1, %c0_i32, %c0_i32_0 : i32, i32, i32
  }
  func.func @transform_14(%arg0: i32, %arg1: i32) -> (i32, i32, i32) {
    %c0_i32 = arith.constant 0 : i32
    %c0_i32_0 = arith.constant 0 : i32
    %c0_i32_1 = arith.constant 0 : i32
    return %arg1, %c0_i32, %c0_i32_0 : i32, i32, i32
  }
  func.func @transform_15(%arg0: i32, %arg1: i32) -> (i32, i32, i32) {
    %c0_i32 = arith.constant 0 : i32
    %c0_i32_0 = arith.constant 0 : i32
    %c0_i32_1 = arith.constant 0 : i32
    return %arg1, %c0_i32, %c0_i32_0 : i32, i32, i32
  }
  func.func @transform_16(%arg0: i32, %arg1: i32) -> (i32, i32) {
    %c0_i32 = arith.constant 0 : i32
    %c0_i32_0 = arith.constant 0 : i32
    %c0_i32_1 = arith.constant 0 : i32
    return %c0_i32, %c0_i32_0 : i32, i32
  }
  func.func @transform_17(%arg0: i32, %arg1: i32) -> (i32, i32) {
    %c0_i32 = arith.constant 0 : i32
    %c0_i32_0 = arith.constant 0 : i32
    %c0_i32_1 = arith.constant 0 : i32
    return %c0_i32, %c0_i32_0 : i32, i32
  }
  func.func @transform_18(%arg0: i32, %arg1: i32) -> (i32, i32) {
    %c0_i32 = arith.constant 0 : i32
    %c0_i32_0 = arith.constant 0 : i32
    return %arg0, %c0_i32 : i32, i32
  }
}

</mosaic_0001>

<llo_original>
// kernel: transformer_encoder_forward.1
$region0: #{transformer_encoder_forward.1}
  #allocation0 [shape = 'u32[]', space=smem, size = 0x4, offset = 0x4, fixed_abs, tag = 'smem constant byte address 0x4 - core index']
  #allocation1 [shape = 'u32[144,128]{1,0:T(1,128)}', space=vmem, size = 0x12000, scoped, tag = 'internal scratch']
  #allocation2 [shape = 'f32[32,32]{1,0:T(8,128)}', space=vmem, size = 0x4000, scoped, tag = 'scratch operand']
  %s0 = inlined_call_operand.vmem [shape: f32[32,32], index: 0, kind: input, shape index: {}]
  %s1 = inlined_call_operand.vmem [shape: f32[32,32], index: 1, kind: input, shape index: {}]
  %s2 = inlined_call_operand.vmem [shape: bf16[2,32,64], index: 2, kind: input, shape index: {}]
  %s3 = inlined_call_operand.vmem [shape: f32[2,1,64], index: 3, kind: input, shape index: {}]
  %s4 = inlined_call_operand.vmem [shape: bf16[2,32,32], index: 4, kind: input, shape index: {}]
  %s5 = inlined_call_operand.vmem [shape: f32[2,1,32], index: 5, kind: input, shape index: {}]
  %s6 = inlined_call_operand.vmem [shape: bf16[2,4,8,32], index: 6, kind: input, shape index: {}]
  %s7 = inlined_call_operand.vmem [shape: f32[2,1,32], index: 7, kind: input, shape index: {}]
  %s8 = inlined_call_operand.vmem [shape: f32[2,1,32], index: 8, kind: input, shape index: {}]
  %s9 = inlined_call_operand.vmem [shape: f32[2,1,32], index: 9, kind: input, shape index: {}]
  %s10 = inlined_call_operand.vmem [shape: bf16[2,32,64], index: 10, kind: input, shape index: {}]
  %s11 = inlined_call_operand.vmem [shape: f32[2,1,64], index: 11, kind: input, shape index: {}]
  %s12 = inlined_call_operand.vmem [shape: bf16[2,64,32], index: 12, kind: input, shape index: {}]
  %s13 = inlined_call_operand.vmem [shape: f32[2,1,32], index: 13, kind: input, shape index: {}]
  %s14 = inlined_call_operand.vmem [shape: f32[2,1,32], index: 14, kind: input, shape index: {}]
  %s15 = inlined_call_operand.vmem [shape: f32[2,1,32], index: 15, kind: input, shape index: {}]
  %s16 = inlined_call_operand.vmem [shape: f32[1,32], index: 16, kind: input, shape index: {}]
  %s17 = inlined_call_operand.vmem [shape: f32[1,32], index: 17, kind: input, shape index: {}]
  %s18 = inlined_call_operand.vmem [shape: f32[32,32], index: 18, kind: output, shape index: {}]
  %s19 = sld [smem:[#allocation0]]
  $region113: #{transformer_encoder_forward.1} parent=0
    _
  %s21 = ssub.s32 1, %s19
  %s22 = scalar_select 0, %s21, %s19
  loop: start=0, step=1, limit=4
  $region2: #{transformer_encoder_forward.1} parent=0 // loop_pre_header
    _
  $region3: #{transformer_encoder_forward.1} parent=0 // loop_header
    %s24 = sphi 0, %s28
    %p25 = scmp.ge.s32.totalorder %s24, 4
    %s31 = sphi 0, %s43
    %s32 = sphi 0, %s39
    %s33 = sphi 0, %s31
    %s34 = sphi 0, %s32
    %s35 = sphi 0, %s33
    %s36 = sphi 0, %s34
    %s46 = sphi 0, %s48
    %s49 = sphi 0, %s46
    %s50 = sphi 0, %s49
    %s66 = sphi 0, %s50
    %s72 = sphi 0, %s74
    %s75 = sphi 0, %s72
    %s76 = sphi 0, %s75
    %s92 = sphi 0, %s76
    %s98 = sphi 0, %s100
    %s101 = sphi 0, %s98
    %s102 = sphi 0, %s101
    %s118 = sphi 0, %s102
    %s124 = sphi 0, %s126
    %s127 = sphi 0, %s124
    %s128 = sphi 0, %s127
    %s144 = sphi 0, %s128
    %s150 = sphi 0, %s152
    %s153 = sphi 0, %s150
    %s154 = sphi 0, %s153
    %s170 = sphi 0, %s154
    %s176 = sphi 0, %s178
    %s179 = sphi 0, %s176
    %s180 = sphi 0, %s179
    %s196 = sphi 0, %s180
    %s202 = sphi 0, %s204
    %s205 = sphi 0, %s202
    %s206 = sphi 0, %s205
    %s222 = sphi 0, %s206
    %s228 = sphi 0, %s230
    %s231 = sphi 0, %s228
    %s232 = sphi 0, %s231
    %s248 = sphi 0, %s232
    %s254 = sphi 0, %s256
    %s257 = sphi 0, %s254
    %s258 = sphi 0, %s257
    %s274 = sphi 0, %s258
    %s280 = sphi 0, %s282
    %s283 = sphi 0, %s280
    %s284 = sphi 0, %s283
    %s300 = sphi 0, %s284
    %s306 = sphi 0, %s308
    %s309 = sphi 0, %s306
    %s310 = sphi 0, %s309
    %s326 = sphi 0, %s310
    %s332 = sphi 0, %s334
    %s335 = sphi 0, %s332
    %s336 = sphi 0, %s335
    %s352 = sphi 0, %s336
    %s358 = sphi 0, %s360
    %s361 = sphi 0, %s358
    %s362 = sphi 0, %s361
    %s378 = sphi 0, %s362
    %s384 = sphi 0, %s386
    %s387 = sphi 0, %s384
    %s388 = sphi 0, %s387
    %s404 = sphi 0, %s388
    %s410 = sphi 0, %s412
    %s413 = sphi 0, %s410
    %s414 = sphi 0, %s413
    %s430 = sphi 0, %s414
    %s436 = sphi 0, %s438
    %s439 = sphi 0, %s436
    %s440 = sphi 0, %s439
    %s456 = sphi 0, %s440
    %s460 = sphi 0, %s460
    %s462 = sphi 0, %s460
    %s463 = sphi 0, %s462
    %s477 = sphi 0, %s463
    %s481 = sphi 0, %s481
    %s483 = sphi 0, %s481
    %s484 = sphi 0, %s483
    %s498 = sphi 0, %s484
    %s504 = sphi 0, %s506
    %s507 = sphi 0, %s504
    %s508 = sphi 0, %s507
    %s524 = sphi 0, %s508
  $region4: #{transformer_encoder_forward.1} parent=0 // loop_header_branch
    %27 = sbr.rel (%p25) target = $region8
  $region5: #{transformer_encoder_forward.1} parent=0 // loop_body
    %s29 = ssub.s32 %s24, 1
    %s30 = ssub.s32 %s24, 2
    %s37 = sadd.s32 1, %s32
    %p38 = scmp.ge.s32.totalorder %s37, 2
    %s39 = scalar_select %p38, 0, %s37
    %s40 = sadd.s32 1, %s31
    %s41 = scalar_select %p38, %s40, %s31
    %p42 = scmp.ge.s32.totalorder %s41, 1
    %s43 = scalar_select %p42, 0, %s41
    %s44 = ssub.s32 %s31, %s43
    %p45 = scmp.eq.s32.totalorder %s44, 0
    %s47 = sadd.s32 %s46, 1
    %s48 = scalar_select %p45, %s46, %s47
    %p51 = pneg %p45
    %p52 = scmp.eq.s32.totalorder %s24, 1
    %p53 = por %p51, %p52
    %p54 = scmp.ne.s32.totalorder %s46, %s49
    %p55 = scmp.eq.s32.totalorder %s24, 0
    %p56 = por %p54, %p55
    %p57 = scmp.ne.s32.totalorder %s46, %s49
    %p58 = scmp.eq.s32.totalorder %s29, 1
    %p59 = por %p57, %p58
    %p60 = scmp.ne.s32.totalorder %s49, %s50
    %p61 = scmp.eq.s32.totalorder %s29, 0
    %p62 = por %p60, %p61
    %p63 = scmp.ne.s32.totalorder %s49, %s50
    %p64 = scmp.eq.s32.totalorder %s30, 1
    %p65 = por %p63, %p64
    %p67 = scmp.ne.s32.totalorder %s50, %s66
    %p68 = scmp.eq.s32.totalorder %s30, 0
    %p69 = por %p67, %p68
    %s70 = ssub.s32 %s31, %s43
    %p71 = scmp.eq.s32.totalorder %s70, 0
    %s73 = sadd.s32 %s72, 1
    %s74 = scalar_select %p71, %s72, %s73
    %p77 = pneg %p71
    %p78 = scmp.eq.s32.totalorder %s24, 1
    %p79 = por %p77, %p78
    %p80 = scmp.ne.s32.totalorder %s72, %s75
    %p81 = scmp.eq.s32.totalorder %s24, 0
    %p82 = por %p80, %p81
    %p83 = scmp.ne.s32.totalorder %s72, %s75
    %p84 = scmp.eq.s32.totalorder %s29, 1
    %p85 = por %p83, %p84
    %p86 = scmp.ne.s32.totalorder %s75, %s76
    %p87 = scmp.eq.s32.totalorder %s29, 0
    %p88 = por %p86, %p87
    %p89 = scmp.ne.s32.totalorder %s75, %s76
    %p90 = scmp.eq.s32.totalorder %s30, 1
    %p91 = por %p89, %p90
    %p93 = scmp.ne.s32.totalorder %s76, %s92
    %p94 = scmp.eq.s32.totalorder %s30, 0
    %p95 = por %p93, %p94
    %s96 = ssub.s32 %s32, %s39
    %p97 = scmp.eq.s32.totalorder %s96, 0
    %s99 = sadd.s32 %s98, 1
    %s100 = scalar_select %p97, %s98, %s99
    %p103 = pneg %p97
    %p104 = scmp.eq.s32.totalorder %s24, 1
    %p105 = por %p103, %p104
    %p106 = scmp.ne.s32.totalorder %s98, %s101
    %p107 = scmp.eq.s32.totalorder %s24, 0
    %p108 = por %p106, %p107
    %p109 = scmp.ne.s32.totalorder %s98, %s101
    %p110 = scmp.eq.s32.totalorder %s29, 1
    %p111 = por %p109, %p110
    %p112 = scmp.ne.s32.totalorder %s101, %s102
    %p113 = scmp.eq.s32.totalorder %s29, 0
    %p114 = por %p112, %p113
    %p115 = scmp.ne.s32.totalorder %s101, %s102
    %p116 = scmp.eq.s32.totalorder %s30, 1
    %p117 = por %p115, %p116
    %p119 = scmp.ne.s32.totalorder %s102, %s118
    %p120 = scmp.eq.s32.totalorder %s30, 0
    %p121 = por %p119, %p120
    %s122 = ssub.s32 %s32, %s39
    %p123 = scmp.eq.s32.totalorder %s122, 0
    %s125 = sadd.s32 %s124, 1
    %s126 = scalar_select %p123, %s124, %s125
    %p129 = pneg %p123
    %p130 = scmp.eq.s32.totalorder %s24, 1
    %p131 = por %p129, %p130
    %p132 = scmp.ne.s32.totalorder %s124, %s127
    %p133 = scmp.eq.s32.totalorder %s24, 0
    %p134 = por %p132, %p133
    %p135 = scmp.ne.s32.totalorder %s124, %s127
    %p136 = scmp.eq.s32.totalorder %s29, 1
    %p137 = por %p135, %p136
    %p138 = scmp.ne.s32.totalorder %s127, %s128
    %p139 = scmp.eq.s32.totalorder %s29, 0
    %p140 = por %p138, %p139
    %p141 = scmp.ne.s32.totalorder %s127, %s128
    %p142 = scmp.eq.s32.totalorder %s30, 1
    %p143 = por %p141, %p142
    %p145 = scmp.ne.s32.totalorder %s128, %s144
    %p146 = scmp.eq.s32.totalorder %s30, 0
    %p147 = por %p145, %p146
    %s148 = ssub.s32 %s32, %s39
    %p149 = scmp.eq.s32.totalorder %s148, 0
    %s151 = sadd.s32 %s150, 1
    %s152 = scalar_select %p149, %s150, %s151
    %p155 = pneg %p149
    %p156 = scmp.eq.s32.totalorder %s24, 1
    %p157 = por %p155, %p156
    %p158 = scmp.ne.s32.totalorder %s150, %s153
    %p159 = scmp.eq.s32.totalorder %s24, 0
    %p160 = por %p158, %p159
    %p161 = scmp.ne.s32.totalorder %s150, %s153
    %p162 = scmp.eq.s32.totalorder %s29, 1
    %p163 = por %p161, %p162
    %p164 = scmp.ne.s32.totalorder %s153, %s154
    %p165 = scmp.eq.s32.totalorder %s29, 0
    %p166 = por %p164, %p165
    %p167 = scmp.ne.s32.totalorder %s153, %s154
    %p168 = scmp.eq.s32.totalorder %s30, 1
    %p169 = por %p167, %p168
    %p171 = scmp.ne.s32.totalorder %s154, %s170
    %p172 = scmp.eq.s32.totalorder %s30, 0
    %p173 = por %p171, %p172
    %s174 = ssub.s32 %s32, %s39
    %p175 = scmp.eq.s32.totalorder %s174, 0
    %s177 = sadd.s32 %s176, 1
    %s178 = scalar_select %p175, %s176, %s177
    %p181 = pneg %p175
    %p182 = scmp.eq.s32.totalorder %s24, 1
    %p183 = por %p181, %p182
    %p184 = scmp.ne.s32.totalorder %s176, %s179
    %p185 = scmp.eq.s32.totalorder %s24, 0
    %p186 = por %p184, %p185
    %p187 = scmp.ne.s32.totalorder %s176, %s179
    %p188 = scmp.eq.s32.totalorder %s29, 1
    %p189 = por %p187, %p188
    %p190 = scmp.ne.s32.totalorder %s179, %s180
    %p191 = scmp.eq.s32.totalorder %s29, 0
    %p192 = por %p190, %p191
    %p193 = scmp.ne.s32.totalorder %s179, %s180
    %p194 = scmp.eq.s32.totalorder %s30, 1
    %p195 = por %p193, %p194
    %p197 = scmp.ne.s32.totalorder %s180, %s196
    %p198 = scmp.eq.s32.totalorder %s30, 0
    %p199 = por %p197, %p198
    %s200 = ssub.s32 %s32, %s39
    %p201 = scmp.eq.s32.totalorder %s200, 0
    %s203 = sadd.s32 %s202, 1
    %s204 = scalar_select %p201, %s202, %s203
    %p207 = pneg %p201
    %p208 = scmp.eq.s32.totalorder %s24, 1
    %p209 = por %p207, %p208
    %p210 = scmp.ne.s32.totalorder %s202, %s205
    %p211 = scmp.eq.s32.totalorder %s24, 0
    %p212 = por %p210, %p211
    %p213 = scmp.ne.s32.totalorder %s202, %s205
    %p214 = scmp.eq.s32.totalorder %s29, 1
    %p215 = por %p213, %p214
    %p216 = scmp.ne.s32.totalorder %s205, %s206
    %p217 = scmp.eq.s32.totalorder %s29, 0
    %p218 = por %p216, %p217
    %p219 = scmp.ne.s32.totalorder %s205, %s206
    %p220 = scmp.eq.s32.totalorder %s30, 1
    %p221 = por %p219, %p220
    %p223 = scmp.ne.s32.totalorder %s206, %s222
    %p224 = scmp.eq.s32.totalorder %s30, 0
    %p225 = por %p223, %p224
    %s226 = ssub.s32 %s32, %s39
    %p227 = scmp.eq.s32.totalorder %s226, 0
    %s229 = sadd.s32 %s228, 1
    %s230 = scalar_select %p227, %s228, %s229
    %p233 = pneg %p227
    %p234 = scmp.eq.s32.totalorder %s24, 1
    %p235 = por %p233, %p234
    %p236 = scmp.ne.s32.totalorder %s228, %s231
    %p237 = scmp.eq.s32.totalorder %s24, 0
    %p238 = por %p236, %p237
    %p239 = scmp.ne.s32.totalorder %s228, %s231
    %p240 = scmp.eq.s32.totalorder %s29, 1
    %p241 = por %p239, %p240
    %p242 = scmp.ne.s32.totalorder %s231, %s232
    %p243 = scmp.eq.s32.totalorder %s29, 0
    %p244 = por %p242, %p243
    %p245 = scmp.ne.s32.totalorder %s231, %s232
    %p246 = scmp.eq.s32.totalorder %s30, 1
    %p247 = por %p245, %p246
    %p249 = scmp.ne.s32.totalorder %s232, %s248
    %p250 = scmp.eq.s32.totalorder %s30, 0
    %p251 = por %p249, %p250
    %s252 = ssub.s32 %s32, %s39
    %p253 = scmp.eq.s32.totalorder %s252, 0
    %s255 = sadd.s32 %s254, 1
    %s256 = scalar_select %p253, %s254, %s255
    %p259 = pneg %p253
    %p260 = scmp.eq.s32.totalorder %s24, 1
    %p261 = por %p259, %p260
    %p262 = scmp.ne.s32.totalorder %s254, %s257
    %p263 = scmp.eq.s32.totalorder %s24, 0
    %p264 = por %p262, %p263
    %p265 = scmp.ne.s32.totalorder %s254, %s257
    %p266 = scmp.eq.s32.totalorder %s29, 1
    %p267 = por %p265, %p266
    %p268 = scmp.ne.s32.totalorder %s257, %s258
    %p269 = scmp.eq.s32.totalorder %s29, 0
    %p270 = por %p268, %p269
    %p271 = scmp.ne.s32.totalorder %s257, %s258
    %p272 = scmp.eq.s32.totalorder %s30, 1
    %p273 = por %p271, %p272
    %p275 = scmp.ne.s32.totalorder %s258, %s274
    %p276 = scmp.eq.s32.totalorder %s30, 0
    %p277 = por %p275, %p276
    %s278 = ssub.s32 %s32, %s39
    %p279 = scmp.eq.s32.totalorder %s278, 0
    %s281 = sadd.s32 %s280, 1
    %s282 = scalar_select %p279, %s280, %s281
    %p285 = pneg %p279
    %p286 = scmp.eq.s32.totalorder %s24, 1
    %p287 = por %p285, %p286
    %p288 = scmp.ne.s32.totalorder %s280, %s283
    %p289 = scmp.eq.s32.totalorder %s24, 0
    %p290 = por %p288, %p289
    %p291 = scmp.ne.s32.totalorder %s280, %s283
    %p292 = scmp.eq.s32.totalorder %s29, 1
    %p293 = por %p291, %p292
    %p294 = scmp.ne.s32.totalorder %s283, %s284
    %p295 = scmp.eq.s32.totalorder %s29, 0
    %p296 = por %p294, %p295
    %p297 = scmp.ne.s32.totalorder %s283, %s284
    %p298 = scmp.eq.s32.totalorder %s30, 1
    %p299 = por %p297, %p298
    %p301 = scmp.ne.s32.totalorder %s284, %s300
    %p302 = scmp.eq.s32.totalorder %s30, 0
    %p303 = por %p301, %p302
    %s304 = ssub.s32 %s32, %s39
    %p305 = scmp.eq.s32.totalorder %s304, 0
    %s307 = sadd.s32 %s306, 1
    %s308 = scalar_select %p305, %s306, %s307
    %p311 = pneg %p305
    %p312 = scmp.eq.s32.totalorder %s24, 1
    %p313 = por %p311, %p312
    %p314 = scmp.ne.s32.totalorder %s306, %s309
    %p315 = scmp.eq.s32.totalorder %s24, 0
    %p316 = por %p314, %p315
    %p317 = scmp.ne.s32.totalorder %s306, %s309
    %p318 = scmp.eq.s32.totalorder %s29, 1
    %p319 = por %p317, %p318
    %p320 = scmp.ne.s32.totalorder %s309, %s310
    %p321 = scmp.eq.s32.totalorder %s29, 0
    %p322 = por %p320, %p321
    %p323 = scmp.ne.s32.totalorder %s309, %s310
    %p324 = scmp.eq.s32.totalorder %s30, 1
    %p325 = por %p323, %p324
    %p327 = scmp.ne.s32.totalorder %s310, %s326
    %p328 = scmp.eq.s32.totalorder %s30, 0
    %p329 = por %p327, %p328
    %s330 = ssub.s32 %s32, %s39
    %p331 = scmp.eq.s32.totalorder %s330, 0
    %s333 = sadd.s32 %s332, 1
    %s334 = scalar_select %p331, %s332, %s333
    %p337 = pneg %p331
    %p338 = scmp.eq.s32.totalorder %s24, 1
    %p339 = por %p337, %p338
    %p340 = scmp.ne.s32.totalorder %s332, %s335
    %p341 = scmp.eq.s32.totalorder %s24, 0
    %p342 = por %p340, %p341
    %p343 = scmp.ne.s32.totalorder %s332, %s335
    %p344 = scmp.eq.s32.totalorder %s29, 1
    %p345 = por %p343, %p344
    %p346 = scmp.ne.s32.totalorder %s335, %s336
    %p347 = scmp.eq.s32.totalorder %s29, 0
    %p348 = por %p346, %p347
    %p349 = scmp.ne.s32.totalorder %s335, %s336
    %p350 = scmp.eq.s32.totalorder %s30, 1
    %p351 = por %p349, %p350
    %p353 = scmp.ne.s32.totalorder %s336, %s352
    %p354 = scmp.eq.s32.totalorder %s30, 0
    %p355 = por %p353, %p354
    %s356 = ssub.s32 %s32, %s39
    %p357 = scmp.eq.s32.totalorder %s356, 0
    %s359 = sadd.s32 %s358, 1
    %s360 = scalar_select %p357, %s358, %s359
    %p363 = pneg %p357
    %p364 = scmp.eq.s32.totalorder %s24, 1
    %p365 = por %p363, %p364
    %p366 = scmp.ne.s32.totalorder %s358, %s361
    %p367 = scmp.eq.s32.totalorder %s24, 0
    %p368 = por %p366, %p367
    %p369 = scmp.ne.s32.totalorder %s358, %s361
    %p370 = scmp.eq.s32.totalorder %s29, 1
    %p371 = por %p369, %p370
    %p372 = scmp.ne.s32.totalorder %s361, %s362
    %p373 = scmp.eq.s32.totalorder %s29, 0
    %p374 = por %p372, %p373
    %p375 = scmp.ne.s32.totalorder %s361, %s362
    %p376 = scmp.eq.s32.totalorder %s30, 1
    %p377 = por %p375, %p376
    %p379 = scmp.ne.s32.totalorder %s362, %s378
    %p380 = scmp.eq.s32.totalorder %s30, 0
    %p381 = por %p379, %p380
    %s382 = ssub.s32 %s32, %s39
    %p383 = scmp.eq.s32.totalorder %s382, 0
    %s385 = sadd.s32 %s384, 1
    %s386 = scalar_select %p383, %s384, %s385
    %p389 = pneg %p383
    %p390 = scmp.eq.s32.totalorder %s24, 1
    %p391 = por %p389, %p390
    %p392 = scmp.ne.s32.totalorder %s384, %s387
    %p393 = scmp.eq.s32.totalorder %s24, 0
    %p394 = por %p392, %p393
    %p395 = scmp.ne.s32.totalorder %s384, %s387
    %p396 = scmp.eq.s32.totalorder %s29, 1
    %p397 = por %p395, %p396
    %p398 = scmp.ne.s32.totalorder %s387, %s388
    %p399 = scmp.eq.s32.totalorder %s29, 0
    %p400 = por %p398, %p399
    %p401 = scmp.ne.s32.totalorder %s387, %s388
    %p402 = scmp.eq.s32.totalorder %s30, 1
    %p403 = por %p401, %p402
    %p405 = scmp.ne.s32.totalorder %s388, %s404
    %p406 = scmp.eq.s32.totalorder %s30, 0
    %p407 = por %p405, %p406
    %s408 = ssub.s32 %s32, %s39
    %p409 = scmp.eq.s32.totalorder %s408, 0
    %s411 = sadd.s32 %s410, 1
    %s412 = scalar_select %p409, %s410, %s411
    %p415 = pneg %p409
    %p416 = scmp.eq.s32.totalorder %s24, 1
    %p417 = por %p415, %p416
    %p418 = scmp.ne.s32.totalorder %s410, %s413
    %p419 = scmp.eq.s32.totalorder %s24, 0
    %p420 = por %p418, %p419
    %p421 = scmp.ne.s32.totalorder %s410, %s413
    %p422 = scmp.eq.s32.totalorder %s29, 1
    %p423 = por %p421, %p422
    %p424 = scmp.ne.s32.totalorder %s413, %s414
    %p425 = scmp.eq.s32.totalorder %s29, 0
    %p426 = por %p424, %p425
    %p427 = scmp.ne.s32.totalorder %s413, %s414
    %p428 = scmp.eq.s32.totalorder %s30, 1
    %p429 = por %p427, %p428
    %p431 = scmp.ne.s32.totalorder %s414, %s430
    %p432 = scmp.eq.s32.totalorder %s30, 0
    %p433 = por %p431, %p432
    %s434 = ssub.s32 %s32, %s39
    %p435 = scmp.eq.s32.totalorder %s434, 0
    %s437 = sadd.s32 %s436, 1
    %s438 = scalar_select %p435, %s436, %s437
    %p441 = pneg %p435
    %p442 = scmp.eq.s32.totalorder %s24, 1
    %p443 = por %p441, %p442
    %p444 = scmp.ne.s32.totalorder %s436, %s439
    %p445 = scmp.eq.s32.totalorder %s24, 0
    %p446 = por %p444, %p445
    %p447 = scmp.ne.s32.totalorder %s436, %s439
    %p448 = scmp.eq.s32.totalorder %s29, 1
    %p449 = por %p447, %p448
    %p450 = scmp.ne.s32.totalorder %s439, %s440
    %p451 = scmp.eq.s32.totalorder %s29, 0
    %p452 = por %p450, %p451
    %p453 = scmp.ne.s32.totalorder %s439, %s440
    %p454 = scmp.eq.s32.totalorder %s30, 1
    %p455 = por %p453, %p454
    %p457 = scmp.ne.s32.totalorder %s440, %s456
    %p458 = scmp.eq.s32.totalorder %s30, 0
    %p459 = por %p457, %p458
    %s461 = sadd.s32 %s460, 1
    %p464 = scmp.eq.s32.totalorder %s24, 1
    %p465 = scmp.ne.s32.totalorder %s460, %s462
    %p466 = scmp.eq.s32.totalorder %s24, 0
    %p467 = por %p465, %p466
    %p468 = scmp.ne.s32.totalorder %s460, %s462
    %p469 = scmp.eq.s32.totalorder %s29, 1
    %p470 = por %p468, %p469
    %p471 = scmp.ne.s32.totalorder %s462, %s463
    %p472 = scmp.eq.s32.totalorder %s29, 0
    %p473 = por %p471, %p472
    %p474 = scmp.ne.s32.totalorder %s462, %s463
    %p475 = scmp.eq.s32.totalorder %s30, 1
    %p476 = por %p474, %p475
    %p478 = scmp.ne.s32.totalorder %s463, %s477
    %p479 = scmp.eq.s32.totalorder %s30, 0
    %p480 = por %p478, %p479
    %s482 = sadd.s32 %s481, 1
    %p485 = scmp.eq.s32.totalorder %s24, 1
    %p486 = scmp.ne.s32.totalorder %s481, %s483
    %p487 = scmp.eq.s32.totalorder %s24, 0
    %p488 = por %p486, %p487
    %p489 = scmp.ne.s32.totalorder %s481, %s483
    %p490 = scmp.eq.s32.totalorder %s29, 1
    %p491 = por %p489, %p490
    %p492 = scmp.ne.s32.totalorder %s483, %s484
    %p493 = scmp.eq.s32.totalorder %s29, 0
    %p494 = por %p492, %p493
    %p495 = scmp.ne.s32.totalorder %s483, %s484
    %p496 = scmp.eq.s32.totalorder %s30, 1
    %p497 = por %p495, %p496
    %p499 = scmp.ne.s32.totalorder %s484, %s498
    %p500 = scmp.eq.s32.totalorder %s30, 0
    %p501 = por %p499, %p500
    %s502 = ssub.s32 %s31, %s43
    %p503 = scmp.eq.s32.totalorder %s502, 0
    %s505 = sadd.s32 %s504, 1
    %s506 = scalar_select %p503, %s504, %s505
    %p509 = pneg %p503
    %p510 = scmp.eq.s32.totalorder %s24, 1
    %p511 = por %p509, %p510
    %p512 = scmp.ne.s32.totalorder %s504, %s507
    %p513 = scmp.eq.s32.totalorder %s24, 0
    %p514 = por %p512, %p513
    %p515 = scmp.ne.s32.totalorder %s504, %s507
    %p516 = scmp.eq.s32.totalorder %s29, 1
    %p517 = por %p515, %p516
    %p518 = scmp.ne.s32.totalorder %s507, %s508
    %p519 = scmp.eq.s32.totalorder %s29, 0
    %p520 = por %p518, %p519
    %p521 = scmp.ne.s32.totalorder %s507, %s508
    %p522 = scmp.eq.s32.totalorder %s30, 1
    %p523 = por %p521, %p522
    %p525 = scmp.ne.s32.totalorder %s508, %s524
    %p526 = scmp.eq.s32.totalorder %s30, 0
    %p527 = por %p525, %p526
    %p528 = scmp.le.s32.totalorder 1, %s24
    %p529 = scmp.lt.s32.totalorder %s24, 3
    %p530 = pnand %p528, %p529
    %p531 = pneg %p530
    // Predicated region
    $region9: #{transformer_encoder_forward.1} parent=5 // pred_check
      _
    $region10: #{transformer_encoder_forward.1} parent=5 // pred_check_branch
      %533 = sbr.rel (%p530) target = $region12
    $region11: #{transformer_encoder_forward.1} parent=5 // pred_region
      %s534 = ssub.s32 %s24, 1
      // Predicated region
      $region13: #{transformer_encoder_forward.1} parent=11 // pred_check
        %p535 = pneg %p62
      $region14: #{transformer_encoder_forward.1} parent=11 // pred_check_branch
        %537 = sbr.rel (%p535) target = $region16
      $region15: #{transformer_encoder_forward.1} parent=11 // pred_region
        %s538 = smul.u32 4, %s33
        %p539 = scmp.lt.s32.totalorder %s538, 3
        %s540 = scalar_select %p539, %s538, 3
        %s541 = smul.addr %s540, 8
        %s542 = scalar_lea.vmem %s0, %s541
        %s543 = smul.u32 4, %s33
      $region16: #{transformer_encoder_forward.1} parent=11 // pred_fallthru
        _
      // Predicated region
      $region17: #{transformer_encoder_forward.1} parent=11 // pred_check
        %p544 = pneg %p88
      $region18: #{transformer_encoder_forward.1} parent=11 // pred_check_branch
        %546 = sbr.rel (%p544) target = $region20
      $region19: #{transformer_encoder_forward.1} parent=11 // pred_region
        %s547 = smul.u32 4, %s33
        %p548 = scmp.lt.s32.totalorder %s547, 3
        %s549 = scalar_select %p548, %s547, 3
        %s550 = smul.addr %s549, 8
        %s551 = scalar_lea.vmem %s1, %s550
        %s552 = smul.u32 4, %s33
      $region20: #{transformer_encoder_forward.1} parent=11 // pred_fallthru
        _
      // Predicated region
      $region21: #{transformer_encoder_forward.1} parent=11 // pred_check
        %p553 = pneg %p473
      $region22: #{transformer_encoder_forward.1} parent=11 // pred_check_branch
        %555 = sbr.rel (%p553) target = $region24
      $region23: #{transformer_encoder_forward.1} parent=11 // pred_region
        _
      $region24: #{transformer_encoder_forward.1} parent=11 // pred_fallthru
        _
      // Predicated region
      $region25: #{transformer_encoder_forward.1} parent=11 // pred_check
        %p556 = pneg %p494
      $region26: #{transformer_encoder_forward.1} parent=11 // pred_check_branch
        %558 = sbr.rel (%p556) target = $region28
      $region27: #{transformer_encoder_forward.1} parent=11 // pred_region
        _
      $region28: #{transformer_encoder_forward.1} parent=11 // pred_fallthru
        _
    $region12: #{transformer_encoder_forward.1} parent=5 // pred_fallthru
      _
    %p559 = scmp.lt.s32.totalorder %s24, 2
    // Predicated region
    $region29: #{transformer_encoder_forward.1} parent=5 // pred_check
      %p560 = pneg %p559
    $region30: #{transformer_encoder_forward.1} parent=5 // pred_check_branch
      %562 = sbr.rel (%p560) target = $region32
    $region31: #{transformer_encoder_forward.1} parent=5 // pred_region
      // Predicated region
      $region33: #{transformer_encoder_forward.1} parent=31 // pred_check
        %p563 = pneg %p108
      $region34: #{transformer_encoder_forward.1} parent=31 // pred_check_branch
        %565 = sbr.rel (%p563) target = $region36
      $region35: #{transformer_encoder_forward.1} parent=31 // pred_region
        %p566 = scmp.lt.s32.totalorder %s32, 1
        %s567 = scalar_select %p566, %s32, 1
        %s568 = smul.addr %s567, 4
        %s569 = smul.addr %s568, 4
        %s570 = scalar_lea.vmem %s2, %s569
      $region36: #{transformer_encoder_forward.1} parent=31 // pred_fallthru
        _
      // Predicated region
      $region37: #{transformer_encoder_forward.1} parent=31 // pred_check
        %p571 = pneg %p134
      $region38: #{transformer_encoder_forward.1} parent=31 // pred_check_branch
        %573 = sbr.rel (%p571) target = $region40
      $region39: #{transformer_encoder_forward.1} parent=31 // pred_region
        %p574 = scmp.lt.s32.totalorder %s32, 1
        %s575 = scalar_select %p574, %s32, 1
        %s576 = scalar_lea.vmem %s3, %s575
      $region40: #{transformer_encoder_forward.1} parent=31 // pred_fallthru
        _
      // Predicated region
      $region41: #{transformer_encoder_forward.1} parent=31 // pred_check
        %p577 = pneg %p160
      $region42: #{transformer_encoder_forward.1} parent=31 // pred_check_branch
        %579 = sbr.rel (%p577) target = $region44
      $region43: #{transformer_encoder_forward.1} parent=31 // pred_region
        %p580 = scmp.lt.s32.totalorder %s32, 1
        %s581 = scalar_select %p580, %s32, 1
        %s582 = smul.addr %s581, 4
        %s583 = smul.addr %s582, 4
        %s584 = scalar_lea.vmem %s4, %s583
      $region44: #{transformer_encoder_forward.1} parent=31 // pred_fallthru
        _
      // Predicated region
      $region45: #{transformer_encoder_forward.1} parent=31 // pred_check
        %p585 = pneg %p186
      $region46: #{transformer_encoder_forward.1} parent=31 // pred_check_branch
        %587 = sbr.rel (%p585) target = $region48
      $region47: #{transformer_encoder_forward.1} parent=31 // pred_region
        %p588 = scmp.lt.s32.totalorder %s32, 1
        %s589 = scalar_select %p588, %s32, 1
        %s590 = scalar_lea.vmem %s5, %s589
      $region48: #{transformer_encoder_forward.1} parent=31 // pred_fallthru
        _
      // Predicated region
      $region49: #{transformer_encoder_forward.1} parent=31 // pred_check
        %p591 = pneg %p212
      $region50: #{transformer_encoder_forward.1} parent=31 // pred_check_branch
        %593 = sbr.rel (%p591) target = $region52
      $region51: #{transformer_encoder_forward.1} parent=31 // pred_region
        %p594 = scmp.lt.s32.totalorder %s32, 1
        %s595 = scalar_select %p594, %s32, 1
        %s596 = smul.addr %s595, 4
        %s597 = smul.addr %s596, 4
        %s598 = scalar_lea.vmem %s6, %s597
      $region52: #{transformer_encoder_forward.1} parent=31 // pred_fallthru
        _
      // Predicated region
      $region53: #{transformer_encoder_forward.1} parent=31 // pred_check
        %p599 = pneg %p238
      $region54: #{transformer_encoder_forward.1} parent=31 // pred_check_branch
        %601 = sbr.rel (%p599) target = $region56
      $region55: #{transformer_encoder_forward.1} parent=31 // pred_region
        %p602 = scmp.lt.s32.totalorder %s32, 1
        %s603 = scalar_select %p602, %s32, 1
        %s604 = scalar_lea.vmem %s7, %s603
      $region56: #{transformer_encoder_forward.1} parent=31 // pred_fallthru
        _
      // Predicated region
      $region57: #{transformer_encoder_forward.1} parent=31 // pred_check
        %p605 = pneg %p264
      $region58: #{transformer_encoder_forward.1} parent=31 // pred_check_branch
        %607 = sbr.rel (%p605) target = $region60
      $region59: #{transformer_encoder_forward.1} parent=31 // pred_region
        %p608 = scmp.lt.s32.totalorder %s32, 1
        %s609 = scalar_select %p608, %s32, 1
        %s610 = scalar_lea.vmem %s8, %s609
      $region60: #{transformer_encoder_forward.1} parent=31 // pred_fallthru
        _
      // Predicated region
      $region61: #{transformer_encoder_forward.1} parent=31 // pred_check
        %p611 = pneg %p290
      $region62: #{transformer_encoder_forward.1} parent=31 // pred_check_branch
        %613 = sbr.rel (%p611) target = $region64
      $region63: #{transformer_encoder_forward.1} parent=31 // pred_region
        %p614 = scmp.lt.s32.totalorder %s32, 1
        %s615 = scalar_select %p614, %s32, 1
        %s616 = scalar_lea.vmem %s9, %s615
      $region64: #{transformer_encoder_forward.1} parent=31 // pred_fallthru
        _
      // Predicated region
      $region65: #{transformer_encoder_forward.1} parent=31 // pred_check
        %p617 = pneg %p316
      $region66: #{transformer_encoder_forward.1} parent=31 // pred_check_branch
        %619 = sbr.rel (%p617) target = $region68
      $region67: #{transformer_encoder_forward.1} parent=31 // pred_region
        %p620 = scmp.lt.s32.totalorder %s32, 1
        %s621 = scalar_select %p620, %s32, 1
        %s622 = smul.addr %s621, 4
        %s623 = smul.addr %s622, 4
        %s624 = scalar_lea.vmem %s10, %s623
      $region68: #{transformer_encoder_forward.1} parent=31 // pred_fallthru
        _
      // Predicated region
      $region69: #{transformer_encoder_forward.1} parent=31 // pred_check
        %p625 = pneg %p342
      $region70: #{transformer_encoder_forward.1} parent=31 // pred_check_branch
        %627 = sbr.rel (%p625) target = $region72
      $region71: #{transformer_encoder_forward.1} parent=31 // pred_region
        %p628 = scmp.lt.s32.totalorder %s32, 1
        %s629 = scalar_select %p628, %s32, 1
        %s630 = scalar_lea.vmem %s11, %s629
      $region72: #{transformer_encoder_forward.1} parent=31 // pred_fallthru
        _
      // Predicated region
      $region73: #{transformer_encoder_forward.1} parent=31 // pred_check
        %p631 = pneg %p368
      $region74: #{transformer_encoder_forward.1} parent=31 // pred_check_branch
        %633 = sbr.rel (%p631) target = $region76
      $region75: #{transformer_encoder_forward.1} parent=31 // pred_region
        %p634 = scmp.lt.s32.totalorder %s32, 1
        %s635 = scalar_select %p634, %s32, 1
        %s636 = smul.addr %s635, 8
        %s637 = smul.addr %s636, 4
        %s638 = scalar_lea.vmem %s12, %s637
      $region76: #{transformer_encoder_forward.1} parent=31 // pred_fallthru
        _
      // Predicated region
      $region77: #{transformer_encoder_forward.1} parent=31 // pred_check
        %p639 = pneg %p394
      $region78: #{transformer_encoder_forward.1} parent=31 // pred_check_branch
        %641 = sbr.rel (%p639) target = $region80
      $region79: #{transformer_encoder_forward.1} parent=31 // pred_region
        %p642 = scmp.lt.s32.totalorder %s32, 1
        %s643 = scalar_select %p642, %s32, 1
        %s644 = scalar_lea.vmem %s13, %s643
      $region80: #{transformer_encoder_forward.1} parent=31 // pred_fallthru
        _
      // Predicated region
      $region81: #{transformer_encoder_forward.1} parent=31 // pred_check
        %p645 = pneg %p420
      $region82: #{transformer_encoder_forward.1} parent=31 // pred_check_branch
        %647 = sbr.rel (%p645) target = $region84
      $region83: #{transformer_encoder_forward.1} parent=31 // pred_region
        %p648 = scmp.lt.s32.totalorder %s32, 1
        %s649 = scalar_select %p648, %s32, 1
        %s650 = scalar_lea.vmem %s14, %s649
      $region84: #{transformer_encoder_forward.1} parent=31 // pred_fallthru
        _
      // Predicated region
      $region85: #{transformer_encoder_forward.1} parent=31 // pred_check
        %p651 = pneg %p446
      $region86: #{transformer_encoder_forward.1} parent=31 // pred_check_branch
        %653 = sbr.rel (%p651) target = $region88
      $region87: #{transformer_encoder_forward.1} parent=31 // pred_region
        %p654 = scmp.lt.s32.totalorder %s32, 1
        %s655 = scalar_select %p654, %s32, 1
        %s656 = scalar_lea.vmem %s15, %s655
      $region88: #{transformer_encoder_forward.1} parent=31 // pred_fallthru
        _
    $region32: #{transformer_encoder_forward.1} parent=5 // pred_fallthru
      _
    %p657 = scmp.le.s32.totalorder 1, %s24
    %p658 = scmp.lt.s32.totalorder %s24, 3
    %p659 = pnand %p657, %p658
    %p660 = pneg %p659
    // Predicated region
    $region89: #{transformer_encoder_forward.1} parent=5 // pred_check
      _
    $region90: #{transformer_encoder_forward.1} parent=5 // pred_check_branch
      %662 = sbr.rel (%p659) target = $region92
    $region91: #{transformer_encoder_forward.1} parent=5 // pred_region
      %s663 = ssub.s32 %s24, 1
      %s664 = smul.u32 4, %s33
      %p665 = scmp.lt.s32.totalorder %s664, 3
      %s666 = scalar_select %p665, %s664, 3
      %s667 = smul.addr %s666, 8
      %s668 = scalar_lea.vmem %s0, %s667
      %p669 = pneg %p62
      %p670 = pneg %p59
      %s671 = smul.u32 4, %s33
      %p672 = scmp.lt.s32.totalorder %s671, 3
      %s673 = scalar_select %p672, %s671, 3
      %s674 = smul.addr %s673, 8
      %s675 = scalar_lea.vmem %s1, %s674
      %p676 = pneg %p88
      %p677 = pneg %p85
      %p678 = scmp.lt.s32.totalorder %s34, 1
      %s679 = scalar_select %p678, %s34, 1
      %s680 = smul.addr %s679, 4
      %s681 = smul.addr %s680, 4
      %s682 = scalar_lea.vmem %s2, %s681
      %p683 = pneg %p114
      %p684 = pneg %p111
      %p685 = scmp.lt.s32.totalorder %s34, 1
      %s686 = scalar_select %p685, %s34, 1
      %s687 = scalar_lea.vmem %s3, %s686
      %p688 = pneg %p140
      %p689 = pneg %p137
      %p690 = scmp.lt.s32.totalorder %s34, 1
      %s691 = scalar_select %p690, %s34, 1
      %s692 = smul.addr %s691, 4
      %s693 = smul.addr %s692, 4
      %s694 = scalar_lea.vmem %s4, %s693
      %p695 = pneg %p166
      %p696 = pneg %p163
      %p697 = scmp.lt.s32.totalorder %s34, 1
      %s698 = scalar_select %p697, %s34, 1
      %s699 = scalar_lea.vmem %s5, %s698
      %p700 = pneg %p192
      %p701 = pneg %p189
      %p702 = scmp.lt.s32.totalorder %s34, 1
      %s703 = scalar_select %p702, %s34, 1
      %s704 = smul.addr %s703, 4
      %s705 = smul.addr %s704, 4
      %s706 = scalar_lea.vmem %s6, %s705
      %p707 = pneg %p218
      %p708 = pneg %p215
      %p709 = scmp.lt.s32.totalorder %s34, 1
      %s710 = scalar_select %p709, %s34, 1
      %s711 = scalar_lea.vmem %s7, %s710
      %p712 = pneg %p244
      %p713 = pneg %p241
      %p714 = scmp.lt.s32.totalorder %s34, 1
      %s715 = scalar_select %p714, %s34, 1
      %s716 = scalar_lea.vmem %s8, %s715
      %p717 = pneg %p270
      %p718 = pneg %p267
      %p719 = scmp.lt.s32.totalorder %s34, 1
      %s720 = scalar_select %p719, %s34, 1
      %s721 = scalar_lea.vmem %s9, %s720
      %p722 = pneg %p296
      %p723 = pneg %p293
      %p724 = scmp.lt.s32.totalorder %s34, 1
      %s725 = scalar_select %p724, %s34, 1
      %s726 = smul.addr %s725, 4
      %s727 = smul.addr %s726, 4
      %s728 = scalar_lea.vmem %s10, %s727
      %p729 = pneg %p322
      %p730 = pneg %p319
      %p731 = scmp.lt.s32.totalorder %s34, 1
      %s732 = scalar_select %p731, %s34, 1
      %s733 = scalar_lea.vmem %s11, %s732
      %p734 = pneg %p348
      %p735 = pneg %p345
      %p736 = scmp.lt.s32.totalorder %s34, 1
      %s737 = scalar_select %p736, %s34, 1
      %s738 = smul.addr %s737, 8
      %s739 = smul.addr %s738, 4
      %s740 = scalar_lea.vmem %s12, %s739
      %p741 = pneg %p374
      %p742 = pneg %p371
      %p743 = scmp.lt.s32.totalorder %s34, 1
      %s744 = scalar_select %p743, %s34, 1
      %s745 = scalar_lea.vmem %s13, %s744
      %p746 = pneg %p400
      %p747 = pneg %p397
      %p748 = scmp.lt.s32.totalorder %s34, 1
      %s749 = scalar_select %p748, %s34, 1
      %s750 = scalar_lea.vmem %s14, %s749
      %p751 = pneg %p426
      %p752 = pneg %p423
      %p753 = scmp.lt.s32.totalorder %s34, 1
      %s754 = scalar_select %p753, %s34, 1
      %s755 = scalar_lea.vmem %s15, %s754
      %p756 = pneg %p452
      %p757 = pneg %p449
      %p758 = pneg %p473
      %p759 = pneg %p470
      %p760 = pneg %p494
      %p761 = pneg %p491
      %p762 = pneg %p520
      %p763 = pneg %p517
      %s764 = smul.u32 4, %s33
      %p765 = scmp.lt.s32.totalorder %s764, 3
      %s766 = scalar_select %p765, %s764, 3
      %s767 = smul.addr %s766, 8
      %s768 = scalar_lea.vmem %s18, %s767
      %s769 = smul.u32 4, %s33
      %p770 = scmp.lt.s32.totalorder %s769, 3
      %s771 = scalar_select %p770, %s769, 3
      %s772 = smul.addr %s771, 8
      %s773 = scalar_lea.vmem %s0, %s772
      %s774 = smul.u32 4, %s33
      %s775 = smul.u32 4, %s33
      %p776 = scmp.lt.s32.totalorder %s775, 3
      %s777 = scalar_select %p776, %s775, 3
      %s778 = smul.addr %s777, 8
      %s779 = scalar_lea.vmem %s1, %s778
      %s780 = smul.u32 4, %s33
      %p781 = scmp.lt.s32.totalorder %s34, 1
      %s782 = scalar_select %p781, %s34, 1
      %s783 = smul.addr %s782, 4
      %s784 = smul.addr %s783, 4
      %s785 = scalar_lea.vmem %s2, %s784
      %p786 = scmp.lt.s32.totalorder %s34, 1
      %s787 = scalar_select %p786, %s34, 1
      %s788 = scalar_lea.vmem %s3, %s787
      %p789 = scmp.lt.s32.totalorder %s34, 1
      %s790 = scalar_select %p789, %s34, 1
      %s791 = smul.addr %s790, 4
      %s792 = smul.addr %s791, 4
      %s793 = scalar_lea.vmem %s4, %s792
      %p794 = scmp.lt.s32.totalorder %s34, 1
      %s795 = scalar_select %p794, %s34, 1
      %s796 = scalar_lea.vmem %s5, %s795
      %p797 = scmp.lt.s32.totalorder %s34, 1
      %s798 = scalar_select %p797, %s34, 1
      %s799 = smul.addr %s798, 4
      %s800 = smul.addr %s799, 4
      %s801 = scalar_lea.vmem %s6, %s800
      %p802 = scmp.lt.s32.totalorder %s34, 1
      %s803 = scalar_select %p802, %s34, 1
      %s804 = scalar_lea.vmem %s7, %s803
      %p805 = scmp.lt.s32.totalorder %s34, 1
      %s806 = scalar_select %p805, %s34, 1
      %s807 = scalar_lea.vmem %s8, %s806
      %p808 = scmp.lt.s32.totalorder %s34, 1
      %s809 = scalar_select %p808, %s34, 1
      %s810 = scalar_lea.vmem %s9, %s809
      %p811 = scmp.lt.s32.totalorder %s34, 1
      %s812 = scalar_select %p811, %s34, 1
      %s813 = smul.addr %s812, 4
      %s814 = smul.addr %s813, 4
      %s815 = scalar_lea.vmem %s10, %s814
      %p816 = scmp.lt.s32.totalorder %s34, 1
      %s817 = scalar_select %p816, %s34, 1
      %s818 = scalar_lea.vmem %s11, %s817
      %p819 = scmp.lt.s32.totalorder %s34, 1
      %s820 = scalar_select %p819, %s34, 1
      %s821 = smul.addr %s820, 8
      %s822 = smul.addr %s821, 4
      %s823 = scalar_lea.vmem %s12, %s822
      %p824 = scmp.lt.s32.totalorder %s34, 1
      %s825 = scalar_select %p824, %s34, 1
      %s826 = scalar_lea.vmem %s13, %s825
      %p827 = scmp.lt.s32.totalorder %s34, 1
      %s828 = scalar_select %p827, %s34, 1
      %s829 = scalar_lea.vmem %s14, %s828
      %p830 = scmp.lt.s32.totalorder %s34, 1
      %s831 = scalar_select %p830, %s34, 1
      %s832 = scalar_lea.vmem %s15, %s831
      %s833 = smul.u32 4, %s33
      %p834 = scmp.lt.s32.totalorder %s833, 3
      %s835 = scalar_select %p834, %s833, 3
      %s836 = smul.addr %s835, 8
      %s837 = scalar_lea.vmem %s18, %s836
      %s838 = smul.u32 4, %s33
      %p840 = scmp.eq.s32.totalorder %s34, 0
      // Predicated region
      $region93: #{transformer_encoder_forward.1} parent=91 // pred_check
        %p841 = pneg %p840
      $region94: #{transformer_encoder_forward.1} parent=91 // pred_check_branch
        %843 = sbr.rel (%p841) target = $region96
      $region95: #{transformer_encoder_forward.1} parent=91 // pred_region
        %v844 = vld [vmem:[%s773] sm:$0xff]
        %v845 = vld [vmem:[%s773 + $0x8] sm:$0xff]
        %v846 = vld [vmem:[%s773 + $0x10] sm:$0xff]
        %v847 = vld [vmem:[%s773 + $0x18] sm:$0xff]
        %vm848 = vcmask 261120
        %849 = vst.msk [vmem:[#allocation2] sm:$0xff] %vm848, %v844
        %850 = vst.msk [vmem:[#allocation2 + $0x8] sm:$0xff] %vm848, %v845
        %851 = vst.msk [vmem:[#allocation2 + $0x10] sm:$0xff] %vm848, %v846
        %852 = vst.msk [vmem:[#allocation2 + $0x18] sm:$0xff] %vm848, %v847
      $region96: #{transformer_encoder_forward.1} parent=91 // pred_fallthru
        _
      %v853 = vld [vmem:[#allocation2] sm:$0xff]
      %v854 = vld [vmem:[#allocation2 + $0x8] sm:$0xff]
      %v855 = vld [vmem:[#allocation2 + $0x10] sm:$0xff]
      %v856 = vld [vmem:[#allocation2 + $0x18] sm:$0xff]
      %v857 = vld [vmem:[%s779] sm:$0xff]
      %v858 = vld [vmem:[%s779 + $0x8] sm:$0xff]
      %v859 = vld [vmem:[%s779 + $0x10] sm:$0xff]
      %v860 = vld [vmem:[%s779 + $0x18] sm:$0xff]
      %v861 = vadd.f32 %v853, %v857
      %v862 = vadd.f32 %v854, %v858
      %v863 = vadd.f32 %v855, %v859
      %v864 = vadd.f32 %v856, %v860
      %v865 = vpack.c.bf16 %v862, %v861
      %v866 = vpack.c.bf16 %v864, %v863
      %v867 = vld [vmem:[%s785] sm:$0xf]
      %v868 = vld [vmem:[%s785 + $0x4] sm:$0xf]
      %v869 = vld [vmem:[%s785 + $0x8] sm:$0xf]
      %v870 = vld [vmem:[%s785 + $0xc] sm:$0xf]
      %v871 = vld [vmem:[%s788] sm:$0x1]
      %v873 = vlaneseq
      %v874 = vshrl.u32 %v873, 7
      %v875 = vsub.s32 0, %v874
      %v876 = vrot.slane %v871, %v875
      %v882 = vunpack.c.l.b16 %v867
      %v883 = vunpack.c.l.b16 %v868
      %v884 = vunpack.c.l.b16 %v869
      %v885 = vunpack.c.l.b16 %v870
      %v886 = vpack.c.b16 %v883, %v882
      %v887 = vpack.c.b16 %v885, %v884
      %vm890 = vcmask 261120
      %v892 = vsel %vm890, %v865, 0
      %v895 = vsel %vm890, %v866, 0
      %897 = vmatprep.subr.bf16.mxu0 0
      %898 = vmatpush1.bf16.msra.mxu0 0
      %899 = vmatprep.subr.bf16.mxu0 0
      %900 = vmatpush1.bf16.msra.mxu0 0
      %901 = vmatprep.subr.bf16.mxu0 0
      %902 = vmatpush1.bf16.msra.mxu0 0
      %903 = vmatprep.subr.bf16.mxu0 0
      %904 = vmatpush1.bf16.msra.mxu0 0
      %905 = vmatprep.subr.bf16.mxu0 0
      %906 = vmatpush1.bf16.msra.mxu0 0
      %907 = vmatprep.subr.bf16.mxu0 0
      %908 = vmatpush1.bf16.msra.mxu0 0
      %909 = vmatprep.subr.bf16.mxu0 0
      %910 = vmatpush1.bf16.msra.mxu0 %v887
      %911 = vmatprep.subr.bf16.mxu0 0
      %912 = vmatpush1.bf16.msra.mxu0 %v886
      %913 = vmatprep.subr.bf16.mxu0 0
      %914 = vmatpush2.bf16.msra.mxu0 0
      %915 = vmatprep.subr.bf16.mxu0 0
      %916 = vmatpush2.bf16.msra.mxu0 0
      %917 = vmatprep.subr.bf16.mxu0 0
      %918 = vmatpush2.bf16.msra.mxu0 0
      %919 = vmatprep.subr.bf16.mxu0 0
      %920 = vmatpush2.bf16.msra.mxu0 0
      %921 = vmatprep.subr.bf16.mxu0 0
      %922 = vmatpush2.bf16.msra.mxu0 0
      %923 = vmatprep.subr.bf16.mxu0 0
      %924 = vmatpush2.bf16.msra.mxu0 0
      %925 = vmatprep.subr.bf16.mxu0 0
      %926 = vmatpush2.bf16.msra.mxu0 0
      %927 = vmatprep.subr.bf16.mxu0 0
      %928 = vmatpush2.bf16.msra.mxu0 0
      %929 = vmatprep.mubr.bf16.mxu0 0
      %930 = vmatmul.mubr.bf16.gmra.mxu0 %v892
      %v931 = vpop.f32.mrf.mxu0
      %v932 = vadd.f32 %v876, %v931
      %v933 = vpop.f32.mrf.mxu0
      %v934 = vpop.f32.mrf.mxu0
      %v935 = vadd.f32 %v876, %v934
      %v936 = vpop.f32.mrf.mxu0
      %937 = vmatprep.mubr.bf16.mxu0 0
      %938 = vmatmul.mubr.bf16.gmra.mxu0 %v895
      %v939 = vpop.f32.mrf.mxu0
      %v940 = vadd.f32 %v876, %v939
      %v941 = vpop.f32.mrf.mxu0
      %v942 = vpop.f32.mrf.mxu0
      %v943 = vadd.f32 %v876, %v942
      %v944 = vpop.f32.mrf.mxu0
      %945 = vdwg.mxu0
      %v946 = vpack.c.bf16 %v854, %v853
      %v947 = vpack.c.bf16 %v856, %v855
      %v948 = vld [vmem:[%s793] sm:$0xf]
      %v949 = vld [vmem:[%s793 + $0x4] sm:$0xf]
      %v950 = vld [vmem:[%s793 + $0x8] sm:$0xf]
      %v951 = vld [vmem:[%s793 + $0xc] sm:$0xf]
      %v952 = vld [vmem:[%s796] sm:$0x1]
      %v954 = vlaneseq
      %v955 = vshrl.u32 %v954, 7
      %v956 = vsub.s32 0, %v955
      %v957 = vrot.slane %v952, %v956
      %v963 = vunpack.c.l.b16 %v948
      %v964 = vunpack.c.l.b16 %v949
      %v965 = vunpack.c.l.b16 %v950
      %v966 = vunpack.c.l.b16 %v951
      %v967 = vpack.c.b16 %v964, %v963
      %v968 = vpack.c.b16 %v966, %v965
      %v972 = vsel %vm890, %v946, 0
      %v975 = vsel %vm890, %v947, 0
      %977 = vmatprep.subr.bf16.mxu0 0
      %978 = vmatpush1.bf16.msra.mxu0 0
      %979 = vmatprep.subr.bf16.mxu0 0
      %980 = vmatpush1.bf16.msra.mxu0 0
      %981 = vmatprep.subr.bf16.mxu0 0
      %982 = vmatpush1.bf16.msra.mxu0 0
      %983 = vmatprep.subr.bf16.mxu0 0
      %984 = vmatpush1.bf16.msra.mxu0 0
      %985 = vmatprep.subr.bf16.mxu0 0
      %986 = vmatpush1.bf16.msra.mxu0 0
      %987 = vmatprep.subr.bf16.mxu0 0
      %988 = vmatpush1.bf16.msra.mxu0 0
      %989 = vmatprep.subr.bf16.mxu0 0
      %990 = vmatpush1.bf16.msra.mxu0 %v968
      %991 = vmatprep.subr.bf16.mxu0 0
      %992 = vmatpush1.bf16.msra.mxu0 %v967
      %993 = vmatprep.subr.bf16.mxu0 0
      %994 = vmatpush2.bf16.msra.mxu0 0
      %995 = vmatprep.subr.bf16.mxu0 0
      %996 = vmatpush2.bf16.msra.mxu0 0
      %997 = vmatprep.subr.bf16.mxu0 0
      %998 = vmatpush2.bf16.msra.mxu0 0
      %999 = vmatprep.subr.bf16.mxu0 0
      %1000 = vmatpush2.bf16.msra.mxu0 0
      %1001 = vmatprep.subr.bf16.mxu0 0
      %1002 = vmatpush2.bf16.msra.mxu0 0
      %1003 = vmatprep.subr.bf16.mxu0 0
      %1004 = vmatpush2.bf16.msra.mxu0 0
      %1005 = vmatprep.subr.bf16.mxu0 0
      %1006 = vmatpush2.bf16.msra.mxu0 0
      %1007 = vmatprep.subr.bf16.mxu0 0
      %1008 = vmatpush2.bf16.msra.mxu0 0
      %1009 = vmatprep.mubr.bf16.mxu0 0
      %1010 = vmatmul.mubr.bf16.gmra.mxu0 %v972
      %v1011 = vpop.f32.mrf.mxu0
      %v1012 = vadd.f32 %v957, %v1011
      %v1013 = vpop.f32.mrf.mxu0
      %v1014 = vpop.f32.mrf.mxu0
      %v1015 = vadd.f32 %v957, %v1014
      %v1016 = vpop.f32.mrf.mxu0
      %1017 = vmatprep.mubr.bf16.mxu0 0
      %1018 = vmatmul.mubr.bf16.gmra.mxu0 %v975
      %v1019 = vpop.f32.mrf.mxu0
      %v1020 = vadd.f32 %v957, %v1019
      %v1021 = vpop.f32.mrf.mxu0
      %v1022 = vpop.f32.mrf.mxu0
      %v1023 = vadd.f32 %v957, %v1022
      %v1024 = vpop.f32.mrf.mxu0
      %1025 = vdwg.mxu0
      %v1026 = vpack.c.bf16 %v935, %v932
      %v1027 = vpack.c.bf16 %v943, %v940
      %v1028 = vpack.c.bf16 %v1015, %v1012
      %v1029 = vpack.c.bf16 %v1023, %v1020
      %1031 = vrot.lane.b32.xlu0 %v1026, 96
      %v1032 = vpop.permute.xlu0 %1031
      %vm1033 = vcmask 64512
      %v1035 = vsel %vm1033, %v1026, 0
      %v1038 = vsel %vm1033, %v1032, 0
      %1040 = vmatprep.subr.bf16.mxu0 0
      %1041 = vmatpush1.bf16.xpose.msra.mxu0 0
      %1042 = vmatprep.subr.bf16.mxu0 0
      %1043 = vmatpush1.bf16.xpose.msra.mxu0 0
      %1044 = vmatprep.subr.bf16.mxu0 0
      %1045 = vmatpush1.bf16.xpose.msra.mxu0 0
      %1046 = vmatprep.subr.bf16.mxu0 0
      %1047 = vmatpush1.bf16.xpose.msra.mxu0 0
      %1048 = vmatprep.subr.bf16.mxu0 0
      %1049 = vmatpush1.bf16.xpose.msra.mxu0 0
      %1050 = vmatprep.subr.bf16.mxu0 0
      %1051 = vmatpush1.bf16.xpose.msra.mxu0 0
      %1052 = vmatprep.subr.bf16.mxu0 0
      %1053 = vmatpush1.bf16.xpose.msra.mxu0 0
      %1054 = vmatprep.subr.bf16.mxu0 0
      %1055 = vmatpush1.bf16.xpose.msra.mxu0 %v1038
      %1056 = vmatprep.subr.bf16.mxu0 0
      %1057 = vmatpush2.bf16.xpose.msra.mxu0 0
      %1058 = vmatprep.subr.bf16.mxu0 0
      %1059 = vmatpush2.bf16.xpose.msra.mxu0 0
      %1060 = vmatprep.subr.bf16.mxu0 0
      %1061 = vmatpush2.bf16.xpose.msra.mxu0 0
      %1062 = vmatprep.subr.bf16.mxu0 0
      %1063 = vmatpush2.bf16.xpose.msra.mxu0 0
      %1064 = vmatprep.subr.bf16.mxu0 0
      %1065 = vmatpush2.bf16.xpose.msra.mxu0 0
      %1066 = vmatprep.subr.bf16.mxu0 0
      %1067 = vmatpush2.bf16.xpose.msra.mxu0 0
      %1068 = vmatprep.subr.bf16.mxu0 0
      %1069 = vmatpush2.bf16.xpose.msra.mxu0 0
      %1070 = vmatprep.subr.bf16.mxu0 0
      %1071 = vmatpush2.bf16.xpose.msra.mxu0 0
      %1072 = vmatprep.mubr.bf16.mxu0 0
      %1073 = vmatmul.mubr.bf16.gmra.mxu0 %v1035
      %v1074 = vpop.f32.mrf.mxu0
      %v1075 = vadd.f32 0.0, %v1074
      %v1076 = vpop.f32.mrf.mxu0
      %v1077 = vpop.f32.mrf.mxu0
      %v1078 = vadd.f32 0.0, %v1077
      %v1079 = vpop.f32.mrf.mxu0
      %1080 = vdwg.mxu0
      %1082 = vrot.lane.b32.xlu0 %v1027, 96
      %v1083 = vpop.permute.xlu0 %1082
      %v1085 = vsel %vm1033, %v1027, 0
      %v1088 = vsel %vm1033, %v1083, 0
      %1090 = vmatprep.subr.bf16.mxu0 0
      %1091 = vmatpush1.bf16.xpose.msra.mxu0 0
      %1092 = vmatprep.subr.bf16.mxu0 0
      %1093 = vmatpush1.bf16.xpose.msra.mxu0 0
      %1094 = vmatprep.subr.bf16.mxu0 0
      %1095 = vmatpush1.bf16.xpose.msra.mxu0 0
      %1096 = vmatprep.subr.bf16.mxu0 0
      %1097 = vmatpush1.bf16.xpose.msra.mxu0 0
      %1098 = vmatprep.subr.bf16.mxu0 0
      %1099 = vmatpush1.bf16.xpose.msra.mxu0 0
      %1100 = vmatprep.subr.bf16.mxu0 0
      %1101 = vmatpush1.bf16.xpose.msra.mxu0 0
      %1102 = vmatprep.subr.bf16.mxu0 0
      %1103 = vmatpush1.bf16.xpose.msra.mxu0 0
      %1104 = vmatprep.subr.bf16.mxu0 0
      %1105 = vmatpush1.bf16.xpose.msra.mxu0 %v1088
      %1106 = vmatprep.subr.bf16.mxu0 0
      %1107 = vmatpush2.bf16.xpose.msra.mxu0 0
      %1108 = vmatprep.subr.bf16.mxu0 0
      %1109 = vmatpush2.bf16.xpose.msra.mxu0 0
      %1110 = vmatprep.subr.bf16.mxu0 0
      %1111 = vmatpush2.bf16.xpose.msra.mxu0 0
      %1112 = vmatprep.subr.bf16.mxu0 0
      %1113 = vmatpush2.bf16.xpose.msra.mxu0 0
      %1114 = vmatprep.subr.bf16.mxu0 0
      %1115 = vmatpush2.bf16.xpose.msra.mxu0 0
      %1116 = vmatprep.subr.bf16.mxu0 0
      %1117 = vmatpush2.bf16.xpose.msra.mxu0 0
      %1118 = vmatprep.subr.bf16.mxu0 0
      %1119 = vmatpush2.bf16.xpose.msra.mxu0 0
      %1120 = vmatprep.subr.bf16.mxu0 0
      %1121 = vmatpush2.bf16.xpose.msra.mxu0 0
      %1122 = vmatprep.mubr.bf16.mxu0 0
      %1123 = vmatmul.mubr.bf16.gmra.mxu0 %v1085
      %v1124 = vpop.f32.mrf.mxu0
      %v1125 = vadd.f32 0.0, %v1124
      %v1126 = vpop.f32.mrf.mxu0
      %v1127 = vpop.f32.mrf.mxu0
      %v1128 = vadd.f32 0.0, %v1127
      %v1129 = vpop.f32.mrf.mxu0
      %1130 = vdwg.mxu0
      %v1131 = vmul.f32 %v1075, 0.35355338
      %v1132 = vmul.f32 %v1078, 0.35355338
      %v1133 = vmul.f32 %v1125, 0.35355338
      %v1134 = vmul.f32 %v1128, 0.35355338
      %vm1135 = vcmask 130048
      %v1136 = vsel %vm1135, %v1131, -inf
      %1137 = vmax.xlane.f32.xlu0 %v1136
      %v1138 = vpop.xlane.xlu0 %1137
      %v1139 = vsel %vm1135, %v1132, -inf
      %1140 = vmax.xlane.f32.xlu0 %v1139
      %v1141 = vpop.xlane.xlu0 %1140
      %v1142 = vsel %vm1135, %v1133, -inf
      %1143 = vmax.xlane.f32.xlu0 %v1142
      %v1144 = vpop.xlane.xlu0 %1143
      %v1145 = vsel %vm1135, %v1134, -inf
      %1146 = vmax.xlane.f32.xlu0 %v1145
      %v1147 = vpop.xlane.xlu0 %1146
      %v1148 = vsub.f32 %v1131, %v1138
      %v1149 = vsub.f32 %v1132, %v1141
      %v1150 = vsub.f32 %v1133, %v1144
      %v1151 = vsub.f32 %v1134, %v1147
      %v1152 = vmul.f32 %v1148, 1.442695
      %v1153 = vpow.pop %v1152
      %v1154 = vmul.f32 %v1149, 1.442695
      %v1155 = vpow.pop %v1154
      %v1156 = vmul.f32 %v1150, 1.442695
      %v1157 = vpow.pop %v1156
      %v1158 = vmul.f32 %v1151, 1.442695
      %v1159 = vpow.pop %v1158
      %v1160 = vsel %vm1135, %v1153, 0.0
      %1161 = vadd.xlane.f32.xlu0 %v1160
      %v1162 = vpop.xlane.xlu0 %1161
      %v1163 = vsel %vm1135, %v1155, 0.0
      %1164 = vadd.xlane.f32.xlu0 %v1163
      %v1165 = vpop.xlane.xlu0 %1164
      %v1166 = vsel %vm1135, %v1157, 0.0
      %1167 = vadd.xlane.f32.xlu0 %v1166
      %v1168 = vpop.xlane.xlu0 %1167
      %v1169 = vsel %vm1135, %v1159, 0.0
      %1170 = vadd.xlane.f32.xlu0 %v1169
      %v1171 = vpop.xlane.xlu0 %1170
      %v1172 = vpack.c.bf16 %v1155, %v1153
      %v1173 = vpack.c.bf16 %v1159, %v1157
      %v1175 = vsel %vm1135, %v1172, 0
      %1177 = vmatprep.subr.bf16.mxu0 0
      %1178 = vmatpush1.bf16.msra.mxu0 0
      %1179 = vmatprep.subr.bf16.mxu0 0
      %1180 = vmatpush1.bf16.msra.mxu0 0
      %1181 = vmatprep.subr.bf16.mxu0 0
      %1182 = vmatpush1.bf16.msra.mxu0 0
      %1183 = vmatprep.subr.bf16.mxu0 0
      %1184 = vmatpush1.bf16.msra.mxu0 0
      %1185 = vmatprep.subr.bf16.mxu0 0
      %1186 = vmatpush1.bf16.msra.mxu0 0
      %1187 = vmatprep.subr.bf16.mxu0 0
      %1188 = vmatpush1.bf16.msra.mxu0 0
      %1189 = vmatprep.subr.bf16.mxu0 0
      %1190 = vmatpush1.bf16.msra.mxu0 0
      %1191 = vmatprep.subr.bf16.mxu0 0
      %1192 = vmatpush1.bf16.msra.mxu0 %v1028
      %1193 = vmatprep.subr.bf16.mxu0 0
      %1194 = vmatpush2.bf16.msra.mxu0 0
      %1195 = vmatprep.subr.bf16.mxu0 0
      %1196 = vmatpush2.bf16.msra.mxu0 0
      %1197 = vmatprep.subr.bf16.mxu0 0
      %1198 = vmatpush2.bf16.msra.mxu0 0
      %1199 = vmatprep.subr.bf16.mxu0 0
      %1200 = vmatpush2.bf16.msra.mxu0 0
      %1201 = vmatprep.subr.bf16.mxu0 0
      %1202 = vmatpush2.bf16.msra.mxu0 0
      %1203 = vmatprep.subr.bf16.mxu0 0
      %1204 = vmatpush2.bf16.msra.mxu0 0
      %1205 = vmatprep.subr.bf16.mxu0 0
      %1206 = vmatpush2.bf16.msra.mxu0 0
      %1207 = vmatprep.subr.bf16.mxu0 0
      %1208 = vmatpush2.bf16.msra.mxu0 0
      %1209 = vmatprep.mubr.bf16.mxu0 0
      %1210 = vmatmul.mubr.bf16.gmra.mxu0 %v1175
      %v1211 = vpop.f32.mrf.mxu0
      %v1212 = vadd.f32 0.0, %v1211
      %v1213 = vpop.f32.mrf.mxu0
      %v1214 = vpop.f32.mrf.mxu0
      %v1215 = vadd.f32 0.0, %v1214
      %v1216 = vpop.f32.mrf.mxu0
      %1217 = vdwg.mxu0
      %v1219 = vsel %vm1135, %v1173, 0
      %1221 = vmatprep.subr.bf16.mxu0 0
      %1222 = vmatpush1.bf16.msra.mxu0 0
      %1223 = vmatprep.subr.bf16.mxu0 0
      %1224 = vmatpush1.bf16.msra.mxu0 0
      %1225 = vmatprep.subr.bf16.mxu0 0
      %1226 = vmatpush1.bf16.msra.mxu0 0
      %1227 = vmatprep.subr.bf16.mxu0 0
      %1228 = vmatpush1.bf16.msra.mxu0 0
      %1229 = vmatprep.subr.bf16.mxu0 0
      %1230 = vmatpush1.bf16.msra.mxu0 0
      %1231 = vmatprep.subr.bf16.mxu0 0
      %1232 = vmatpush1.bf16.msra.mxu0 0
      %1233 = vmatprep.subr.bf16.mxu0 0
      %1234 = vmatpush1.bf16.msra.mxu0 0
      %1235 = vmatprep.subr.bf16.mxu0 0
      %1236 = vmatpush1.bf16.msra.mxu0 %v1029
      %1237 = vmatprep.subr.bf16.mxu0 0
      %1238 = vmatpush2.bf16.msra.mxu0 0
      %1239 = vmatprep.subr.bf16.mxu0 0
      %1240 = vmatpush2.bf16.msra.mxu0 0
      %1241 = vmatprep.subr.bf16.mxu0 0
      %1242 = vmatpush2.bf16.msra.mxu0 0
      %1243 = vmatprep.subr.bf16.mxu0 0
      %1244 = vmatpush2.bf16.msra.mxu0 0
      %1245 = vmatprep.subr.bf16.mxu0 0
      %1246 = vmatpush2.bf16.msra.mxu0 0
      %1247 = vmatprep.subr.bf16.mxu0 0
      %1248 = vmatpush2.bf16.msra.mxu0 0
      %1249 = vmatprep.subr.bf16.mxu0 0
      %1250 = vmatpush2.bf16.msra.mxu0 0
      %1251 = vmatprep.subr.bf16.mxu0 0
      %1252 = vmatpush2.bf16.msra.mxu0 0
      %1253 = vmatprep.mubr.bf16.mxu0 0
      %1254 = vmatmul.mubr.bf16.gmra.mxu0 %v1219
      %v1255 = vpop.f32.mrf.mxu0
      %v1256 = vadd.f32 0.0, %v1255
      %v1257 = vpop.f32.mrf.mxu0
      %v1258 = vpop.f32.mrf.mxu0
      %v1259 = vadd.f32 0.0, %v1258
      %v1260 = vpop.f32.mrf.mxu0
      %1261 = vdwg.mxu0
      %v1262 = vrcp.pop %v1162
      %v1263 = vmul.f32 %v1212, %v1262
      %v1264 = vrcp.pop %v1165
      %v1265 = vmul.f32 %v1215, %v1264
      %v1266 = vrcp.pop %v1168
      %v1267 = vmul.f32 %v1256, %v1266
      %v1268 = vrcp.pop %v1171
      %v1269 = vmul.f32 %v1259, %v1268
      %v1270 = vpack.c.bf16 %v1265, %v1263
      %v1271 = vpack.c.bf16 %v1269, %v1267
      %v1272 = vld [vmem:[%s801] sm:$0xf]
      %1273 = vrot.lane.b32.xlu0 %v1026, 120
      %v1274 = vpop.permute.xlu0 %1273
      %1275 = vrot.lane.b32.xlu0 %v1026, 88
      %v1276 = vpop.permute.xlu0 %1275
      %v1278 = vsel %vm1033, %v1274, 0
      %v1281 = vsel %vm1033, %v1276, 0
      %1283 = vmatprep.subr.bf16.mxu0 0
      %1284 = vmatpush1.bf16.xpose.msra.mxu0 0
      %1285 = vmatprep.subr.bf16.mxu0 0
      %1286 = vmatpush1.bf16.xpose.msra.mxu0 0
      %1287 = vmatprep.subr.bf16.mxu0 0
      %1288 = vmatpush1.bf16.xpose.msra.mxu0 0
      %1289 = vmatprep.subr.bf16.mxu0 0
      %1290 = vmatpush1.bf16.xpose.msra.mxu0 0
      %1291 = vmatprep.subr.bf16.mxu0 0
      %1292 = vmatpush1.bf16.xpose.msra.mxu0 0
      %1293 = vmatprep.subr.bf16.mxu0 0
      %1294 = vmatpush1.bf16.xpose.msra.mxu0 0
      %1295 = vmatprep.subr.bf16.mxu0 0
      %1296 = vmatpush1.bf16.xpose.msra.mxu0 0
      %1297 = vmatprep.subr.bf16.mxu0 0
      %1298 = vmatpush1.bf16.xpose.msra.mxu0 %v1281
      %1299 = vmatprep.subr.bf16.mxu0 0
      %1300 = vmatpush2.bf16.xpose.msra.mxu0 0
      %1301 = vmatprep.subr.bf16.mxu0 0
      %1302 = vmatpush2.bf16.xpose.msra.mxu0 0
      %1303 = vmatprep.subr.bf16.mxu0 0
      %1304 = vmatpush2.bf16.xpose.msra.mxu0 0
      %1305 = vmatprep.subr.bf16.mxu0 0
      %1306 = vmatpush2.bf16.xpose.msra.mxu0 0
      %1307 = vmatprep.subr.bf16.mxu0 0
      %1308 = vmatpush2.bf16.xpose.msra.mxu0 0
      %1309 = vmatprep.subr.bf16.mxu0 0
      %1310 = vmatpush2.bf16.xpose.msra.mxu0 0
      %1311 = vmatprep.subr.bf16.mxu0 0
      %1312 = vmatpush2.bf16.xpose.msra.mxu0 0
      %1313 = vmatprep.subr.bf16.mxu0 0
      %1314 = vmatpush2.bf16.xpose.msra.mxu0 0
      %1315 = vmatprep.mubr.bf16.mxu0 0
      %1316 = vmatmul.mubr.bf16.gmra.mxu0 %v1278
      %v1317 = vpop.f32.mrf.mxu0
      %v1318 = vadd.f32 0.0, %v1317
      %v1319 = vpop.f32.mrf.mxu0
      %v1320 = vpop.f32.mrf.mxu0
      %v1321 = vadd.f32 0.0, %v1320
      %v1322 = vpop.f32.mrf.mxu0
      %1323 = vdwg.mxu0
      %1324 = vrot.lane.b32.xlu0 %v1027, 120
      %v1325 = vpop.permute.xlu0 %1324
      %1326 = vrot.lane.b32.xlu0 %v1027, 88
      %v1327 = vpop.permute.xlu0 %1326
      %v1329 = vsel %vm1033, %v1325, 0
      %v1332 = vsel %vm1033, %v1327, 0
      %1334 = vmatprep.subr.bf16.mxu0 0
      %1335 = vmatpush1.bf16.xpose.msra.mxu0 0
      %1336 = vmatprep.subr.bf16.mxu0 0
      %1337 = vmatpush1.bf16.xpose.msra.mxu0 0
      %1338 = vmatprep.subr.bf16.mxu0 0
      %1339 = vmatpush1.bf16.xpose.msra.mxu0 0
      %1340 = vmatprep.subr.bf16.mxu0 0
      %1341 = vmatpush1.bf16.xpose.msra.mxu0 0
      %1342 = vmatprep.subr.bf16.mxu0 0
      %1343 = vmatpush1.bf16.xpose.msra.mxu0 0
      %1344 = vmatprep.subr.bf16.mxu0 0
      %1345 = vmatpush1.bf16.xpose.msra.mxu0 0
      %1346 = vmatprep.subr.bf16.mxu0 0
      %1347 = vmatpush1.bf16.xpose.msra.mxu0 0
      %1348 = vmatprep.subr.bf16.mxu0 0
      %1349 = vmatpush1.bf16.xpose.msra.mxu0 %v1332
      %1350 = vmatprep.subr.bf16.mxu0 0
      %1351 = vmatpush2.bf16.xpose.msra.mxu0 0
      %1352 = vmatprep.subr.bf16.mxu0 0
      %1353 = vmatpush2.bf16.xpose.msra.mxu0 0
      %1354 = vmatprep.subr.bf16.mxu0 0
      %1355 = vmatpush2.bf16.xpose.msra.mxu0 0
      %1356 = vmatprep.subr.bf16.mxu0 0
      %1357 = vmatpush2.bf16.xpose.msra.mxu0 0
      %1358 = vmatprep.subr.bf16.mxu0 0
      %1359 = vmatpush2.bf16.xpose.msra.mxu0 0
      %1360 = vmatprep.subr.bf16.mxu0 0
      %1361 = vmatpush2.bf16.xpose.msra.mxu0 0
      %1362 = vmatprep.subr.bf16.mxu0 0
      %1363 = vmatpush2.bf16.xpose.msra.mxu0 0
      %1364 = vmatprep.subr.bf16.mxu0 0
      %1365 = vmatpush2.bf16.xpose.msra.mxu0 0
      %1366 = vmatprep.mubr.bf16.mxu0 0
      %1367 = vmatmul.mubr.bf16.gmra.mxu0 %v1329
      %v1368 = vpop.f32.mrf.mxu0
      %v1369 = vadd.f32 0.0, %v1368
      %v1370 = vpop.f32.mrf.mxu0
      %v1371 = vpop.f32.mrf.mxu0
      %v1372 = vadd.f32 0.0, %v1371
      %v1373 = vpop.f32.mrf.mxu0
      %1374 = vdwg.mxu0
      %v1375 = vmul.f32 %v1318, 0.35355338
      %v1376 = vmul.f32 %v1321, 0.35355338
      %v1377 = vmul.f32 %v1369, 0.35355338
      %v1378 = vmul.f32 %v1372, 0.35355338
      %v1379 = vsel %vm1135, %v1375, -inf
      %1380 = vmax.xlane.f32.xlu0 %v1379
      %v1381 = vpop.xlane.xlu0 %1380
      %v1382 = vsel %vm1135, %v1376, -inf
      %1383 = vmax.xlane.f32.xlu0 %v1382
      %v1384 = vpop.xlane.xlu0 %1383
      %v1385 = vsel %vm1135, %v1377, -inf
      %1386 = vmax.xlane.f32.xlu0 %v1385
      %v1387 = vpop.xlane.xlu0 %1386
      %v1388 = vsel %vm1135, %v1378, -inf
      %1389 = vmax.xlane.f32.xlu0 %v1388
      %v1390 = vpop.xlane.xlu0 %1389
      %v1391 = vsub.f32 %v1375, %v1381
      %v1392 = vsub.f32 %v1376, %v1384
      %v1393 = vsub.f32 %v1377, %v1387
      %v1394 = vsub.f32 %v1378, %v1390
      %v1395 = vmul.f32 %v1391, 1.442695
      %v1396 = vpow.pop %v1395
      %v1397 = vmul.f32 %v1392, 1.442695
      %v1398 = vpow.pop %v1397
      %v1399 = vmul.f32 %v1393, 1.442695
      %v1400 = vpow.pop %v1399
      %v1401 = vmul.f32 %v1394, 1.442695
      %v1402 = vpow.pop %v1401
      %v1403 = vsel %vm1135, %v1396, 0.0
      %1404 = vadd.xlane.f32.xlu0 %v1403
      %v1405 = vpop.xlane.xlu0 %1404
      %v1406 = vsel %vm1135, %v1398, 0.0
      %1407 = vadd.xlane.f32.xlu0 %v1406
      %v1408 = vpop.xlane.xlu0 %1407
      %v1409 = vsel %vm1135, %v1400, 0.0
      %1410 = vadd.xlane.f32.xlu0 %v1409
      %v1411 = vpop.xlane.xlu0 %1410
      %v1412 = vsel %vm1135, %v1402, 0.0
      %1413 = vadd.xlane.f32.xlu0 %v1412
      %v1414 = vpop.xlane.xlu0 %1413
      %v1415 = vpack.c.bf16 %v1398, %v1396
      %v1416 = vpack.c.bf16 %v1402, %v1400
      %1418 = vrot.lane.b32.xlu0 %v1028, 120
      %v1419 = vpop.permute.xlu0 %1418
      %v1422 = vsel %vm1135, %v1415, 0
      %1424 = vmatprep.subr.bf16.mxu0 0
      %1425 = vmatpush1.bf16.msra.mxu0 0
      %1426 = vmatprep.subr.bf16.mxu0 0
      %1427 = vmatpush1.bf16.msra.mxu0 0
      %1428 = vmatprep.subr.bf16.mxu0 0
      %1429 = vmatpush1.bf16.msra.mxu0 0
      %1430 = vmatprep.subr.bf16.mxu0 0
      %1431 = vmatpush1.bf16.msra.mxu0 0
      %1432 = vmatprep.subr.bf16.mxu0 0
      %1433 = vmatpush1.bf16.msra.mxu0 0
      %1434 = vmatprep.subr.bf16.mxu0 0
      %1435 = vmatpush1.bf16.msra.mxu0 0
      %1436 = vmatprep.subr.bf16.mxu0 0
      %1437 = vmatpush1.bf16.msra.mxu0 0
      %1438 = vmatprep.subr.bf16.mxu0 0
      %1439 = vmatpush1.bf16.msra.mxu0 %v1419
      %1440 = vmatprep.subr.bf16.mxu0 0
      %1441 = vmatpush2.bf16.msra.mxu0 0
      %1442 = vmatprep.subr.bf16.mxu0 0
      %1443 = vmatpush2.bf16.msra.mxu0 0
      %1444 = vmatprep.subr.bf16.mxu0 0
      %1445 = vmatpush2.bf16.msra.mxu0 0
      %1446 = vmatprep.subr.bf16.mxu0 0
      %1447 = vmatpush2.bf16.msra.mxu0 0
      %1448 = vmatprep.subr.bf16.mxu0 0
      %1449 = vmatpush2.bf16.msra.mxu0 0
      %1450 = vmatprep.subr.bf16.mxu0 0
      %1451 = vmatpush2.bf16.msra.mxu0 0
      %1452 = vmatprep.subr.bf16.mxu0 0
      %1453 = vmatpush2.bf16.msra.mxu0 0
      %1454 = vmatprep.subr.bf16.mxu0 0
      %1455 = vmatpush2.bf16.msra.mxu0 0
      %1456 = vmatprep.mubr.bf16.mxu0 0
      %1457 = vmatmul.mubr.bf16.gmra.mxu0 %v1422
      %v1458 = vpop.f32.mrf.mxu0
      %v1459 = vadd.f32 0.0, %v1458
      %v1460 = vpop.f32.mrf.mxu0
      %v1461 = vpop.f32.mrf.mxu0
      %v1462 = vadd.f32 0.0, %v1461
      %v1463 = vpop.f32.mrf.mxu0
      %1464 = vdwg.mxu0
      %1466 = vrot.lane.b32.xlu0 %v1029, 120
      %v1467 = vpop.permute.xlu0 %1466
      %v1470 = vsel %vm1135, %v1416, 0
      %1472 = vmatprep.subr.bf16.mxu0 0
      %1473 = vmatpush1.bf16.msra.mxu0 0
      %1474 = vmatprep.subr.bf16.mxu0 0
      %1475 = vmatpush1.bf16.msra.mxu0 0
      %1476 = vmatprep.subr.bf16.mxu0 0
      %1477 = vmatpush1.bf16.msra.mxu0 0
      %1478 = vmatprep.subr.bf16.mxu0 0
      %1479 = vmatpush1.bf16.msra.mxu0 0
      %1480 = vmatprep.subr.bf16.mxu0 0
      %1481 = vmatpush1.bf16.msra.mxu0 0
      %1482 = vmatprep.subr.bf16.mxu0 0
      %1483 = vmatpush1.bf16.msra.mxu0 0
      %1484 = vmatprep.subr.bf16.mxu0 0
      %1485 = vmatpush1.bf16.msra.mxu0 0
      %1486 = vmatprep.subr.bf16.mxu0 0
      %1487 = vmatpush1.bf16.msra.mxu0 %v1467
      %1488 = vmatprep.subr.bf16.mxu0 0
      %1489 = vmatpush2.bf16.msra.mxu0 0
      %1490 = vmatprep.subr.bf16.mxu0 0
      %1491 = vmatpush2.bf16.msra.mxu0 0
      %1492 = vmatprep.subr.bf16.mxu0 0
      %1493 = vmatpush2.bf16.msra.mxu0 0
      %1494 = vmatprep.subr.bf16.mxu0 0
      %1495 = vmatpush2.bf16.msra.mxu0 0
      %1496 = vmatprep.subr.bf16.mxu0 0
      %1497 = vmatpush2.bf16.msra.mxu0 0
      %1498 = vmatprep.subr.bf16.mxu0 0
      %1499 = vmatpush2.bf16.msra.mxu0 0
      %1500 = vmatprep.subr.bf16.mxu0 0
      %1501 = vmatpush2.bf16.msra.mxu0 0
      %1502 = vmatprep.subr.bf16.mxu0 0
      %1503 = vmatpush2.bf16.msra.mxu0 0
      %1504 = vmatprep.mubr.bf16.mxu0 0
      %1505 = vmatmul.mubr.bf16.gmra.mxu0 %v1470
      %v1506 = vpop.f32.mrf.mxu0
      %v1507 = vadd.f32 0.0, %v1506
      %v1508 = vpop.f32.mrf.mxu0
      %v1509 = vpop.f32.mrf.mxu0
      %v1510 = vadd.f32 0.0, %v1509
      %v1511 = vpop.f32.mrf.mxu0
      %1512 = vdwg.mxu0
      %v1513 = vrcp.pop %v1405
      %v1514 = vmul.f32 %v1459, %v1513
      %v1515 = vrcp.pop %v1408
      %v1516 = vmul.f32 %v1462, %v1515
      %v1517 = vrcp.pop %v1411
      %v1518 = vmul.f32 %v1507, %v1517
      %v1519 = vrcp.pop %v1414
      %v1520 = vmul.f32 %v1510, %v1519
      %v1521 = vpack.c.bf16 %v1516, %v1514
      %v1522 = vpack.c.bf16 %v1520, %v1518
      %s1523 = scalar_lea.vmem %s801, 4
      %v1524 = vld [vmem:[%s1523] sm:$0xf]
      %v1526 = vsel %vm1033, %v1521, 0
      %v1529 = vsel %vm1033, %v1522, 0
      %vm1531 = vcmask 1043456
      %v1533 = vsel %vm1531, %v1524, 0
      %1535 = vmatprep.subr.bf16.mxu0 0
      %1536 = vmatpush1.bf16.msra.mxu0 0
      %1537 = vmatprep.subr.bf16.mxu0 0
      %1538 = vmatpush1.bf16.msra.mxu0 0
      %1539 = vmatprep.subr.bf16.mxu0 0
      %1540 = vmatpush1.bf16.msra.mxu0 0
      %1541 = vmatprep.subr.bf16.mxu0 0
      %1542 = vmatpush1.bf16.msra.mxu0 0
      %1543 = vmatprep.subr.bf16.mxu0 0
      %1544 = vmatpush1.bf16.msra.mxu0 0
      %1545 = vmatprep.subr.bf16.mxu0 0
      %1546 = vmatpush1.bf16.msra.mxu0 0
      %1547 = vmatprep.subr.bf16.mxu0 0
      %1548 = vmatpush1.bf16.msra.mxu0 0
      %1549 = vmatprep.subr.bf16.mxu0 0
      %1550 = vmatpush1.bf16.msra.mxu0 %v1533
      %1551 = vmatprep.subr.bf16.mxu0 0
      %1552 = vmatpush2.bf16.msra.mxu0 0
      %1553 = vmatprep.subr.bf16.mxu0 0
      %1554 = vmatpush2.bf16.msra.mxu0 0
      %1555 = vmatprep.subr.bf16.mxu0 0
      %1556 = vmatpush2.bf16.msra.mxu0 0
      %1557 = vmatprep.subr.bf16.mxu0 0
      %1558 = vmatpush2.bf16.msra.mxu0 0
      %1559 = vmatprep.subr.bf16.mxu0 0
      %1560 = vmatpush2.bf16.msra.mxu0 0
      %1561 = vmatprep.subr.bf16.mxu0 0
      %1562 = vmatpush2.bf16.msra.mxu0 0
      %1563 = vmatprep.subr.bf16.mxu0 0
      %1564 = vmatpush2.bf16.msra.mxu0 0
      %1565 = vmatprep.subr.bf16.mxu0 0
      %1566 = vmatpush2.bf16.msra.mxu0 0
      %1567 = vmatprep.mubr.bf16.mxu0 0
      %1568 = vmatmul.mubr.bf16.gmra.mxu0 %v1526
      %v1569 = vpop.f32.mrf.mxu0
      %v1570 = vadd.f32 0.0, %v1569
      %v1571 = vpop.f32.mrf.mxu0
      %v1572 = vpop.f32.mrf.mxu0
      %v1573 = vadd.f32 0.0, %v1572
      %v1574 = vpop.f32.mrf.mxu0
      %1575 = vmatprep.mubr.bf16.mxu0 0
      %1576 = vmatmul.mubr.bf16.gmra.mxu0 %v1529
      %v1577 = vpop.f32.mrf.mxu0
      %v1578 = vadd.f32 0.0, %v1577
      %v1579 = vpop.f32.mrf.mxu0
      %v1580 = vpop.f32.mrf.mxu0
      %v1581 = vadd.f32 0.0, %v1580
      %v1582 = vpop.f32.mrf.mxu0
      %1583 = vdwg.mxu0
      %v1585 = vsel %vm1033, %v1270, 0
      %v1588 = vsel %vm1033, %v1271, 0
      %v1591 = vsel %vm1531, %v1272, 0
      %1593 = vmatprep.subr.bf16.mxu0 0
      %1594 = vmatpush1.bf16.msra.mxu0 0
      %1595 = vmatprep.subr.bf16.mxu0 0
      %1596 = vmatpush1.bf16.msra.mxu0 0
      %1597 = vmatprep.subr.bf16.mxu0 0
      %1598 = vmatpush1.bf16.msra.mxu0 0
      %1599 = vmatprep.subr.bf16.mxu0 0
      %1600 = vmatpush1.bf16.msra.mxu0 0
      %1601 = vmatprep.subr.bf16.mxu0 0
      %1602 = vmatpush1.bf16.msra.mxu0 0
      %1603 = vmatprep.subr.bf16.mxu0 0
      %1604 = vmatpush1.bf16.msra.mxu0 0
      %1605 = vmatprep.subr.bf16.mxu0 0
      %1606 = vmatpush1.bf16.msra.mxu0 0
      %1607 = vmatprep.subr.bf16.mxu0 0
      %1608 = vmatpush1.bf16.msra.mxu0 %v1591
      %1609 = vmatprep.subr.bf16.mxu0 0
      %1610 = vmatpush2.bf16.msra.mxu0 0
      %1611 = vmatprep.subr.bf16.mxu0 0
      %1612 = vmatpush2.bf16.msra.mxu0 0
      %1613 = vmatprep.subr.bf16.mxu0 0
      %1614 = vmatpush2.bf16.msra.mxu0 0
      %1615 = vmatprep.subr.bf16.mxu0 0
      %1616 = vmatpush2.bf16.msra.mxu0 0
      %1617 = vmatprep.subr.bf16.mxu0 0
      %1618 = vmatpush2.bf16.msra.mxu0 0
      %1619 = vmatprep.subr.bf16.mxu0 0
      %1620 = vmatpush2.bf16.msra.mxu0 0
      %1621 = vmatprep.subr.bf16.mxu0 0
      %1622 = vmatpush2.bf16.msra.mxu0 0
      %1623 = vmatprep.subr.bf16.mxu0 0
      %1624 = vmatpush2.bf16.msra.mxu0 0
      %1625 = vmatprep.mubr.bf16.mxu0 0
      %1626 = vmatmul.mubr.bf16.gmra.mxu0 %v1585
      %v1627 = vpop.f32.mrf.mxu0
      %v1628 = vadd.f32 %v1570, %v1627
      %v1629 = vpop.f32.mrf.mxu0
      %v1630 = vpop.f32.mrf.mxu0
      %v1631 = vadd.f32 %v1573, %v1630
      %v1632 = vpop.f32.mrf.mxu0
      %1633 = vmatprep.mubr.bf16.mxu0 0
      %1634 = vmatmul.mubr.bf16.gmra.mxu0 %v1588
      %v1635 = vpop.f32.mrf.mxu0
      %v1636 = vadd.f32 %v1578, %v1635
      %v1637 = vpop.f32.mrf.mxu0
      %v1638 = vpop.f32.mrf.mxu0
      %v1639 = vadd.f32 %v1581, %v1638
      %v1640 = vpop.f32.mrf.mxu0
      %1641 = vdwg.mxu0
      %1642 = vrot.lane.b32.xlu0 %v1026, 112
      %v1643 = vpop.permute.xlu0 %1642
      %1644 = vrot.lane.b32.xlu0 %v1026, 80
      %v1645 = vpop.permute.xlu0 %1644
      %v1647 = vsel %vm1033, %v1643, 0
      %v1650 = vsel %vm1033, %v1645, 0
      %1652 = vmatprep.subr.bf16.mxu0 0
      %1653 = vmatpush1.bf16.xpose.msra.mxu0 0
      %1654 = vmatprep.subr.bf16.mxu0 0
      %1655 = vmatpush1.bf16.xpose.msra.mxu0 0
      %1656 = vmatprep.subr.bf16.mxu0 0
      %1657 = vmatpush1.bf16.xpose.msra.mxu0 0
      %1658 = vmatprep.subr.bf16.mxu0 0
      %1659 = vmatpush1.bf16.xpose.msra.mxu0 0
      %1660 = vmatprep.subr.bf16.mxu0 0
      %1661 = vmatpush1.bf16.xpose.msra.mxu0 0
      %1662 = vmatprep.subr.bf16.mxu0 0
      %1663 = vmatpush1.bf16.xpose.msra.mxu0 0
      %1664 = vmatprep.subr.bf16.mxu0 0
      %1665 = vmatpush1.bf16.xpose.msra.mxu0 0
      %1666 = vmatprep.subr.bf16.mxu0 0
      %1667 = vmatpush1.bf16.xpose.msra.mxu0 %v1650
      %1668 = vmatprep.subr.bf16.mxu0 0
      %1669 = vmatpush2.bf16.xpose.msra.mxu0 0
      %1670 = vmatprep.subr.bf16.mxu0 0
      %1671 = vmatpush2.bf16.xpose.msra.mxu0 0
      %1672 = vmatprep.subr.bf16.mxu0 0
      %1673 = vmatpush2.bf16.xpose.msra.mxu0 0
      %1674 = vmatprep.subr.bf16.mxu0 0
      %1675 = vmatpush2.bf16.xpose.msra.mxu0 0
      %1676 = vmatprep.subr.bf16.mxu0 0
      %1677 = vmatpush2.bf16.xpose.msra.mxu0 0
      %1678 = vmatprep.subr.bf16.mxu0 0
      %1679 = vmatpush2.bf16.xpose.msra.mxu0 0
      %1680 = vmatprep.subr.bf16.mxu0 0
      %1681 = vmatpush2.bf16.xpose.msra.mxu0 0
      %1682 = vmatprep.subr.bf16.mxu0 0
      %1683 = vmatpush2.bf16.xpose.msra.mxu0 0
      %1684 = vmatprep.mubr.bf16.mxu0 0
      %1685 = vmatmul.mubr.bf16.gmra.mxu0 %v1647
      %v1686 = vpop.f32.mrf.mxu0
      %v1687 = vadd.f32 0.0, %v1686
      %v1688 = vpop.f32.mrf.mxu0
      %v1689 = vpop.f32.mrf.mxu0
      %v1690 = vadd.f32 0.0, %v1689
      %v1691 = vpop.f32.mrf.mxu0
      %1692 = vdwg.mxu0
      %1693 = vrot.lane.b32.xlu0 %v1027, 112
      %v1694 = vpop.permute.xlu0 %1693
      %1695 = vrot.lane.b32.xlu0 %v1027, 80
      %v1696 = vpop.permute.xlu0 %1695
      %v1698 = vsel %vm1033, %v1694, 0
      %v1701 = vsel %vm1033, %v1696, 0
      %1703 = vmatprep.subr.bf16.mxu0 0
      %1704 = vmatpush1.bf16.xpose.msra.mxu0 0
      %1705 = vmatprep.subr.bf16.mxu0 0
      %1706 = vmatpush1.bf16.xpose.msra.mxu0 0
      %1707 = vmatprep.subr.bf16.mxu0 0
      %1708 = vmatpush1.bf16.xpose.msra.mxu0 0
      %1709 = vmatprep.subr.bf16.mxu0 0
      %1710 = vmatpush1.bf16.xpose.msra.mxu0 0
      %1711 = vmatprep.subr.bf16.mxu0 0
      %1712 = vmatpush1.bf16.xpose.msra.mxu0 0
      %1713 = vmatprep.subr.bf16.mxu0 0
      %1714 = vmatpush1.bf16.xpose.msra.mxu0 0
      %1715 = vmatprep.subr.bf16.mxu0 0
      %1716 = vmatpush1.bf16.xpose.msra.mxu0 0
      %1717 = vmatprep.subr.bf16.mxu0 0
      %1718 = vmatpush1.bf16.xpose.msra.mxu0 %v1701
      %1719 = vmatprep.subr.bf16.mxu0 0
      %1720 = vmatpush2.bf16.xpose.msra.mxu0 0
      %1721 = vmatprep.subr.bf16.mxu0 0
      %1722 = vmatpush2.bf16.xpose.msra.mxu0 0
      %1723 = vmatprep.subr.bf16.mxu0 0
      %1724 = vmatpush2.bf16.xpose.msra.mxu0 0
      %1725 = vmatprep.subr.bf16.mxu0 0
      %1726 = vmatpush2.bf16.xpose.msra.mxu0 0
      %1727 = vmatprep.subr.bf16.mxu0 0
      %1728 = vmatpush2.bf16.xpose.msra.mxu0 0
      %1729 = vmatprep.subr.bf16.mxu0 0
      %1730 = vmatpush2.bf16.xpose.msra.mxu0 0
      %1731 = vmatprep.subr.bf16.mxu0 0
      %1732 = vmatpush2.bf16.xpose.msra.mxu0 0
      %1733 = vmatprep.subr.bf16.mxu0 0
      %1734 = vmatpush2.bf16.xpose.msra.mxu0 0
      %1735 = vmatprep.mubr.bf16.mxu0 0
      %1736 = vmatmul.mubr.bf16.gmra.mxu0 %v1698
      %v1737 = vpop.f32.mrf.mxu0
      %v1738 = vadd.f32 0.0, %v1737
      %v1739 = vpop.f32.mrf.mxu0
      %v1740 = vpop.f32.mrf.mxu0
      %v1741 = vadd.f32 0.0, %v1740
      %v1742 = vpop.f32.mrf.mxu0
      %1743 = vdwg.mxu0
      %v1744 = vmul.f32 %v1687, 0.35355338
      %v1745 = vmul.f32 %v1690, 0.35355338
      %v1746 = vmul.f32 %v1738, 0.35355338
      %v1747 = vmul.f32 %v1741, 0.35355338
      %v1748 = vsel %vm1135, %v1744, -inf
      %1749 = vmax.xlane.f32.xlu0 %v1748
      %v1750 = vpop.xlane.xlu0 %1749
      %v1751 = vsel %vm1135, %v1745, -inf
      %1752 = vmax.xlane.f32.xlu0 %v1751
      %v1753 = vpop.xlane.xlu0 %1752
      %v1754 = vsel %vm1135, %v1746, -inf
      %1755 = vmax.xlane.f32.xlu0 %v1754
      %v1756 = vpop.xlane.xlu0 %1755
      %v1757 = vsel %vm1135, %v1747, -inf
      %1758 = vmax.xlane.f32.xlu0 %v1757
      %v1759 = vpop.xlane.xlu0 %1758
      %v1760 = vsub.f32 %v1744, %v1750
      %v1761 = vsub.f32 %v1745, %v1753
      %v1762 = vsub.f32 %v1746, %v1756
      %v1763 = vsub.f32 %v1747, %v1759
      %v1764 = vmul.f32 %v1760, 1.442695
      %v1765 = vpow.pop %v1764
      %v1766 = vmul.f32 %v1761, 1.442695
      %v1767 = vpow.pop %v1766
      %v1768 = vmul.f32 %v1762, 1.442695
      %v1769 = vpow.pop %v1768
      %v1770 = vmul.f32 %v1763, 1.442695
      %v1771 = vpow.pop %v1770
      %v1772 = vsel %vm1135, %v1765, 0.0
      %1773 = vadd.xlane.f32.xlu0 %v1772
      %v1774 = vpop.xlane.xlu0 %1773
      %v1775 = vsel %vm1135, %v1767, 0.0
      %1776 = vadd.xlane.f32.xlu0 %v1775
      %v1777 = vpop.xlane.xlu0 %1776
      %v1778 = vsel %vm1135, %v1769, 0.0
      %1779 = vadd.xlane.f32.xlu0 %v1778
      %v1780 = vpop.xlane.xlu0 %1779
      %v1781 = vsel %vm1135, %v1771, 0.0
      %1782 = vadd.xlane.f32.xlu0 %v1781
      %v1783 = vpop.xlane.xlu0 %1782
      %v1784 = vpack.c.bf16 %v1767, %v1765
      %v1785 = vpack.c.bf16 %v1771, %v1769
      %1786 = vrot.lane.b32.xlu0 %v1028, 112
      %v1787 = vpop.permute.xlu0 %1786
      %v1790 = vsel %vm1135, %v1784, 0
      %1792 = vmatprep.subr.bf16.mxu0 0
      %1793 = vmatpush1.bf16.msra.mxu0 0
      %1794 = vmatprep.subr.bf16.mxu0 0
      %1795 = vmatpush1.bf16.msra.mxu0 0
      %1796 = vmatprep.subr.bf16.mxu0 0
      %1797 = vmatpush1.bf16.msra.mxu0 0
      %1798 = vmatprep.subr.bf16.mxu0 0
      %1799 = vmatpush1.bf16.msra.mxu0 0
      %1800 = vmatprep.subr.bf16.mxu0 0
      %1801 = vmatpush1.bf16.msra.mxu0 0
      %1802 = vmatprep.subr.bf16.mxu0 0
      %1803 = vmatpush1.bf16.msra.mxu0 0
      %1804 = vmatprep.subr.bf16.mxu0 0
      %1805 = vmatpush1.bf16.msra.mxu0 0
      %1806 = vmatprep.subr.bf16.mxu0 0
      %1807 = vmatpush1.bf16.msra.mxu0 %v1787
      %1808 = vmatprep.subr.bf16.mxu0 0
      %1809 = vmatpush2.bf16.msra.mxu0 0
      %1810 = vmatprep.subr.bf16.mxu0 0
      %1811 = vmatpush2.bf16.msra.mxu0 0
      %1812 = vmatprep.subr.bf16.mxu0 0
      %1813 = vmatpush2.bf16.msra.mxu0 0
      %1814 = vmatprep.subr.bf16.mxu0 0
      %1815 = vmatpush2.bf16.msra.mxu0 0
      %1816 = vmatprep.subr.bf16.mxu0 0
      %1817 = vmatpush2.bf16.msra.mxu0 0
      %1818 = vmatprep.subr.bf16.mxu0 0
      %1819 = vmatpush2.bf16.msra.mxu0 0
      %1820 = vmatprep.subr.bf16.mxu0 0
      %1821 = vmatpush2.bf16.msra.mxu0 0
      %1822 = vmatprep.subr.bf16.mxu0 0
      %1823 = vmatpush2.bf16.msra.mxu0 0
      %1824 = vmatprep.mubr.bf16.mxu0 0
      %1825 = vmatmul.mubr.bf16.gmra.mxu0 %v1790
      %v1826 = vpop.f32.mrf.mxu0
      %v1827 = vadd.f32 0.0, %v1826
      %v1828 = vpop.f32.mrf.mxu0
      %v1829 = vpop.f32.mrf.mxu0
      %v1830 = vadd.f32 0.0, %v1829
      %v1831 = vpop.f32.mrf.mxu0
      %1832 = vdwg.mxu0
      %1833 = vrot.lane.b32.xlu0 %v1029, 112
      %v1834 = vpop.permute.xlu0 %1833
      %v1837 = vsel %vm1135, %v1785, 0
      %1839 = vmatprep.subr.bf16.mxu0 0
      %1840 = vmatpush1.bf16.msra.mxu0 0
      %1841 = vmatprep.subr.bf16.mxu0 0
      %1842 = vmatpush1.bf16.msra.mxu0 0
      %1843 = vmatprep.subr.bf16.mxu0 0
      %1844 = vmatpush1.bf16.msra.mxu0 0
      %1845 = vmatprep.subr.bf16.mxu0 0
      %1846 = vmatpush1.bf16.msra.mxu0 0
      %1847 = vmatprep.subr.bf16.mxu0 0
      %1848 = vmatpush1.bf16.msra.mxu0 0
      %1849 = vmatprep.subr.bf16.mxu0 0
      %1850 = vmatpush1.bf16.msra.mxu0 0
      %1851 = vmatprep.subr.bf16.mxu0 0
      %1852 = vmatpush1.bf16.msra.mxu0 0
      %1853 = vmatprep.subr.bf16.mxu0 0
      %1854 = vmatpush1.bf16.msra.mxu0 %v1834
      %1855 = vmatprep.subr.bf16.mxu0 0
      %1856 = vmatpush2.bf16.msra.mxu0 0
      %1857 = vmatprep.subr.bf16.mxu0 0
      %1858 = vmatpush2.bf16.msra.mxu0 0
      %1859 = vmatprep.subr.bf16.mxu0 0
      %1860 = vmatpush2.bf16.msra.mxu0 0
      %1861 = vmatprep.subr.bf16.mxu0 0
      %1862 = vmatpush2.bf16.msra.mxu0 0
      %1863 = vmatprep.subr.bf16.mxu0 0
      %1864 = vmatpush2.bf16.msra.mxu0 0
      %1865 = vmatprep.subr.bf16.mxu0 0
      %1866 = vmatpush2.bf16.msra.mxu0 0
      %1867 = vmatprep.subr.bf16.mxu0 0
      %1868 = vmatpush2.bf16.msra.mxu0 0
      %1869 = vmatprep.subr.bf16.mxu0 0
      %1870 = vmatpush2.bf16.msra.mxu0 0
      %1871 = vmatprep.mubr.bf16.mxu0 0
      %1872 = vmatmul.mubr.bf16.gmra.mxu0 %v1837
      %v1873 = vpop.f32.mrf.mxu0
      %v1874 = vadd.f32 0.0, %v1873
      %v1875 = vpop.f32.mrf.mxu0
      %v1876 = vpop.f32.mrf.mxu0
      %v1877 = vadd.f32 0.0, %v1876
      %v1878 = vpop.f32.mrf.mxu0
      %1879 = vdwg.mxu0
      %v1880 = vrcp.pop %v1774
      %v1881 = vmul.f32 %v1827, %v1880
      %v1882 = vrcp.pop %v1777
      %v1883 = vmul.f32 %v1830, %v1882
      %v1884 = vrcp.pop %v1780
      %v1885 = vmul.f32 %v1874, %v1884
      %v1886 = vrcp.pop %v1783
      %v1887 = vmul.f32 %v1877, %v1886
      %v1888 = vpack.c.bf16 %v1883, %v1881
      %v1889 = vpack.c.bf16 %v1887, %v1885
      %s1890 = scalar_lea.vmem %s801, 8
      %v1891 = vld [vmem:[%s1890] sm:$0xf]
      %v1893 = vsel %vm1033, %v1888, 0
      %v1896 = vsel %vm1033, %v1889, 0
      %v1899 = vsel %vm1531, %v1891, 0
      %1901 = vmatprep.subr.bf16.mxu0 0
      %1902 = vmatpush1.bf16.msra.mxu0 0
      %1903 = vmatprep.subr.bf16.mxu0 0
      %1904 = vmatpush1.bf16.msra.mxu0 0
      %1905 = vmatprep.subr.bf16.mxu0 0
      %1906 = vmatpush1.bf16.msra.mxu0 0
      %1907 = vmatprep.subr.bf16.mxu0 0
      %1908 = vmatpush1.bf16.msra.mxu0 0
      %1909 = vmatprep.subr.bf16.mxu0 0
      %1910 = vmatpush1.bf16.msra.mxu0 0
      %1911 = vmatprep.subr.bf16.mxu0 0
      %1912 = vmatpush1.bf16.msra.mxu0 0
      %1913 = vmatprep.subr.bf16.mxu0 0
      %1914 = vmatpush1.bf16.msra.mxu0 0
      %1915 = vmatprep.subr.bf16.mxu0 0
      %1916 = vmatpush1.bf16.msra.mxu0 %v1899
      %1917 = vmatprep.subr.bf16.mxu0 0
      %1918 = vmatpush2.bf16.msra.mxu0 0
      %1919 = vmatprep.subr.bf16.mxu0 0
      %1920 = vmatpush2.bf16.msra.mxu0 0
      %1921 = vmatprep.subr.bf16.mxu0 0
      %1922 = vmatpush2.bf16.msra.mxu0 0
      %1923 = vmatprep.subr.bf16.mxu0 0
      %1924 = vmatpush2.bf16.msra.mxu0 0
      %1925 = vmatprep.subr.bf16.mxu0 0
      %1926 = vmatpush2.bf16.msra.mxu0 0
      %1927 = vmatprep.subr.bf16.mxu0 0
      %1928 = vmatpush2.bf16.msra.mxu0 0
      %1929 = vmatprep.subr.bf16.mxu0 0
      %1930 = vmatpush2.bf16.msra.mxu0 0
      %1931 = vmatprep.subr.bf16.mxu0 0
      %1932 = vmatpush2.bf16.msra.mxu0 0
      %1933 = vmatprep.mubr.bf16.mxu0 0
      %1934 = vmatmul.mubr.bf16.gmra.mxu0 %v1893
      %v1935 = vpop.f32.mrf.mxu0
      %v1936 = vadd.f32 0.0, %v1935
      %v1937 = vpop.f32.mrf.mxu0
      %v1938 = vpop.f32.mrf.mxu0
      %v1939 = vadd.f32 0.0, %v1938
      %v1940 = vpop.f32.mrf.mxu0
      %1941 = vmatprep.mubr.bf16.mxu0 0
      %1942 = vmatmul.mubr.bf16.gmra.mxu0 %v1896
      %v1943 = vpop.f32.mrf.mxu0
      %v1944 = vadd.f32 0.0, %v1943
      %v1945 = vpop.f32.mrf.mxu0
      %v1946 = vpop.f32.mrf.mxu0
      %v1947 = vadd.f32 0.0, %v1946
      %v1948 = vpop.f32.mrf.mxu0
      %1949 = vdwg.mxu0
      %v1950 = vadd.f32 %v1628, %v1936
      %v1951 = vadd.f32 %v1631, %v1939
      %v1952 = vadd.f32 %v1636, %v1944
      %v1953 = vadd.f32 %v1639, %v1947
      %1954 = vrot.lane.b32.xlu0 %v1026, 104
      %v1955 = vpop.permute.xlu0 %1954
      %1956 = vrot.lane.b32.xlu0 %v1026, 72
      %v1957 = vpop.permute.xlu0 %1956
      %v1959 = vsel %vm1033, %v1955, 0
      %v1962 = vsel %vm1033, %v1957, 0
      %1964 = vmatprep.subr.bf16.mxu0 0
      %1965 = vmatpush1.bf16.xpose.msra.mxu0 0
      %1966 = vmatprep.subr.bf16.mxu0 0
      %1967 = vmatpush1.bf16.xpose.msra.mxu0 0
      %1968 = vmatprep.subr.bf16.mxu0 0
      %1969 = vmatpush1.bf16.xpose.msra.mxu0 0
      %1970 = vmatprep.subr.bf16.mxu0 0
      %1971 = vmatpush1.bf16.xpose.msra.mxu0 0
      %1972 = vmatprep.subr.bf16.mxu0 0
      %1973 = vmatpush1.bf16.xpose.msra.mxu0 0
      %1974 = vmatprep.subr.bf16.mxu0 0
      %1975 = vmatpush1.bf16.xpose.msra.mxu0 0
      %1976 = vmatprep.subr.bf16.mxu0 0
      %1977 = vmatpush1.bf16.xpose.msra.mxu0 0
      %1978 = vmatprep.subr.bf16.mxu0 0
      %1979 = vmatpush1.bf16.xpose.msra.mxu0 %v1962
      %1980 = vmatprep.subr.bf16.mxu0 0
      %1981 = vmatpush2.bf16.xpose.msra.mxu0 0
      %1982 = vmatprep.subr.bf16.mxu0 0
      %1983 = vmatpush2.bf16.xpose.msra.mxu0 0
      %1984 = vmatprep.subr.bf16.mxu0 0
      %1985 = vmatpush2.bf16.xpose.msra.mxu0 0
      %1986 = vmatprep.subr.bf16.mxu0 0
      %1987 = vmatpush2.bf16.xpose.msra.mxu0 0
      %1988 = vmatprep.subr.bf16.mxu0 0
      %1989 = vmatpush2.bf16.xpose.msra.mxu0 0
      %1990 = vmatprep.subr.bf16.mxu0 0
      %1991 = vmatpush2.bf16.xpose.msra.mxu0 0
      %1992 = vmatprep.subr.bf16.mxu0 0
      %1993 = vmatpush2.bf16.xpose.msra.mxu0 0
      %1994 = vmatprep.subr.bf16.mxu0 0
      %1995 = vmatpush2.bf16.xpose.msra.mxu0 0
      %1996 = vmatprep.mubr.bf16.mxu0 0
      %1997 = vmatmul.mubr.bf16.gmra.mxu0 %v1959
      %v1998 = vpop.f32.mrf.mxu0
      %v1999 = vadd.f32 0.0, %v1998
      %v2000 = vpop.f32.mrf.mxu0
      %v2001 = vpop.f32.mrf.mxu0
      %v2002 = vadd.f32 0.0, %v2001
      %v2003 = vpop.f32.mrf.mxu0
      %2004 = vdwg.mxu0
      %2005 = vrot.lane.b32.xlu0 %v1027, 104
      %v2006 = vpop.permute.xlu0 %2005
      %2007 = vrot.lane.b32.xlu0 %v1027, 72
      %v2008 = vpop.permute.xlu0 %2007
      %v2010 = vsel %vm1033, %v2006, 0
      %v2013 = vsel %vm1033, %v2008, 0
      %2015 = vmatprep.subr.bf16.mxu0 0
      %2016 = vmatpush1.bf16.xpose.msra.mxu0 0
      %2017 = vmatprep.subr.bf16.mxu0 0
      %2018 = vmatpush1.bf16.xpose.msra.mxu0 0
      %2019 = vmatprep.subr.bf16.mxu0 0
      %2020 = vmatpush1.bf16.xpose.msra.mxu0 0
      %2021 = vmatprep.subr.bf16.mxu0 0
      %2022 = vmatpush1.bf16.xpose.msra.mxu0 0
      %2023 = vmatprep.subr.bf16.mxu0 0
      %2024 = vmatpush1.bf16.xpose.msra.mxu0 0
      %2025 = vmatprep.subr.bf16.mxu0 0
      %2026 = vmatpush1.bf16.xpose.msra.mxu0 0
      %2027 = vmatprep.subr.bf16.mxu0 0
      %2028 = vmatpush1.bf16.xpose.msra.mxu0 0
      %2029 = vmatprep.subr.bf16.mxu0 0
      %2030 = vmatpush1.bf16.xpose.msra.mxu0 %v2013
      %2031 = vmatprep.subr.bf16.mxu0 0
      %2032 = vmatpush2.bf16.xpose.msra.mxu0 0
      %2033 = vmatprep.subr.bf16.mxu0 0
      %2034 = vmatpush2.bf16.xpose.msra.mxu0 0
      %2035 = vmatprep.subr.bf16.mxu0 0
      %2036 = vmatpush2.bf16.xpose.msra.mxu0 0
      %2037 = vmatprep.subr.bf16.mxu0 0
      %2038 = vmatpush2.bf16.xpose.msra.mxu0 0
      %2039 = vmatprep.subr.bf16.mxu0 0
      %2040 = vmatpush2.bf16.xpose.msra.mxu0 0
      %2041 = vmatprep.subr.bf16.mxu0 0
      %2042 = vmatpush2.bf16.xpose.msra.mxu0 0
      %2043 = vmatprep.subr.bf16.mxu0 0
      %2044 = vmatpush2.bf16.xpose.msra.mxu0 0
      %2045 = vmatprep.subr.bf16.mxu0 0
      %2046 = vmatpush2.bf16.xpose.msra.mxu0 0
      %2047 = vmatprep.mubr.bf16.mxu0 0
      %2048 = vmatmul.mubr.bf16.gmra.mxu0 %v2010
      %v2049 = vpop.f32.mrf.mxu0
      %v2050 = vadd.f32 0.0, %v2049
      %v2051 = vpop.f32.mrf.mxu0
      %v2052 = vpop.f32.mrf.mxu0
      %v2053 = vadd.f32 0.0, %v2052
      %v2054 = vpop.f32.mrf.mxu0
      %2055 = vdwg.mxu0
      %v2056 = vmul.f32 %v1999, 0.35355338
      %v2057 = vmul.f32 %v2002, 0.35355338
      %v2058 = vmul.f32 %v2050, 0.35355338
      %v2059 = vmul.f32 %v2053, 0.35355338
      %v2060 = vsel %vm1135, %v2056, -inf
      %2061 = vmax.xlane.f32.xlu0 %v2060
      %v2062 = vpop.xlane.xlu0 %2061
      %v2063 = vsel %vm1135, %v2057, -inf
      %2064 = vmax.xlane.f32.xlu0 %v2063
      %v2065 = vpop.xlane.xlu0 %2064
      %v2066 = vsel %vm1135, %v2058, -inf
      %2067 = vmax.xlane.f32.xlu0 %v2066
      %v2068 = vpop.xlane.xlu0 %2067
      %v2069 = vsel %vm1135, %v2059, -inf
      %2070 = vmax.xlane.f32.xlu0 %v2069
      %v2071 = vpop.xlane.xlu0 %2070
      %v2072 = vsub.f32 %v2056, %v2062
      %v2073 = vsub.f32 %v2057, %v2065
      %v2074 = vsub.f32 %v2058, %v2068
      %v2075 = vsub.f32 %v2059, %v2071
      %v2076 = vmul.f32 %v2072, 1.442695
      %v2077 = vpow.pop %v2076
      %v2078 = vmul.f32 %v2073, 1.442695
      %v2079 = vpow.pop %v2078
      %v2080 = vmul.f32 %v2074, 1.442695
      %v2081 = vpow.pop %v2080
      %v2082 = vmul.f32 %v2075, 1.442695
      %v2083 = vpow.pop %v2082
      %v2084 = vsel %vm1135, %v2077, 0.0
      %2085 = vadd.xlane.f32.xlu0 %v2084
      %v2086 = vpop.xlane.xlu0 %2085
      %v2087 = vsel %vm1135, %v2079, 0.0
      %2088 = vadd.xlane.f32.xlu0 %v2087
      %v2089 = vpop.xlane.xlu0 %2088
      %v2090 = vsel %vm1135, %v2081, 0.0
      %2091 = vadd.xlane.f32.xlu0 %v2090
      %v2092 = vpop.xlane.xlu0 %2091
      %v2093 = vsel %vm1135, %v2083, 0.0
      %2094 = vadd.xlane.f32.xlu0 %v2093
      %v2095 = vpop.xlane.xlu0 %2094
      %v2096 = vpack.c.bf16 %v2079, %v2077
      %v2097 = vpack.c.bf16 %v2083, %v2081
      %2098 = vrot.lane.b32.xlu0 %v1028, 104
      %v2099 = vpop.permute.xlu0 %2098
      %v2102 = vsel %vm1135, %v2096, 0
      %2104 = vmatprep.subr.bf16.mxu0 0
      %2105 = vmatpush1.bf16.msra.mxu0 0
      %2106 = vmatprep.subr.bf16.mxu0 0
      %2107 = vmatpush1.bf16.msra.mxu0 0
      %2108 = vmatprep.subr.bf16.mxu0 0
      %2109 = vmatpush1.bf16.msra.mxu0 0
      %2110 = vmatprep.subr.bf16.mxu0 0
      %2111 = vmatpush1.bf16.msra.mxu0 0
      %2112 = vmatprep.subr.bf16.mxu0 0
      %2113 = vmatpush1.bf16.msra.mxu0 0
      %2114 = vmatprep.subr.bf16.mxu0 0
      %2115 = vmatpush1.bf16.msra.mxu0 0
      %2116 = vmatprep.subr.bf16.mxu0 0
      %2117 = vmatpush1.bf16.msra.mxu0 0
      %2118 = vmatprep.subr.bf16.mxu0 0
      %2119 = vmatpush1.bf16.msra.mxu0 %v2099
      %2120 = vmatprep.subr.bf16.mxu0 0
      %2121 = vmatpush2.bf16.msra.mxu0 0
      %2122 = vmatprep.subr.bf16.mxu0 0
      %2123 = vmatpush2.bf16.msra.mxu0 0
      %2124 = vmatprep.subr.bf16.mxu0 0
      %2125 = vmatpush2.bf16.msra.mxu0 0
      %2126 = vmatprep.subr.bf16.mxu0 0
      %2127 = vmatpush2.bf16.msra.mxu0 0
      %2128 = vmatprep.subr.bf16.mxu0 0
      %2129 = vmatpush2.bf16.msra.mxu0 0
      %2130 = vmatprep.subr.bf16.mxu0 0
      %2131 = vmatpush2.bf16.msra.mxu0 0
      %2132 = vmatprep.subr.bf16.mxu0 0
      %2133 = vmatpush2.bf16.msra.mxu0 0
      %2134 = vmatprep.subr.bf16.mxu0 0
      %2135 = vmatpush2.bf16.msra.mxu0 0
      %2136 = vmatprep.mubr.bf16.mxu0 0
      %2137 = vmatmul.mubr.bf16.gmra.mxu0 %v2102
      %v2138 = vpop.f32.mrf.mxu0
      %v2139 = vadd.f32 0.0, %v2138
      %v2140 = vpop.f32.mrf.mxu0
      %v2141 = vpop.f32.mrf.mxu0
      %v2142 = vadd.f32 0.0, %v2141
      %v2143 = vpop.f32.mrf.mxu0
      %2144 = vdwg.mxu0
      %2145 = vrot.lane.b32.xlu0 %v1029, 104
      %v2146 = vpop.permute.xlu0 %2145
      %v2149 = vsel %vm1135, %v2097, 0
      %2151 = vmatprep.subr.bf16.mxu0 0
      %2152 = vmatpush1.bf16.msra.mxu0 0
      %2153 = vmatprep.subr.bf16.mxu0 0
      %2154 = vmatpush1.bf16.msra.mxu0 0
      %2155 = vmatprep.subr.bf16.mxu0 0
      %2156 = vmatpush1.bf16.msra.mxu0 0
      %2157 = vmatprep.subr.bf16.mxu0 0
      %2158 = vmatpush1.bf16.msra.mxu0 0
      %2159 = vmatprep.subr.bf16.mxu0 0
      %2160 = vmatpush1.bf16.msra.mxu0 0
      %2161 = vmatprep.subr.bf16.mxu0 0
      %2162 = vmatpush1.bf16.msra.mxu0 0
      %2163 = vmatprep.subr.bf16.mxu0 0
      %2164 = vmatpush1.bf16.msra.mxu0 0
      %2165 = vmatprep.subr.bf16.mxu0 0
      %2166 = vmatpush1.bf16.msra.mxu0 %v2146
      %2167 = vmatprep.subr.bf16.mxu0 0
      %2168 = vmatpush2.bf16.msra.mxu0 0
      %2169 = vmatprep.subr.bf16.mxu0 0
      %2170 = vmatpush2.bf16.msra.mxu0 0
      %2171 = vmatprep.subr.bf16.mxu0 0
      %2172 = vmatpush2.bf16.msra.mxu0 0
      %2173 = vmatprep.subr.bf16.mxu0 0
      %2174 = vmatpush2.bf16.msra.mxu0 0
      %2175 = vmatprep.subr.bf16.mxu0 0
      %2176 = vmatpush2.bf16.msra.mxu0 0
      %2177 = vmatprep.subr.bf16.mxu0 0
      %2178 = vmatpush2.bf16.msra.mxu0 0
      %2179 = vmatprep.subr.bf16.mxu0 0
      %2180 = vmatpush2.bf16.msra.mxu0 0
      %2181 = vmatprep.subr.bf16.mxu0 0
      %2182 = vmatpush2.bf16.msra.mxu0 0
      %2183 = vmatprep.mubr.bf16.mxu0 0
      %2184 = vmatmul.mubr.bf16.gmra.mxu0 %v2149
      %v2185 = vpop.f32.mrf.mxu0
      %v2186 = vadd.f32 0.0, %v2185
      %v2187 = vpop.f32.mrf.mxu0
      %v2188 = vpop.f32.mrf.mxu0
      %v2189 = vadd.f32 0.0, %v2188
      %v2190 = vpop.f32.mrf.mxu0
      %2191 = vdwg.mxu0
      %v2192 = vrcp.pop %v2086
      %v2193 = vmul.f32 %v2139, %v2192
      %v2194 = vrcp.pop %v2089
      %v2195 = vmul.f32 %v2142, %v2194
      %v2196 = vrcp.pop %v2092
      %v2197 = vmul.f32 %v2186, %v2196
      %v2198 = vrcp.pop %v2095
      %v2199 = vmul.f32 %v2189, %v2198
      %v2200 = vpack.c.bf16 %v2195, %v2193
      %v2201 = vpack.c.bf16 %v2199, %v2197
      %s2202 = scalar_lea.vmem %s801, 12
      %v2203 = vld [vmem:[%s2202] sm:$0xf]
      %v2205 = vsel %vm1033, %v2200, 0
      %v2208 = vsel %vm1033, %v2201, 0
      %v2211 = vsel %vm1531, %v2203, 0
      %2213 = vmatprep.subr.bf16.mxu0 0
      %2214 = vmatpush1.bf16.msra.mxu0 0
      %2215 = vmatprep.subr.bf16.mxu0 0
      %2216 = vmatpush1.bf16.msra.mxu0 0
      %2217 = vmatprep.subr.bf16.mxu0 0
      %2218 = vmatpush1.bf16.msra.mxu0 0
      %2219 = vmatprep.subr.bf16.mxu0 0
      %2220 = vmatpush1.bf16.msra.mxu0 0
      %2221 = vmatprep.subr.bf16.mxu0 0
      %2222 = vmatpush1.bf16.msra.mxu0 0
      %2223 = vmatprep.subr.bf16.mxu0 0
      %2224 = vmatpush1.bf16.msra.mxu0 0
      %2225 = vmatprep.subr.bf16.mxu0 0
      %2226 = vmatpush1.bf16.msra.mxu0 0
      %2227 = vmatprep.subr.bf16.mxu0 0
      %2228 = vmatpush1.bf16.msra.mxu0 %v2211
      %2229 = vmatprep.subr.bf16.mxu0 0
      %2230 = vmatpush2.bf16.msra.mxu0 0
      %2231 = vmatprep.subr.bf16.mxu0 0
      %2232 = vmatpush2.bf16.msra.mxu0 0
      %2233 = vmatprep.subr.bf16.mxu0 0
      %2234 = vmatpush2.bf16.msra.mxu0 0
      %2235 = vmatprep.subr.bf16.mxu0 0
      %2236 = vmatpush2.bf16.msra.mxu0 0
      %2237 = vmatprep.subr.bf16.mxu0 0
      %2238 = vmatpush2.bf16.msra.mxu0 0
      %2239 = vmatprep.subr.bf16.mxu0 0
      %2240 = vmatpush2.bf16.msra.mxu0 0
      %2241 = vmatprep.subr.bf16.mxu0 0
      %2242 = vmatpush2.bf16.msra.mxu0 0
      %2243 = vmatprep.subr.bf16.mxu0 0
      %2244 = vmatpush2.bf16.msra.mxu0 0
      %2245 = vmatprep.mubr.bf16.mxu0 0
      %2246 = vmatmul.mubr.bf16.gmra.mxu0 %v2205
      %v2247 = vpop.f32.mrf.mxu0
      %v2248 = vadd.f32 0.0, %v2247
      %v2249 = vpop.f32.mrf.mxu0
      %v2250 = vpop.f32.mrf.mxu0
      %v2251 = vadd.f32 0.0, %v2250
      %v2252 = vpop.f32.mrf.mxu0
      %2253 = vmatprep.mubr.bf16.mxu0 0
      %2254 = vmatmul.mubr.bf16.gmra.mxu0 %v2208
      %v2255 = vpop.f32.mrf.mxu0
      %v2256 = vadd.f32 0.0, %v2255
      %v2257 = vpop.f32.mrf.mxu0
      %v2258 = vpop.f32.mrf.mxu0
      %v2259 = vadd.f32 0.0, %v2258
      %v2260 = vpop.f32.mrf.mxu0
      %2261 = vdwg.mxu0
      %v2262 = vadd.f32 %v1950, %v2248
      %v2263 = vadd.f32 %v1951, %v2251
      %v2264 = vadd.f32 %v1952, %v2256
      %v2265 = vadd.f32 %v1953, %v2259
      %v2266 = vld [vmem:[%s804] sm:$0x1]
      %v2268 = vlaneseq
      %v2269 = vshrl.u32 %v2268, 7
      %v2270 = vsub.s32 0, %v2269
      %v2271 = vrot.slane %v2266, %v2270
      %v2273 = vadd.f32 %v2262, %v2271
      %v2274 = vadd.f32 %v2263, %v2271
      %v2275 = vadd.f32 %v2264, %v2271
      %v2276 = vadd.f32 %v2265, %v2271
      %v2277 = vadd.f32 %v853, %v2273
      %v2278 = vadd.f32 %v854, %v2274
      %v2279 = vadd.f32 %v855, %v2275
      %v2280 = vadd.f32 %v856, %v2276
      %v2281 = vld [vmem:[%s807] sm:$0x1]
      %v2282 = vld [vmem:[%s810] sm:$0x1]
      %v2283 = vsel %vm890, %v2277, 0.0
      %2284 = vadd.xlane.f32.xlu0 %v2283
      %v2285 = vpop.xlane.xlu0 %2284
      %v2286 = vsel %vm890, %v2278, 0.0
      %2287 = vadd.xlane.f32.xlu0 %v2286
      %v2288 = vpop.xlane.xlu0 %2287
      %v2289 = vsel %vm890, %v2279, 0.0
      %2290 = vadd.xlane.f32.xlu0 %v2289
      %v2291 = vpop.xlane.xlu0 %2290
      %v2292 = vsel %vm890, %v2280, 0.0
      %2293 = vadd.xlane.f32.xlu0 %v2292
      %v2294 = vpop.xlane.xlu0 %2293
      %v2295 = vrcp.pop 32.0
      %v2296 = vmul.f32 %v2285, %v2295
      %v2297 = vmul.f32 %v2288, %v2295
      %v2298 = vmul.f32 %v2291, %v2295
      %v2299 = vmul.f32 %v2294, %v2295
      %v2300 = vsub.f32 %v2277, %v2296
      %v2301 = vsub.f32 %v2278, %v2297
      %v2302 = vsub.f32 %v2279, %v2298
      %v2303 = vsub.f32 %v2280, %v2299
      %v2304 = vmul.f32 %v2300, %v2300
      %v2305 = vmul.f32 %v2301, %v2301
      %v2306 = vmul.f32 %v2302, %v2302
      %v2307 = vmul.f32 %v2303, %v2303
      %v2308 = vsel %vm890, %v2304, 0.0
      %2309 = vadd.xlane.f32.xlu0 %v2308
      %v2310 = vpop.xlane.xlu0 %2309
      %v2311 = vsel %vm890, %v2305, 0.0
      %2312 = vadd.xlane.f32.xlu0 %v2311
      %v2313 = vpop.xlane.xlu0 %2312
      %v2314 = vsel %vm890, %v2306, 0.0
      %2315 = vadd.xlane.f32.xlu0 %v2314
      %v2316 = vpop.xlane.xlu0 %2315
      %v2317 = vsel %vm890, %v2307, 0.0
      %2318 = vadd.xlane.f32.xlu0 %v2317
      %v2319 = vpop.xlane.xlu0 %2318
      %v2320 = vmul.f32 %v2310, %v2295
      %v2321 = vmul.f32 %v2313, %v2295
      %v2322 = vmul.f32 %v2316, %v2295
      %v2323 = vmul.f32 %v2319, %v2295
      %v2324 = vadd.f32 %v2320, 1e-05
      %v2325 = vadd.f32 %v2321, 1e-05
      %v2326 = vadd.f32 %v2322, 1e-05
      %v2327 = vadd.f32 %v2323, 1e-05
      %v2328 = vrsqrt.pop %v2324
      %v2329 = vrsqrt.pop %v2325
      %v2330 = vrsqrt.pop %v2326
      %v2331 = vrsqrt.pop %v2327
      %v2332 = vmul.f32 %v2300, %v2328
      %v2333 = vmul.f32 %v2301, %v2329
      %v2334 = vmul.f32 %v2302, %v2330
      %v2335 = vmul.f32 %v2303, %v2331
      %v2337 = vlaneseq
      %v2338 = vshrl.u32 %v2337, 7
      %v2339 = vsub.s32 0, %v2338
      %v2340 = vrot.slane %v2281, %v2339
      %v2342 = vmul.f32 %v2332, %v2340
      %v2343 = vmul.f32 %v2333, %v2340
      %v2344 = vmul.f32 %v2334, %v2340
      %v2345 = vmul.f32 %v2335, %v2340
      %v2347 = vlaneseq
      %v2348 = vshrl.u32 %v2347, 7
      %v2349 = vsub.s32 0, %v2348
      %v2350 = vrot.slane %v2282, %v2349
      %v2352 = vadd.f32 %v2342, %v2350
      %v2353 = vadd.f32 %v2343, %v2350
      %v2354 = vadd.f32 %v2344, %v2350
      %v2355 = vadd.f32 %v2345, %v2350
      %v2356 = vpack.c.bf16 %v2353, %v2352
      %v2357 = vpack.c.bf16 %v2355, %v2354
      %v2358 = vld [vmem:[%s815] sm:$0xf]
      %v2359 = vld [vmem:[%s815 + $0x4] sm:$0xf]
      %v2360 = vld [vmem:[%s815 + $0x8] sm:$0xf]
      %v2361 = vld [vmem:[%s815 + $0xc] sm:$0xf]
      %v2362 = vld [vmem:[%s818] sm:$0x1]
      %v2364 = vlaneseq
      %v2365 = vshrl.u32 %v2364, 7
      %v2366 = vsub.s32 0, %v2365
      %v2367 = vrot.slane %v2362, %v2366
      %v2373 = vunpack.c.l.b16 %v2358
      %v2374 = vunpack.c.l.b16 %v2359
      %v2375 = vunpack.c.l.b16 %v2360
      %v2376 = vunpack.c.l.b16 %v2361
      %v2377 = vpack.c.b16 %v2374, %v2373
      %v2378 = vpack.c.b16 %v2376, %v2375
      %v2382 = vsel %vm890, %v2356, 0
      %v2385 = vsel %vm890, %v2357, 0
      %2387 = vmatprep.subr.bf16.mxu0 0
      %2388 = vmatpush1.bf16.msra.mxu0 0
      %2389 = vmatprep.subr.bf16.mxu0 0
      %2390 = vmatpush1.bf16.msra.mxu0 0
      %2391 = vmatprep.subr.bf16.mxu0 0
      %2392 = vmatpush1.bf16.msra.mxu0 0
      %2393 = vmatprep.subr.bf16.mxu0 0
      %2394 = vmatpush1.bf16.msra.mxu0 0
      %2395 = vmatprep.subr.bf16.mxu0 0
      %2396 = vmatpush1.bf16.msra.mxu0 0
      %2397 = vmatprep.subr.bf16.mxu0 0
      %2398 = vmatpush1.bf16.msra.mxu0 0
      %2399 = vmatprep.subr.bf16.mxu0 0
      %2400 = vmatpush1.bf16.msra.mxu0 %v2378
      %2401 = vmatprep.subr.bf16.mxu0 0
      %2402 = vmatpush1.bf16.msra.mxu0 %v2377
      %2403 = vmatprep.subr.bf16.mxu0 0
      %2404 = vmatpush2.bf16.msra.mxu0 0
      %2405 = vmatprep.subr.bf16.mxu0 0
      %2406 = vmatpush2.bf16.msra.mxu0 0
      %2407 = vmatprep.subr.bf16.mxu0 0
      %2408 = vmatpush2.bf16.msra.mxu0 0
      %2409 = vmatprep.subr.bf16.mxu0 0
      %2410 = vmatpush2.bf16.msra.mxu0 0
      %2411 = vmatprep.subr.bf16.mxu0 0
      %2412 = vmatpush2.bf16.msra.mxu0 0
      %2413 = vmatprep.subr.bf16.mxu0 0
      %2414 = vmatpush2.bf16.msra.mxu0 0
      %2415 = vmatprep.subr.bf16.mxu0 0
      %2416 = vmatpush2.bf16.msra.mxu0 0
      %2417 = vmatprep.subr.bf16.mxu0 0
      %2418 = vmatpush2.bf16.msra.mxu0 0
      %2419 = vmatprep.mubr.bf16.mxu0 0
      %2420 = vmatmul.mubr.bf16.gmra.mxu0 %v2382
      %v2421 = vpop.f32.mrf.mxu0
      %v2422 = vadd.f32 %v2367, %v2421
      %v2423 = vpop.f32.mrf.mxu0
      %v2424 = vpop.f32.mrf.mxu0
      %v2425 = vadd.f32 %v2367, %v2424
      %v2426 = vpop.f32.mrf.mxu0
      %2427 = vmatprep.mubr.bf16.mxu0 0
      %2428 = vmatmul.mubr.bf16.gmra.mxu0 %v2385
      %v2429 = vpop.f32.mrf.mxu0
      %v2430 = vadd.f32 %v2367, %v2429
      %v2431 = vpop.f32.mrf.mxu0
      %v2432 = vpop.f32.mrf.mxu0
      %v2433 = vadd.f32 %v2367, %v2432
      %v2434 = vpop.f32.mrf.mxu0
      %2435 = vdwg.mxu0
      %v2436 = vmax.f32 %v2422, 0.0
      %v2437 = vmax.f32 %v2425, 0.0
      %v2438 = vmax.f32 %v2430, 0.0
      %v2439 = vmax.f32 %v2433, 0.0
      %v2440 = vpack.c.bf16 %v2437, %v2436
      %v2441 = vpack.c.bf16 %v2439, %v2438
      %v2442 = vld [vmem:[%s823] sm:$0xf]
      %v2443 = vld [vmem:[%s823 + $0x4] sm:$0xf]
      %v2444 = vld [vmem:[%s823 + $0x8] sm:$0xf]
      %v2445 = vld [vmem:[%s823 + $0xc] sm:$0xf]
      %v2446 = vld [vmem:[%s823 + $0x10] sm:$0xf]
      %v2447 = vld [vmem:[%s823 + $0x14] sm:$0xf]
      %v2448 = vld [vmem:[%s823 + $0x18] sm:$0xf]
      %v2449 = vld [vmem:[%s823 + $0x1c] sm:$0xf]
      %v2450 = vld [vmem:[%s826] sm:$0x1]
      %v2452 = vlaneseq
      %v2453 = vshrl.u32 %v2452, 7
      %v2454 = vsub.s32 0, %v2453
      %v2455 = vrot.slane %v2450, %v2454
      %v2465 = vunpack.c.l.b16 %v2442
      %v2466 = vunpack.c.l.b16 %v2443
      %v2467 = vunpack.c.l.b16 %v2444
      %v2468 = vunpack.c.l.b16 %v2445
      %v2469 = vunpack.c.l.b16 %v2446
      %v2470 = vunpack.c.l.b16 %v2447
      %v2471 = vunpack.c.l.b16 %v2448
      %v2472 = vunpack.c.l.b16 %v2449
      %v2473 = vpack.c.b16 %v2466, %v2465
      %v2474 = vpack.c.b16 %v2468, %v2467
      %v2475 = vpack.c.b16 %v2470, %v2469
      %v2476 = vpack.c.b16 %v2472, %v2471
      %vm2481 = vcmask 523264
      %v2483 = vsel %vm2481, %v2440, 0
      %v2486 = vsel %vm2481, %v2441, 0
      %2488 = vmatprep.subr.bf16.mxu0 0
      %2489 = vmatpush1.bf16.msra.mxu0 0
      %2490 = vmatprep.subr.bf16.mxu0 0
      %2491 = vmatpush1.bf16.msra.mxu0 0
      %2492 = vmatprep.subr.bf16.mxu0 0
      %2493 = vmatpush1.bf16.msra.mxu0 0
      %2494 = vmatprep.subr.bf16.mxu0 0
      %2495 = vmatpush1.bf16.msra.mxu0 0
      %2496 = vmatprep.subr.bf16.mxu0 0
      %2497 = vmatpush1.bf16.msra.mxu0 %v2476
      %2498 = vmatprep.subr.bf16.mxu0 0
      %2499 = vmatpush1.bf16.msra.mxu0 %v2475
      %2500 = vmatprep.subr.bf16.mxu0 0
      %2501 = vmatpush1.bf16.msra.mxu0 %v2474
      %2502 = vmatprep.subr.bf16.mxu0 0
      %2503 = vmatpush1.bf16.msra.mxu0 %v2473
      %2504 = vmatprep.subr.bf16.mxu0 0
      %2505 = vmatpush2.bf16.msra.mxu0 0
      %2506 = vmatprep.subr.bf16.mxu0 0
      %2507 = vmatpush2.bf16.msra.mxu0 0
      %2508 = vmatprep.subr.bf16.mxu0 0
      %2509 = vmatpush2.bf16.msra.mxu0 0
      %2510 = vmatprep.subr.bf16.mxu0 0
      %2511 = vmatpush2.bf16.msra.mxu0 0
      %2512 = vmatprep.subr.bf16.mxu0 0
      %2513 = vmatpush2.bf16.msra.mxu0 0
      %2514 = vmatprep.subr.bf16.mxu0 0
      %2515 = vmatpush2.bf16.msra.mxu0 0
      %2516 = vmatprep.subr.bf16.mxu0 0
      %2517 = vmatpush2.bf16.msra.mxu0 0
      %2518 = vmatprep.subr.bf16.mxu0 0
      %2519 = vmatpush2.bf16.msra.mxu0 0
      %2520 = vmatprep.mubr.bf16.mxu0 0
      %2521 = vmatmul.mubr.bf16.gmra.mxu0 %v2483
      %v2522 = vpop.f32.mrf.mxu0
      %v2523 = vadd.f32 %v2455, %v2522
      %v2524 = vpop.f32.mrf.mxu0
      %v2525 = vpop.f32.mrf.mxu0
      %v2526 = vadd.f32 %v2455, %v2525
      %v2527 = vpop.f32.mrf.mxu0
      %2528 = vmatprep.mubr.bf16.mxu0 0
      %2529 = vmatmul.mubr.bf16.gmra.mxu0 %v2486
      %v2530 = vpop.f32.mrf.mxu0
      %v2531 = vadd.f32 %v2455, %v2530
      %v2532 = vpop.f32.mrf.mxu0
      %v2533 = vpop.f32.mrf.mxu0
      %v2534 = vadd.f32 %v2455, %v2533
      %v2535 = vpop.f32.mrf.mxu0
      %2536 = vdwg.mxu0
      %v2537 = vadd.f32 %v2352, %v2523
      %v2538 = vadd.f32 %v2353, %v2526
      %v2539 = vadd.f32 %v2354, %v2531
      %v2540 = vadd.f32 %v2355, %v2534
      %v2541 = vld [vmem:[%s829] sm:$0x1]
      %v2542 = vld [vmem:[%s832] sm:$0x1]
      %v2543 = vsel %vm890, %v2537, 0.0
      %2544 = vadd.xlane.f32.xlu0 %v2543
      %v2545 = vpop.xlane.xlu0 %2544
      %v2546 = vsel %vm890, %v2538, 0.0
      %2547 = vadd.xlane.f32.xlu0 %v2546
      %v2548 = vpop.xlane.xlu0 %2547
      %v2549 = vsel %vm890, %v2539, 0.0
      %2550 = vadd.xlane.f32.xlu0 %v2549
      %v2551 = vpop.xlane.xlu0 %2550
      %v2552 = vsel %vm890, %v2540, 0.0
      %2553 = vadd.xlane.f32.xlu0 %v2552
      %v2554 = vpop.xlane.xlu0 %2553
      %v2555 = vmul.f32 %v2545, %v2295
      %v2556 = vmul.f32 %v2548, %v2295
      %v2557 = vmul.f32 %v2551, %v2295
      %v2558 = vmul.f32 %v2554, %v2295
      %v2559 = vsub.f32 %v2537, %v2555
      %v2560 = vsub.f32 %v2538, %v2556
      %v2561 = vsub.f32 %v2539, %v2557
      %v2562 = vsub.f32 %v2540, %v2558
      %v2563 = vmul.f32 %v2559, %v2559
      %v2564 = vmul.f32 %v2560, %v2560
      %v2565 = vmul.f32 %v2561, %v2561
      %v2566 = vmul.f32 %v2562, %v2562
      %v2567 = vsel %vm890, %v2563, 0.0
      %2568 = vadd.xlane.f32.xlu0 %v2567
      %v2569 = vpop.xlane.xlu0 %2568
      %v2570 = vsel %vm890, %v2564, 0.0
      %2571 = vadd.xlane.f32.xlu0 %v2570
      %v2572 = vpop.xlane.xlu0 %2571
      %v2573 = vsel %vm890, %v2565, 0.0
      %2574 = vadd.xlane.f32.xlu0 %v2573
      %v2575 = vpop.xlane.xlu0 %2574
      %v2576 = vsel %vm890, %v2566, 0.0
      %2577 = vadd.xlane.f32.xlu0 %v2576
      %v2578 = vpop.xlane.xlu0 %2577
      %v2579 = vmul.f32 %v2569, %v2295
      %v2580 = vmul.f32 %v2572, %v2295
      %v2581 = vmul.f32 %v2575, %v2295
      %v2582 = vmul.f32 %v2578, %v2295
      %v2583 = vadd.f32 %v2579, 1e-05
      %v2584 = vadd.f32 %v2580, 1e-05
      %v2585 = vadd.f32 %v2581, 1e-05
      %v2586 = vadd.f32 %v2582, 1e-05
      %v2587 = vrsqrt.pop %v2583
      %v2588 = vrsqrt.pop %v2584
      %v2589 = vrsqrt.pop %v2585
      %v2590 = vrsqrt.pop %v2586
      %v2591 = vmul.f32 %v2559, %v2587
      %v2592 = vmul.f32 %v2560, %v2588
      %v2593 = vmul.f32 %v2561, %v2589
      %v2594 = vmul.f32 %v2562, %v2590
      %v2596 = vlaneseq
      %v2597 = vshrl.u32 %v2596, 7
      %v2598 = vsub.s32 0, %v2597
      %v2599 = vrot.slane %v2541, %v2598
      %v2601 = vmul.f32 %v2591, %v2599
      %v2602 = vmul.f32 %v2592, %v2599
      %v2603 = vmul.f32 %v2593, %v2599
      %v2604 = vmul.f32 %v2594, %v2599
      %v2606 = vlaneseq
      %v2607 = vshrl.u32 %v2606, 7
      %v2608 = vsub.s32 0, %v2607
      %v2609 = vrot.slane %v2542, %v2608
      %v2611 = vadd.f32 %v2601, %v2609
      %v2612 = vadd.f32 %v2602, %v2609
      %v2613 = vadd.f32 %v2603, %v2609
      %v2614 = vadd.f32 %v2604, %v2609
      %2615 = vst.msk [vmem:[#allocation2] sm:$0xff] %vm890, %v2611
      %2616 = vst.msk [vmem:[#allocation2 + $0x8] sm:$0xff] %vm890, %v2612
      %2617 = vst.msk [vmem:[#allocation2 + $0x10] sm:$0xff] %vm890, %v2613
      %2618 = vst.msk [vmem:[#allocation2 + $0x18] sm:$0xff] %vm890, %v2614
      %p2619 = scmp.eq.s32.totalorder %s34, 1
      // Predicated region
      $region97: #{transformer_encoder_forward.1} parent=91 // pred_check
        %p2620 = pneg %p2619
      $region98: #{transformer_encoder_forward.1} parent=91 // pred_check_branch
        %2622 = sbr.rel (%p2620) target = $region100
      $region99: #{transformer_encoder_forward.1} parent=91 // pred_region
        %v2623 = vld [vmem:[%s16] sm:$0x1]
        %v2624 = vld [vmem:[%s17] sm:$0x1]
        %v2625 = vsel %vm890, %v2611, 0.0
        %2626 = vadd.xlane.f32.xlu0 %v2625
        %v2627 = vpop.xlane.xlu0 %2626
        %v2628 = vsel %vm890, %v2612, 0.0
        %2629 = vadd.xlane.f32.xlu0 %v2628
        %v2630 = vpop.xlane.xlu0 %2629
        %v2631 = vsel %vm890, %v2613, 0.0
        %2632 = vadd.xlane.f32.xlu0 %v2631
        %v2633 = vpop.xlane.xlu0 %2632
        %v2634 = vsel %vm890, %v2614, 0.0
        %2635 = vadd.xlane.f32.xlu0 %v2634
        %v2636 = vpop.xlane.xlu0 %2635
        %v2637 = vmul.f32 %v2627, %v2295
        %v2638 = vmul.f32 %v2630, %v2295
        %v2639 = vmul.f32 %v2633, %v2295
        %v2640 = vmul.f32 %v2636, %v2295
        %v2641 = vsub.f32 %v2611, %v2637
        %v2642 = vsub.f32 %v2612, %v2638
        %v2643 = vsub.f32 %v2613, %v2639
        %v2644 = vsub.f32 %v2614, %v2640
        %v2645 = vmul.f32 %v2641, %v2641
        %v2646 = vmul.f32 %v2642, %v2642
        %v2647 = vmul.f32 %v2643, %v2643
        %v2648 = vmul.f32 %v2644, %v2644
        %v2649 = vsel %vm890, %v2645, 0.0
        %2650 = vadd.xlane.f32.xlu0 %v2649
        %v2651 = vpop.xlane.xlu0 %2650
        %v2652 = vsel %vm890, %v2646, 0.0
        %2653 = vadd.xlane.f32.xlu0 %v2652
        %v2654 = vpop.xlane.xlu0 %2653
        %v2655 = vsel %vm890, %v2647, 0.0
        %2656 = vadd.xlane.f32.xlu0 %v2655
        %v2657 = vpop.xlane.xlu0 %2656
        %v2658 = vsel %vm890, %v2648, 0.0
        %2659 = vadd.xlane.f32.xlu0 %v2658
        %v2660 = vpop.xlane.xlu0 %2659
        %v2661 = vmul.f32 %v2651, %v2295
        %v2662 = vmul.f32 %v2654, %v2295
        %v2663 = vmul.f32 %v2657, %v2295
        %v2664 = vmul.f32 %v2660, %v2295
        %v2665 = vadd.f32 %v2661, 1e-05
        %v2666 = vadd.f32 %v2662, 1e-05
        %v2667 = vadd.f32 %v2663, 1e-05
        %v2668 = vadd.f32 %v2664, 1e-05
        %v2669 = vrsqrt.pop %v2665
        %v2670 = vrsqrt.pop %v2666
        %v2671 = vrsqrt.pop %v2667
        %v2672 = vrsqrt.pop %v2668
        %v2673 = vmul.f32 %v2641, %v2669
        %v2674 = vmul.f32 %v2642, %v2670
        %v2675 = vmul.f32 %v2643, %v2671
        %v2676 = vmul.f32 %v2644, %v2672
        %v2678 = vlaneseq
        %v2679 = vshrl.u32 %v2678, 7
        %v2680 = vsub.s32 0, %v2679
        %v2681 = vrot.slane %v2623, %v2680
        %v2683 = vmul.f32 %v2673, %v2681
        %v2684 = vmul.f32 %v2674, %v2681
        %v2685 = vmul.f32 %v2675, %v2681
        %v2686 = vmul.f32 %v2676, %v2681
        %v2688 = vlaneseq
        %v2689 = vshrl.u32 %v2688, 7
        %v2690 = vsub.s32 0, %v2689
        %v2691 = vrot.slane %v2624, %v2690
        %v2693 = vadd.f32 %v2683, %v2691
        %v2694 = vadd.f32 %v2684, %v2691
        %v2695 = vadd.f32 %v2685, %v2691
        %v2696 = vadd.f32 %v2686, %v2691
        %2697 = vst.msk [vmem:[%s837] sm:$0xff] %vm890, %v2693
        %2698 = vst.msk [vmem:[%s837 + $0x8] sm:$0xff] %vm890, %v2694
        %2699 = vst.msk [vmem:[%s837 + $0x10] sm:$0xff] %vm890, %v2695
        %2700 = vst.msk [vmem:[%s837 + $0x18] sm:$0xff] %vm890, %v2696
      $region100: #{transformer_encoder_forward.1} parent=91 // pred_fallthru
        _
      %s2701 = smul.u32 4, %s33
      %p2702 = scmp.lt.s32.totalorder %s2701, 3
      %s2703 = scalar_select %p2702, %s2701, 3
      %s2704 = smul.addr %s2703, 8
      %s2705 = scalar_lea.vmem %s18, %s2704
      // Predicated region
      $region101: #{transformer_encoder_forward.1} parent=91 // pred_check
        %p2706 = pneg %p517
      $region102: #{transformer_encoder_forward.1} parent=91 // pred_check_branch
        %2708 = sbr.rel (%p2706) target = $region104
      $region103: #{transformer_encoder_forward.1} parent=91 // pred_region
        %s2709 = smul.u32 4, %s33
      $region104: #{transformer_encoder_forward.1} parent=91 // pred_fallthru
        _
      // Predicated region
      $region105: #{transformer_encoder_forward.1} parent=91 // pred_check
        %p2710 = pneg %p517
      $region106: #{transformer_encoder_forward.1} parent=91 // pred_check_branch
        %2712 = sbr.rel (%p2710) target = $region108
      $region107: #{transformer_encoder_forward.1} parent=91 // pred_region
        %s2713 = smul.u32 4, %s33
        %p2714 = scmp.lt.s32.totalorder %s2713, 3
        %s2715 = scalar_select %p2714, %s2713, 3
        %s2716 = smul.addr %s2715, 8
        %s2717 = scalar_lea.vmem %s18, %s2716
      $region108: #{transformer_encoder_forward.1} parent=91 // pred_fallthru
        _
    $region92: #{transformer_encoder_forward.1} parent=5 // pred_fallthru
      _
    %p2718 = scmp.le.s32.totalorder 2, %s24
    // Predicated region
    $region109: #{transformer_encoder_forward.1} parent=5 // pred_check
      %p2719 = pneg %p2718
    $region110: #{transformer_encoder_forward.1} parent=5 // pred_check_branch
      %2721 = sbr.rel (%p2719) target = $region112
    $region111: #{transformer_encoder_forward.1} parent=5 // pred_region
      %s2722 = ssub.s32 %s24, 2
    $region112: #{transformer_encoder_forward.1} parent=5 // pred_fallthru
      _
  $region6: #{transformer_encoder_forward.1} parent=0 // loop_footer
    %s28 = sadd.s32 1, %s24
  $region7: #{transformer_encoder_forward.1} parent=0 // loop_footer_branch
    %23 = sbr.rel target = $region3
  $region8: #{transformer_encoder_forward.1} parent=0 // loop_exit
    _

</llo_original>
